<compile_context>
chip_gen: v5e
topology: v5e:2x2
jax: 0.10.0
libtpu: 0.0.40
codegen_flags: <defaults>
</compile_context>

<pallas_src>
import functools

import jax
import jax.numpy as jnp
from jax.experimental import pallas as pl
from jax.experimental.pallas import tpu as pltpu


# ----------------------------------------------------------------------------
# Pallas kernel: out = X @ Wc + bc
#   X  : [tm, K]  bf16 im2col patches of the 2x2 conv (K = 1280*2*2 = 5120)
#   Wc : [K, 256] bf16 fully-folded weight (layer1*BN1 @ layer2*BN2)
#   bc : [1, 256] f32  fully-folded bias
# ----------------------------------------------------------------------------
def _encoder_kernel(x_ref, w_ref, b_ref, o_ref):
    acc = jnp.dot(x_ref[...], w_ref[...], preferred_element_type=jnp.float32)
    o_ref[...] = (acc + b_ref[...]).astype(o_ref.dtype)


def _choose_tile_m(M):
    """Row-tile size.

    Large M: multiples of 256 (full MXU occupancy on v6e/v7x, >=128 for v5e),
    capped at 512 to bound the per-tile VMEM footprint.  Small M: two tiles of
    ceil(M/2) rounded up to a multiple of 8 (sublane rule), so the parallel
    grid axis always has >= 2 steps for the v7x megacore and the padded-row
    waste stays small.
    """
    half = (M + 1) // 2
    if half <= 256:
        return max(8, ((half + 7) // 8) * 8)
    return min(512, (half // 256) * 256)


def fused_encoder_matmul(patches, w_c, b_c):
    """patches: [M, K] bf16 -> [M, 256] f32 = patches @ w_c + b_c."""
    M, K = patches.shape
    N = w_c.shape[1]
    tm = _choose_tile_m(M)
    M_pad = pl.cdiv(M, tm) * tm
    if M_pad != M:
        patches = jnp.pad(patches, ((0, M_pad - M), (0, 0)))  # bf16 pad

    cost = pl.CostEstimate(
        flops=2 * M_pad * K * N,
        transcendentals=0,
        bytes_accessed=M_pad * K * 2 + K * N * 2 + N * 4 + M_pad * N * 4,
    )

    out = pl.pallas_call(
        _encoder_kernel,
        out_shape=jax.ShapeDtypeStruct((M_pad, N), jnp.float32),
        grid_spec=pltpu.PrefetchScalarGridSpec(
            num_scalar_prefetch=0,
            grid=(M_pad // tm,),
            in_specs=[
                pl.BlockSpec((tm, K), lambda m: (m, 0)),   # patch rows (pipelined)
                pl.BlockSpec((K, N), lambda m: (0, 0)),    # folded weight (resident)
                pl.BlockSpec((1, N), lambda m: (0, 0)),    # folded bias (resident)
            ],
            out_specs=pl.BlockSpec((tm, N), lambda m: (m, 0)),
        ),
        compiler_params=pltpu.CompilerParams(
            dimension_semantics=("parallel",),     # M tiles -> megacore on v7x
            vmem_limit_bytes=32 * 1024 * 1024,     # fits v5e..v7x comfortably
        ),
        cost_estimate=cost,
    )(patches, w_c, b_c)

    return out[:M]


# ----------------------------------------------------------------------------
# Glue: bf16 im2col + NCHW plumbing.  BN folding, the layer1/layer2 algebraic
# fold and all weight transposes are hoisted into prepare_params (run once).
# ----------------------------------------------------------------------------
def _im2col_bf16(x_nchw, kh, kw, pad):
    """NCHW -> bf16 patches [B*OH*OW, Cin*kh*kw] matching OIHW weight order."""
    x = x_nchw.astype(jnp.bfloat16)          # halve the inflated im2col bytes
    x = jnp.pad(x, ((0, 0), (0, 0), (pad, pad), (pad, pad)))
    B, C, Hp, Wp = x.shape
    OH, OW = Hp - kh + 1, Wp - kw + 1
    cols = [x[:, :, i : i + OH, j : j + OW] for i in range(kh) for j in range(kw)]
    # [B, C, kh*kw, OH, OW] -> [B, OH, OW, C, kh*kw]
    patches = jnp.stack(cols, axis=2).transpose(0, 3, 4, 1, 2)
    return patches.reshape(B * OH * OW, C * kh * kw), OH, OW


def prepare_params(params, eps=1e-5):
    """Fold BN into the convs and fold layer2 into layer1 (done once, in f32)."""
    # layer1: Conv2d(1280, 512, k=2, pad=1) + BN(512)
    w1 = params["w1"]                                   # [512, 1280, 2, 2]
    c1_out, c1_in, kh, kw = w1.shape
    g1, be1, m1, v1 = params["bn1"]
    s1 = g1 / jnp.sqrt(v1 + eps)
    b1 = (params["b1"] - m1) * s1 + be1                 # [512]
    w1_2d = w1.reshape(c1_out, c1_in * kh * kw).T * s1  # [K, 512], BN1 scale folded

    # layer2: Conv2d(512, 256, k=1) + BN(256)
    w2 = params["w2"]                                   # [256, 512, 1, 1]
    c2_out, c2_in = w2.shape[:2]
    g2, be2, m2, v2 = params["bn2"]
    s2 = g2 / jnp.sqrt(v2 + eps)
    b2 = (params["b2"] - m2) * s2 + be2                 # [256]
    w2_2d = w2.reshape(c2_out, c2_in).T * s2            # [512, 256], BN2 scale folded

    # Algebraic fold (no nonlinearity between the blocks):
    #   out = (X @ W1' + b1) @ W2' + b2 = X @ (W1' @ W2') + (b1 @ W2' + b2)
    w_c = (w1_2d @ w2_2d).astype(jnp.bfloat16)          # [5120, 256]
    b_c = (b1 @ w2_2d + b2).reshape(1, -1).astype(jnp.float32)
    return {"w_c": w_c, "b_c": b_c, "kh": kh, "kw": kw}


def encoder_forward(features_bvchw, prep):
    """features_bvchw: [B, V, 1280, h, w] (EfficientNet output features).

    Mirrors the module: per-view layer1+layer2, stacked to [B, V, 256, h+1, w+1].
    All views are collapsed into one batch so everything runs in a single
    Pallas call.
    """
    B, V, C, H, W = features_bvchw.shape
    x = features_bvchw.reshape(B * V, C, H, W)
    patches, OH, OW = _im2col_bf16(x, kh=prep["kh"], kw=prep["kw"], pad=1)
    out = fused_encoder_matmul(patches, prep["w_c"], prep["b_c"])  # [B*V*OH*OW, 256]
    n_out = prep["w_c"].shape[1]
    out = out.reshape(B * V, OH, OW, n_out).transpose(0, 3, 1, 2)  # back to NCHW
    return out.reshape(B, V, n_out, OH, OW)


# ----------------------------------------------------------------------------
# Deterministic parameter init (shapes from the module's __init__)
# ----------------------------------------------------------------------------
def init_params(key):
    keys = jax.random.split(key, 8)
    p = {}
    p["w1"] = 0.02 * jax.random.normal(keys[0], (512, 1280, 2, 2), jnp.float32)
    p["b1"] = 0.1 * jax.random.normal(keys[1], (512,), jnp.float32)
    p["bn1"] = (
        1.0 + 0.05 * jax.random.normal(keys[2], (512,), jnp.float32),  # gamma
        0.05 * jax.random.normal(keys[3], (512,), jnp.float32),        # beta
        jnp.zeros((512,), jnp.float32),                                # running_mean
        jnp.ones((512,), jnp.float32),                                 # running_var
    )
    p["w2"] = 0.05 * jax.random.normal(keys[4], (256, 512, 1, 1), jnp.float32)
    p["b2"] = 0.1 * jax.random.normal(keys[5], (256,), jnp.float32)
    p["bn2"] = (
        1.0 + 0.05 * jax.random.normal(keys[6], (256,), jnp.float32),
        0.05 * jax.random.normal(keys[7], (256,), jnp.float32),
        jnp.zeros((256,), jnp.float32),
        jnp.ones((256,), jnp.float32),
    )
    return p


# Pure-JAX reference (lax.conv, f32, two separate layers) for correctness.
def _reference_forward(features_bvchw, params):
    def conv_bn_ref(x, w, b, bn, pad):
        gamma, beta, mean, var = bn
        y = jax.lax.conv_general_dilated(
            x, w, window_strides=(1, 1), padding=((pad, pad), (pad, pad)),
            dimension_numbers=("NCHW", "OIHW", "NCHW"),
        ) + b.reshape(1, -1, 1, 1)
        s = (gamma / jnp.sqrt(var + 1e-5)).reshape(1, -1, 1, 1)
        return y * s + (beta - mean * gamma / jnp.sqrt(var + 1e-5)).reshape(1, -1, 1, 1)

    B, V = features_bvchw.shape[:2]
    outs = []
    for v in range(V):
        f = features_bvchw[:, v]
        f = conv_bn_ref(f, params["w1"], params["b1"], params["bn1"], 1)
        f = conv_bn_ref(f, params["w2"], params["b2"], params["bn2"], 0)
        outs.append(f)
    return jnp.stack(outs, axis=1)


if __name__ == "__main__":
    key = jax.random.PRNGKey(0)
    k_feat, k_param = jax.random.split(key)

    B, V, C, H, W = 2, 2, 1280, 4, 4  # small EfficientNet-b0 feature maps
    features = jax.random.normal(k_feat, (B, V, C, H, W), jnp.float32)
    params = init_params(k_param)
    prep = prepare_params(params)  # fold BN + fold layers + transpose, once

    fwd = jax.jit(functools.partial(encoder_forward, prep=prep))
    out = jax.block_until_ready(fwd(features))

    assert out.shape == (B, V, 256, H + 1, W + 1), out.shape

    ref = jax.block_until_ready(_reference_forward(features, params))
    assert jnp.allclose(out, ref, rtol=3e-2, atol=3e-2), float(
        jnp.max(jnp.abs(out - ref))
    )

    print("KERNEL_OK")
</pallas_src>

<mosaic_0001>
module attributes {stable_mosaic.version = 11 : i64} {
  func.func @_encoder_kernel(%arg0: i32, %arg1: memref<56x5120xbf16, #tpu.memory_space<vmem>>, %arg2: memref<5120x256xbf16, #tpu.memory_space<vmem>>, %arg3: memref<1x256xf32, #tpu.memory_space<vmem>>, %arg4: memref<56x256xf32, #tpu.memory_space<vmem>>) attributes {dimension_semantics = [#tpu.dimension_semantics<parallel>], iteration_bounds = array<i64: 2>, scalar_prefetch = 0 : i64, scratch_operands = 0 : i64, tpu.core_type = #tpu.core_type<tc>, window_params = [{transform_indices = @transform_0, window_bounds = array<i64: 56, 5120>}, {pipeline_mode = #tpu.pipeline_mode<synchronous>, transform_indices = @transform_1, window_bounds = array<i64: 5120, 256>}, {pipeline_mode = #tpu.pipeline_mode<synchronous>, transform_indices = @transform_2, window_bounds = array<i64: 1, 256>}, {transform_indices = @transform_3, window_bounds = array<i64: 56, 256>}]} {
    %c0 = arith.constant 0 : index
    %c0_0 = arith.constant 0 : index
    %0 = vector.load %arg1[%c0, %c0_0] : memref<56x5120xbf16, #tpu.memory_space<vmem>>, vector<56x5120xbf16>
    %c0_1 = arith.constant 0 : index
    %c0_2 = arith.constant 0 : index
    %1 = vector.load %arg2[%c0_1, %c0_2] : memref<5120x256xbf16, #tpu.memory_space<vmem>>, vector<5120x256xbf16>
    %cst = arith.constant dense<0.000000e+00> : vector<56x256xf32>
    %2 = tpu.matmul %0, %1, %cst {dimension_numbers = #tpu.dot_dimension_numbers<[1], [0], [0], [1], [0, 0, 1, 1], [], []>} : vector<56x5120xbf16>, vector<5120x256xbf16>, vector<56x256xf32> -> vector<56x256xf32>
    %c0_3 = arith.constant 0 : index
    %c0_4 = arith.constant 0 : index
    %3 = vector.load %arg3[%c0_3, %c0_4] : memref<1x256xf32, #tpu.memory_space<vmem>>, vector<1x256xf32>
    %4 = vector.broadcast %3 : vector<1x256xf32> to vector<56x256xf32>
    %5 = arith.addf %2, %4 : vector<56x256xf32>
    %c0_5 = arith.constant 0 : index
    %c0_6 = arith.constant 0 : index
    %6 = vector.load %arg4[%c0_5, %c0_6] : memref<56x256xf32, #tpu.memory_space<vmem>>, vector<56x256xf32>
    tpu.vector_store %arg4[%c0_5, %c0_6], %5 {strides = array<i32>} : memref<56x256xf32, #tpu.memory_space<vmem>>, vector<56x256xf32>,
    return
  }
  func.func @transform_0(%arg0: i32) -> (i32, i32) {
    %c0_i32 = arith.constant 0 : i32
    %c0_i32_0 = arith.constant 0 : i32
    return %arg0, %c0_i32 : i32, i32
  }
  func.func @transform_1(%arg0: i32) -> (i32, i32) {
    %c0_i32 = arith.constant 0 : i32
    %c0_i32_0 = arith.constant 0 : i32
    %c0_i32_1 = arith.constant 0 : i32
    return %c0_i32, %c0_i32_0 : i32, i32
  }
  func.func @transform_2(%arg0: i32) -> (i32, i32) {
    %c0_i32 = arith.constant 0 : i32
    %c0_i32_0 = arith.constant 0 : i32
    %c0_i32_1 = arith.constant 0 : i32
    return %c0_i32, %c0_i32_0 : i32, i32
  }
  func.func @transform_3(%arg0: i32) -> (i32, i32) {
    %c0_i32 = arith.constant 0 : i32
    %c0_i32_0 = arith.constant 0 : i32
    return %arg0, %c0_i32 : i32, i32
  }
}

</mosaic_0001>

<llo_original>
// kernel: encoder_forward.1
$region0: #{encoder_forward.1}
  #allocation0 [shape = 'u32[]', space=smem, size = 0x4, offset = 0x4, fixed_abs, tag = 'smem constant byte address 0x4 - core index']
  #allocation1 [shape = 'u32[72,128]{1,0:T(1,128)}', space=vmem, size = 0x9000, scoped, tag = 'internal scratch']
  %s0 = inlined_call_operand.vmem [shape: bf16[112,5120], index: 0, kind: input, shape index: {}]
  %s1 = inlined_call_operand.vmem [shape: bf16[5120,256], index: 1, kind: input, shape index: {}]
  %s2 = inlined_call_operand.vmem [shape: f32[1,256], index: 2, kind: input, shape index: {}]
  %s3 = inlined_call_operand.vmem [shape: f32[112,256], index: 3, kind: output, shape index: {}]
  %s4 = sld [smem:[#allocation0]]
  $region45: #{encoder_forward.1} parent=0
    _
  %s6 = ssub.s32 1, %s4
  %s7 = scalar_select 0, %s6, %s4
  loop: start=0, step=1, limit=4
  $region2: #{encoder_forward.1} parent=0 // loop_pre_header
    _
  $region3: #{encoder_forward.1} parent=0 // loop_header
    %s9 = sphi 0, %s13
    %p10 = scmp.ge.s32.totalorder %s9, 4
    %s19 = sphi 0, %s21
    %s22 = sphi 0, %s19
    %s23 = sphi 0, %s22
    %s39 = sphi 0, %s23
    %s43 = sphi 0, %s43
    %s45 = sphi 0, %s43
    %s46 = sphi 0, %s45
    %s60 = sphi 0, %s46
    %s64 = sphi 0, %s64
    %s66 = sphi 0, %s64
    %s67 = sphi 0, %s66
    %s81 = sphi 0, %s67
    %s87 = sphi 0, %s89
    %s90 = sphi 0, %s87
    %s91 = sphi 0, %s90
    %s107 = sphi 0, %s91
  $region4: #{encoder_forward.1} parent=0 // loop_header_branch
    %12 = sbr.rel (%p10) target = $region8
  $region5: #{encoder_forward.1} parent=0 // loop_body
    %s14 = ssub.s32 %s9, 1
    %s15 = ssub.s32 %s9, 2
    %s16 = sadd.s32 %s9, 1
    %s17 = ssub.s32 %s9, %s16
    %p18 = scmp.eq.s32.totalorder %s17, 0
    %s20 = sadd.s32 %s19, 1
    %s21 = scalar_select %p18, %s19, %s20
    %p24 = pneg %p18
    %p25 = scmp.eq.s32.totalorder %s9, 1
    %p26 = por %p24, %p25
    %p27 = scmp.ne.s32.totalorder %s19, %s22
    %p28 = scmp.eq.s32.totalorder %s9, 0
    %p29 = por %p27, %p28
    %p30 = scmp.ne.s32.totalorder %s19, %s22
    %p31 = scmp.eq.s32.totalorder %s14, 1
    %p32 = por %p30, %p31
    %p33 = scmp.ne.s32.totalorder %s22, %s23
    %p34 = scmp.eq.s32.totalorder %s14, 0
    %p35 = por %p33, %p34
    %p36 = scmp.ne.s32.totalorder %s22, %s23
    %p37 = scmp.eq.s32.totalorder %s15, 1
    %p38 = por %p36, %p37
    %p40 = scmp.ne.s32.totalorder %s23, %s39
    %p41 = scmp.eq.s32.totalorder %s15, 0
    %p42 = por %p40, %p41
    %s44 = sadd.s32 %s43, 1
    %p47 = scmp.eq.s32.totalorder %s9, 1
    %p48 = scmp.ne.s32.totalorder %s43, %s45
    %p49 = scmp.eq.s32.totalorder %s9, 0
    %p50 = por %p48, %p49
    %p51 = scmp.ne.s32.totalorder %s43, %s45
    %p52 = scmp.eq.s32.totalorder %s14, 1
    %p53 = por %p51, %p52
    %p54 = scmp.ne.s32.totalorder %s45, %s46
    %p55 = scmp.eq.s32.totalorder %s14, 0
    %p56 = por %p54, %p55
    %p57 = scmp.ne.s32.totalorder %s45, %s46
    %p58 = scmp.eq.s32.totalorder %s15, 1
    %p59 = por %p57, %p58
    %p61 = scmp.ne.s32.totalorder %s46, %s60
    %p62 = scmp.eq.s32.totalorder %s15, 0
    %p63 = por %p61, %p62
    %s65 = sadd.s32 %s64, 1
    %p68 = scmp.eq.s32.totalorder %s9, 1
    %p69 = scmp.ne.s32.totalorder %s64, %s66
    %p70 = scmp.eq.s32.totalorder %s9, 0
    %p71 = por %p69, %p70
    %p72 = scmp.ne.s32.totalorder %s64, %s66
    %p73 = scmp.eq.s32.totalorder %s14, 1
    %p74 = por %p72, %p73
    %p75 = scmp.ne.s32.totalorder %s66, %s67
    %p76 = scmp.eq.s32.totalorder %s14, 0
    %p77 = por %p75, %p76
    %p78 = scmp.ne.s32.totalorder %s66, %s67
    %p79 = scmp.eq.s32.totalorder %s15, 1
    %p80 = por %p78, %p79
    %p82 = scmp.ne.s32.totalorder %s67, %s81
    %p83 = scmp.eq.s32.totalorder %s15, 0
    %p84 = por %p82, %p83
    %s85 = ssub.s32 %s9, %s16
    %p86 = scmp.eq.s32.totalorder %s85, 0
    %s88 = sadd.s32 %s87, 1
    %s89 = scalar_select %p86, %s87, %s88
    %p92 = pneg %p86
    %p93 = scmp.eq.s32.totalorder %s9, 1
    %p94 = por %p92, %p93
    %p95 = scmp.ne.s32.totalorder %s87, %s90
    %p96 = scmp.eq.s32.totalorder %s9, 0
    %p97 = por %p95, %p96
    %p98 = scmp.ne.s32.totalorder %s87, %s90
    %p99 = scmp.eq.s32.totalorder %s14, 1
    %p100 = por %p98, %p99
    %p101 = scmp.ne.s32.totalorder %s90, %s91
    %p102 = scmp.eq.s32.totalorder %s14, 0
    %p103 = por %p101, %p102
    %p104 = scmp.ne.s32.totalorder %s90, %s91
    %p105 = scmp.eq.s32.totalorder %s15, 1
    %p106 = por %p104, %p105
    %p108 = scmp.ne.s32.totalorder %s91, %s107
    %p109 = scmp.eq.s32.totalorder %s15, 0
    %p110 = por %p108, %p109
    %p111 = scmp.le.s32.totalorder 1, %s9
    %p112 = scmp.lt.s32.totalorder %s9, 3
    %p113 = pnand %p111, %p112
    %p114 = pneg %p113
    // Predicated region
    $region9: #{encoder_forward.1} parent=5 // pred_check
      _
    $region10: #{encoder_forward.1} parent=5 // pred_check_branch
      %116 = sbr.rel (%p113) target = $region12
    $region11: #{encoder_forward.1} parent=5 // pred_region
      %s117 = ssub.s32 %s9, 1
      // Predicated region
      $region13: #{encoder_forward.1} parent=11 // pred_check
        %p118 = pneg %p56
      $region14: #{encoder_forward.1} parent=11 // pred_check_branch
        %120 = sbr.rel (%p118) target = $region16
      $region15: #{encoder_forward.1} parent=11 // pred_region
        _
      $region16: #{encoder_forward.1} parent=11 // pred_fallthru
        _
      // Predicated region
      $region17: #{encoder_forward.1} parent=11 // pred_check
        %p121 = pneg %p77
      $region18: #{encoder_forward.1} parent=11 // pred_check_branch
        %123 = sbr.rel (%p121) target = $region20
      $region19: #{encoder_forward.1} parent=11 // pred_region
        _
      $region20: #{encoder_forward.1} parent=11 // pred_fallthru
        _
    $region12: #{encoder_forward.1} parent=5 // pred_fallthru
      _
    %p124 = scmp.lt.s32.totalorder %s9, 2
    // Predicated region
    $region21: #{encoder_forward.1} parent=5 // pred_check
      %p125 = pneg %p124
    $region22: #{encoder_forward.1} parent=5 // pred_check_branch
      %127 = sbr.rel (%p125) target = $region24
    $region23: #{encoder_forward.1} parent=5 // pred_region
      // Predicated region
      $region25: #{encoder_forward.1} parent=23 // pred_check
        %p128 = pneg %p29
      $region26: #{encoder_forward.1} parent=23 // pred_check_branch
        %130 = sbr.rel (%p128) target = $region28
      $region27: #{encoder_forward.1} parent=23 // pred_region
        %s131 = smul.u32 7, %s9
        %p132 = scmp.lt.s32.totalorder %s131, 13
        %s133 = scalar_select %p132, %s131, 13
        %s134 = smul.addr %s133, 40
        %s135 = smul.addr %s134, 4
        %s136 = scalar_lea.vmem %s0, %s135
        %s137 = smul.u32 7, %s9
      $region28: #{encoder_forward.1} parent=23 // pred_fallthru
        _
    $region24: #{encoder_forward.1} parent=5 // pred_fallthru
      _
    %p138 = scmp.le.s32.totalorder 1, %s9
    %p139 = scmp.lt.s32.totalorder %s9, 3
    %p140 = pnand %p138, %p139
    %p141 = pneg %p140
    // Predicated region
    $region29: #{encoder_forward.1} parent=5 // pred_check
      _
    $region30: #{encoder_forward.1} parent=5 // pred_check_branch
      %143 = sbr.rel (%p140) target = $region32
    $region31: #{encoder_forward.1} parent=5 // pred_region
      %s144 = ssub.s32 %s9, 1
      %s145 = smul.u32 7, %s14
      %p146 = scmp.lt.s32.totalorder %s145, 13
      %s147 = scalar_select %p146, %s145, 13
      %s148 = smul.addr %s147, 40
      %s149 = smul.addr %s148, 4
      %s150 = scalar_lea.vmem %s0, %s149
      %p151 = pneg %p35
      %p152 = pneg %p32
      %p153 = pneg %p56
      %p154 = pneg %p53
      %p155 = pneg %p77
      %p156 = pneg %p74
      %p157 = pneg %p103
      %p158 = pneg %p100
      %s159 = smul.u32 7, %s14
      %p160 = scmp.lt.s32.totalorder %s159, 13
      %s161 = scalar_select %p160, %s159, 13
      %s162 = smul.addr %s161, 2
      %s163 = smul.addr %s162, 8
      %s164 = scalar_lea.vmem %s3, %s163
      %s165 = smul.u32 7, %s14
      %p166 = scmp.lt.s32.totalorder %s165, 13
      %s167 = scalar_select %p166, %s165, 13
      %s168 = smul.addr %s167, 40
      %s169 = smul.addr %s168, 4
      %s170 = scalar_lea.vmem %s0, %s169
      %s171 = smul.u32 7, %s14
      %s172 = smul.u32 7, %s14
      %p173 = scmp.lt.s32.totalorder %s172, 13
      %s174 = scalar_select %p173, %s172, 13
      %s175 = smul.addr %s174, 2
      %s176 = smul.addr %s175, 8
      %s177 = scalar_lea.vmem %s3, %s176
      %s178 = smul.u32 7, %s14
      %v179 = vld [vmem:[%s170] sm:$0xff]
      %v180 = vld [vmem:[%s170 + $0x8] sm:$0xff]
      %v181 = vld [vmem:[%s170 + $0x10] sm:$0xff]
      %v182 = vld [vmem:[%s170 + $0x18] sm:$0xff]
      %v183 = vld [vmem:[%s170 + $0x20] sm:$0xff]
      %v184 = vld [vmem:[%s170 + $0x28] sm:$0xff]
      %v185 = vld [vmem:[%s170 + $0x30] sm:$0xff]
      %v186 = vld [vmem:[%s170 + $0x38] sm:$0xff]
      %v187 = vld [vmem:[%s170 + $0x40] sm:$0xff]
      %v188 = vld [vmem:[%s170 + $0x48] sm:$0xff]
      %v189 = vld [vmem:[%s170 + $0x50] sm:$0xff]
      %v190 = vld [vmem:[%s170 + $0x58] sm:$0xff]
      %v191 = vld [vmem:[%s170 + $0x60] sm:$0xff]
      %v192 = vld [vmem:[%s170 + $0x68] sm:$0xff]
      %v193 = vld [vmem:[%s170 + $0x70] sm:$0xff]
      %v194 = vld [vmem:[%s170 + $0x78] sm:$0xff]
      %v195 = vld [vmem:[%s170 + $0x80] sm:$0xff]
      %v196 = vld [vmem:[%s170 + $0x88] sm:$0xff]
      %v197 = vld [vmem:[%s170 + $0x90] sm:$0xff]
      %v198 = vld [vmem:[%s170 + $0x98] sm:$0xff]
      %v199 = vld [vmem:[%s170 + $0xa0] sm:$0xff]
      %v200 = vld [vmem:[%s170 + $0xa8] sm:$0xff]
      %v201 = vld [vmem:[%s170 + $0xb0] sm:$0xff]
      %v202 = vld [vmem:[%s170 + $0xb8] sm:$0xff]
      %v203 = vld [vmem:[%s170 + $0xc0] sm:$0xff]
      %v204 = vld [vmem:[%s170 + $0xc8] sm:$0xff]
      %v205 = vld [vmem:[%s170 + $0xd0] sm:$0xff]
      %v206 = vld [vmem:[%s170 + $0xd8] sm:$0xff]
      %v207 = vld [vmem:[%s170 + $0xe0] sm:$0xff]
      %v208 = vld [vmem:[%s170 + $0xe8] sm:$0xff]
      %v209 = vld [vmem:[%s170 + $0xf0] sm:$0xff]
      %v210 = vld [vmem:[%s170 + $0xf8] sm:$0xff]
      %v211 = vld [vmem:[%s170 + $0x100] sm:$0xff]
      %v212 = vld [vmem:[%s170 + $0x108] sm:$0xff]
      %v213 = vld [vmem:[%s170 + $0x110] sm:$0xff]
      %v214 = vld [vmem:[%s170 + $0x118] sm:$0xff]
      %v215 = vld [vmem:[%s170 + $0x120] sm:$0xff]
      %v216 = vld [vmem:[%s170 + $0x128] sm:$0xff]
      %v217 = vld [vmem:[%s170 + $0x130] sm:$0xff]
      %v218 = vld [vmem:[%s170 + $0x138] sm:$0xff]
      %v219 = vld [vmem:[%s170 + $0x140] sm:$0xff]
      %v220 = vld [vmem:[%s170 + $0x148] sm:$0xff]
      %v221 = vld [vmem:[%s170 + $0x150] sm:$0xff]
      %v222 = vld [vmem:[%s170 + $0x158] sm:$0xff]
      %v223 = vld [vmem:[%s170 + $0x160] sm:$0xff]
      %v224 = vld [vmem:[%s170 + $0x168] sm:$0xff]
      %v225 = vld [vmem:[%s170 + $0x170] sm:$0xff]
      %v226 = vld [vmem:[%s170 + $0x178] sm:$0xff]
      %v227 = vld [vmem:[%s170 + $0x180] sm:$0xff]
      %v228 = vld [vmem:[%s170 + $0x188] sm:$0xff]
      %v229 = vld [vmem:[%s170 + $0x190] sm:$0xff]
      %v230 = vld [vmem:[%s170 + $0x198] sm:$0xff]
      %v231 = vld [vmem:[%s170 + $0x1a0] sm:$0xff]
      %v232 = vld [vmem:[%s170 + $0x1a8] sm:$0xff]
      %v233 = vld [vmem:[%s170 + $0x1b0] sm:$0xff]
      %v234 = vld [vmem:[%s170 + $0x1b8] sm:$0xff]
      %v235 = vld [vmem:[%s170 + $0x1c0] sm:$0xff]
      %v236 = vld [vmem:[%s170 + $0x1c8] sm:$0xff]
      %v237 = vld [vmem:[%s170 + $0x1d0] sm:$0xff]
      %v238 = vld [vmem:[%s170 + $0x1d8] sm:$0xff]
      %v239 = vld [vmem:[%s170 + $0x1e0] sm:$0xff]
      %v240 = vld [vmem:[%s170 + $0x1e8] sm:$0xff]
      %v241 = vld [vmem:[%s170 + $0x1f0] sm:$0xff]
      %v242 = vld [vmem:[%s170 + $0x1f8] sm:$0xff]
      %v243 = vld [vmem:[%s170 + $0x200] sm:$0xff]
      %v244 = vld [vmem:[%s170 + $0x208] sm:$0xff]
      %v245 = vld [vmem:[%s170 + $0x210] sm:$0xff]
      %v246 = vld [vmem:[%s170 + $0x218] sm:$0xff]
      %v247 = vld [vmem:[%s170 + $0x220] sm:$0xff]
      %v248 = vld [vmem:[%s170 + $0x228] sm:$0xff]
      %v249 = vld [vmem:[%s170 + $0x230] sm:$0xff]
      %v250 = vld [vmem:[%s170 + $0x238] sm:$0xff]
      %v251 = vld [vmem:[%s170 + $0x240] sm:$0xff]
      %v252 = vld [vmem:[%s170 + $0x248] sm:$0xff]
      %v253 = vld [vmem:[%s170 + $0x250] sm:$0xff]
      %v254 = vld [vmem:[%s170 + $0x258] sm:$0xff]
      %v255 = vld [vmem:[%s170 + $0x260] sm:$0xff]
      %v256 = vld [vmem:[%s170 + $0x268] sm:$0xff]
      %v257 = vld [vmem:[%s170 + $0x270] sm:$0xff]
      %v258 = vld [vmem:[%s170 + $0x278] sm:$0xff]
      %v259 = vld [vmem:[%s170 + $0x280] sm:$0xff]
      %v260 = vld [vmem:[%s170 + $0x288] sm:$0xff]
      %v261 = vld [vmem:[%s170 + $0x290] sm:$0xff]
      %v262 = vld [vmem:[%s170 + $0x298] sm:$0xff]
      %v263 = vld [vmem:[%s170 + $0x2a0] sm:$0xff]
      %v264 = vld [vmem:[%s170 + $0x2a8] sm:$0xff]
      %v265 = vld [vmem:[%s170 + $0x2b0] sm:$0xff]
      %v266 = vld [vmem:[%s170 + $0x2b8] sm:$0xff]
      %v267 = vld [vmem:[%s170 + $0x2c0] sm:$0xff]
      %v268 = vld [vmem:[%s170 + $0x2c8] sm:$0xff]
      %v269 = vld [vmem:[%s170 + $0x2d0] sm:$0xff]
      %v270 = vld [vmem:[%s170 + $0x2d8] sm:$0xff]
      %v271 = vld [vmem:[%s170 + $0x2e0] sm:$0xff]
      %v272 = vld [vmem:[%s170 + $0x2e8] sm:$0xff]
      %v273 = vld [vmem:[%s170 + $0x2f0] sm:$0xff]
      %v274 = vld [vmem:[%s170 + $0x2f8] sm:$0xff]
      %v275 = vld [vmem:[%s170 + $0x300] sm:$0xff]
      %v276 = vld [vmem:[%s170 + $0x308] sm:$0xff]
      %v277 = vld [vmem:[%s170 + $0x310] sm:$0xff]
      %v278 = vld [vmem:[%s170 + $0x318] sm:$0xff]
      %v279 = vld [vmem:[%s170 + $0x320] sm:$0xff]
      %v280 = vld [vmem:[%s170 + $0x328] sm:$0xff]
      %v281 = vld [vmem:[%s170 + $0x330] sm:$0xff]
      %v282 = vld [vmem:[%s170 + $0x338] sm:$0xff]
      %v283 = vld [vmem:[%s170 + $0x340] sm:$0xff]
      %v284 = vld [vmem:[%s170 + $0x348] sm:$0xff]
      %v285 = vld [vmem:[%s170 + $0x350] sm:$0xff]
      %v286 = vld [vmem:[%s170 + $0x358] sm:$0xff]
      %v287 = vld [vmem:[%s170 + $0x360] sm:$0xff]
      %v288 = vld [vmem:[%s170 + $0x368] sm:$0xff]
      %v289 = vld [vmem:[%s170 + $0x370] sm:$0xff]
      %v290 = vld [vmem:[%s170 + $0x378] sm:$0xff]
      %v291 = vld [vmem:[%s170 + $0x380] sm:$0xff]
      %v292 = vld [vmem:[%s170 + $0x388] sm:$0xff]
      %v293 = vld [vmem:[%s170 + $0x390] sm:$0xff]
      %v294 = vld [vmem:[%s170 + $0x398] sm:$0xff]
      %v295 = vld [vmem:[%s170 + $0x3a0] sm:$0xff]
      %v296 = vld [vmem:[%s170 + $0x3a8] sm:$0xff]
      %v297 = vld [vmem:[%s170 + $0x3b0] sm:$0xff]
      %v298 = vld [vmem:[%s170 + $0x3b8] sm:$0xff]
      %v299 = vld [vmem:[%s170 + $0x3c0] sm:$0xff]
      %v300 = vld [vmem:[%s170 + $0x3c8] sm:$0xff]
      %v301 = vld [vmem:[%s170 + $0x3d0] sm:$0xff]
      %v302 = vld [vmem:[%s170 + $0x3d8] sm:$0xff]
      %v303 = vld [vmem:[%s170 + $0x3e0] sm:$0xff]
      %v304 = vld [vmem:[%s170 + $0x3e8] sm:$0xff]
      %v305 = vld [vmem:[%s170 + $0x3f0] sm:$0xff]
      %v306 = vld [vmem:[%s170 + $0x3f8] sm:$0xff]
      %v307 = vld [vmem:[%s170 + $0x400] sm:$0xff]
      %v308 = vld [vmem:[%s170 + $0x408] sm:$0xff]
      %v309 = vld [vmem:[%s170 + $0x410] sm:$0xff]
      %v310 = vld [vmem:[%s170 + $0x418] sm:$0xff]
      %v311 = vld [vmem:[%s170 + $0x420] sm:$0xff]
      %v312 = vld [vmem:[%s170 + $0x428] sm:$0xff]
      %v313 = vld [vmem:[%s170 + $0x430] sm:$0xff]
      %v314 = vld [vmem:[%s170 + $0x438] sm:$0xff]
      %v315 = vld [vmem:[%s170 + $0x440] sm:$0xff]
      %v316 = vld [vmem:[%s170 + $0x448] sm:$0xff]
      %v317 = vld [vmem:[%s170 + $0x450] sm:$0xff]
      %v318 = vld [vmem:[%s170 + $0x458] sm:$0xff]
      %v319 = vld [vmem:[%s1] sm:$0xff]
      %v320 = vld [vmem:[%s1 + $0x8] sm:$0xff]
      %v321 = vld [vmem:[%s1 + $0x10] sm:$0xff]
      %v322 = vld [vmem:[%s1 + $0x18] sm:$0xff]
      %v323 = vld [vmem:[%s1 + $0x20] sm:$0xff]
      %v324 = vld [vmem:[%s1 + $0x28] sm:$0xff]
      %v325 = vld [vmem:[%s1 + $0x30] sm:$0xff]
      %v326 = vld [vmem:[%s1 + $0x38] sm:$0xff]
      %v327 = vld [vmem:[%s1 + $0x40] sm:$0xff]
      %v328 = vld [vmem:[%s1 + $0x48] sm:$0xff]
      %v329 = vld [vmem:[%s1 + $0x50] sm:$0xff]
      %v330 = vld [vmem:[%s1 + $0x58] sm:$0xff]
      %v331 = vld [vmem:[%s1 + $0x60] sm:$0xff]
      %v332 = vld [vmem:[%s1 + $0x68] sm:$0xff]
      %v333 = vld [vmem:[%s1 + $0x70] sm:$0xff]
      %v334 = vld [vmem:[%s1 + $0x78] sm:$0xff]
      %v335 = vld [vmem:[%s1 + $0x80] sm:$0xff]
      %v336 = vld [vmem:[%s1 + $0x88] sm:$0xff]
      %v337 = vld [vmem:[%s1 + $0x90] sm:$0xff]
      %v338 = vld [vmem:[%s1 + $0x98] sm:$0xff]
      %v339 = vld [vmem:[%s1 + $0xa0] sm:$0xff]
      %v340 = vld [vmem:[%s1 + $0xa8] sm:$0xff]
      %v341 = vld [vmem:[%s1 + $0xb0] sm:$0xff]
      %v342 = vld [vmem:[%s1 + $0xb8] sm:$0xff]
      %v343 = vld [vmem:[%s1 + $0xc0] sm:$0xff]
      %v344 = vld [vmem:[%s1 + $0xc8] sm:$0xff]
      %v345 = vld [vmem:[%s1 + $0xd0] sm:$0xff]
      %v346 = vld [vmem:[%s1 + $0xd8] sm:$0xff]
      %v347 = vld [vmem:[%s1 + $0xe0] sm:$0xff]
      %v348 = vld [vmem:[%s1 + $0xe8] sm:$0xff]
      %v349 = vld [vmem:[%s1 + $0xf0] sm:$0xff]
      %v350 = vld [vmem:[%s1 + $0xf8] sm:$0xff]
      %v351 = vld [vmem:[%s1 + $0x100] sm:$0xff]
      %v352 = vld [vmem:[%s1 + $0x108] sm:$0xff]
      %v353 = vld [vmem:[%s1 + $0x110] sm:$0xff]
      %v354 = vld [vmem:[%s1 + $0x118] sm:$0xff]
      %v355 = vld [vmem:[%s1 + $0x120] sm:$0xff]
      %v356 = vld [vmem:[%s1 + $0x128] sm:$0xff]
      %v357 = vld [vmem:[%s1 + $0x130] sm:$0xff]
      %v358 = vld [vmem:[%s1 + $0x138] sm:$0xff]
      %v359 = vld [vmem:[%s1 + $0x140] sm:$0xff]
      %v360 = vld [vmem:[%s1 + $0x148] sm:$0xff]
      %v361 = vld [vmem:[%s1 + $0x150] sm:$0xff]
      %v362 = vld [vmem:[%s1 + $0x158] sm:$0xff]
      %v363 = vld [vmem:[%s1 + $0x160] sm:$0xff]
      %v364 = vld [vmem:[%s1 + $0x168] sm:$0xff]
      %v365 = vld [vmem:[%s1 + $0x170] sm:$0xff]
      %v366 = vld [vmem:[%s1 + $0x178] sm:$0xff]
      %v367 = vld [vmem:[%s1 + $0x180] sm:$0xff]
      %v368 = vld [vmem:[%s1 + $0x188] sm:$0xff]
      %v369 = vld [vmem:[%s1 + $0x190] sm:$0xff]
      %v370 = vld [vmem:[%s1 + $0x198] sm:$0xff]
      %v371 = vld [vmem:[%s1 + $0x1a0] sm:$0xff]
      %v372 = vld [vmem:[%s1 + $0x1a8] sm:$0xff]
      %v373 = vld [vmem:[%s1 + $0x1b0] sm:$0xff]
      %v374 = vld [vmem:[%s1 + $0x1b8] sm:$0xff]
      %v375 = vld [vmem:[%s1 + $0x1c0] sm:$0xff]
      %v376 = vld [vmem:[%s1 + $0x1c8] sm:$0xff]
      %v377 = vld [vmem:[%s1 + $0x1d0] sm:$0xff]
      %v378 = vld [vmem:[%s1 + $0x1d8] sm:$0xff]
      %v379 = vld [vmem:[%s1 + $0x1e0] sm:$0xff]
      %v380 = vld [vmem:[%s1 + $0x1e8] sm:$0xff]
      %v381 = vld [vmem:[%s1 + $0x1f0] sm:$0xff]
      %v382 = vld [vmem:[%s1 + $0x1f8] sm:$0xff]
      %v383 = vld [vmem:[%s1 + $0x200] sm:$0xff]
      %v384 = vld [vmem:[%s1 + $0x208] sm:$0xff]
      %v385 = vld [vmem:[%s1 + $0x210] sm:$0xff]
      %v386 = vld [vmem:[%s1 + $0x218] sm:$0xff]
      %v387 = vld [vmem:[%s1 + $0x220] sm:$0xff]
      %v388 = vld [vmem:[%s1 + $0x228] sm:$0xff]
      %v389 = vld [vmem:[%s1 + $0x230] sm:$0xff]
      %v390 = vld [vmem:[%s1 + $0x238] sm:$0xff]
      %v391 = vld [vmem:[%s1 + $0x240] sm:$0xff]
      %v392 = vld [vmem:[%s1 + $0x248] sm:$0xff]
      %v393 = vld [vmem:[%s1 + $0x250] sm:$0xff]
      %v394 = vld [vmem:[%s1 + $0x258] sm:$0xff]
      %v395 = vld [vmem:[%s1 + $0x260] sm:$0xff]
      %v396 = vld [vmem:[%s1 + $0x268] sm:$0xff]
      %v397 = vld [vmem:[%s1 + $0x270] sm:$0xff]
      %v398 = vld [vmem:[%s1 + $0x278] sm:$0xff]
      %v399 = vld [vmem:[%s1 + $0x280] sm:$0xff]
      %v400 = vld [vmem:[%s1 + $0x288] sm:$0xff]
      %v401 = vld [vmem:[%s1 + $0x290] sm:$0xff]
      %v402 = vld [vmem:[%s1 + $0x298] sm:$0xff]
      %v403 = vld [vmem:[%s1 + $0x2a0] sm:$0xff]
      %v404 = vld [vmem:[%s1 + $0x2a8] sm:$0xff]
      %v405 = vld [vmem:[%s1 + $0x2b0] sm:$0xff]
      %v406 = vld [vmem:[%s1 + $0x2b8] sm:$0xff]
      %v407 = vld [vmem:[%s1 + $0x2c0] sm:$0xff]
      %v408 = vld [vmem:[%s1 + $0x2c8] sm:$0xff]
      %v409 = vld [vmem:[%s1 + $0x2d0] sm:$0xff]
      %v410 = vld [vmem:[%s1 + $0x2d8] sm:$0xff]
      %v411 = vld [vmem:[%s1 + $0x2e0] sm:$0xff]
      %v412 = vld [vmem:[%s1 + $0x2e8] sm:$0xff]
      %v413 = vld [vmem:[%s1 + $0x2f0] sm:$0xff]
      %v414 = vld [vmem:[%s1 + $0x2f8] sm:$0xff]
      %v415 = vld [vmem:[%s1 + $0x300] sm:$0xff]
      %v416 = vld [vmem:[%s1 + $0x308] sm:$0xff]
      %v417 = vld [vmem:[%s1 + $0x310] sm:$0xff]
      %v418 = vld [vmem:[%s1 + $0x318] sm:$0xff]
      %v419 = vld [vmem:[%s1 + $0x320] sm:$0xff]
      %v420 = vld [vmem:[%s1 + $0x328] sm:$0xff]
      %v421 = vld [vmem:[%s1 + $0x330] sm:$0xff]
      %v422 = vld [vmem:[%s1 + $0x338] sm:$0xff]
      %v423 = vld [vmem:[%s1 + $0x340] sm:$0xff]
      %v424 = vld [vmem:[%s1 + $0x348] sm:$0xff]
      %v425 = vld [vmem:[%s1 + $0x350] sm:$0xff]
      %v426 = vld [vmem:[%s1 + $0x358] sm:$0xff]
      %v427 = vld [vmem:[%s1 + $0x360] sm:$0xff]
      %v428 = vld [vmem:[%s1 + $0x368] sm:$0xff]
      %v429 = vld [vmem:[%s1 + $0x370] sm:$0xff]
      %v430 = vld [vmem:[%s1 + $0x378] sm:$0xff]
      %v431 = vld [vmem:[%s1 + $0x380] sm:$0xff]
      %v432 = vld [vmem:[%s1 + $0x388] sm:$0xff]
      %v433 = vld [vmem:[%s1 + $0x390] sm:$0xff]
      %v434 = vld [vmem:[%s1 + $0x398] sm:$0xff]
      %v435 = vld [vmem:[%s1 + $0x3a0] sm:$0xff]
      %v436 = vld [vmem:[%s1 + $0x3a8] sm:$0xff]
      %v437 = vld [vmem:[%s1 + $0x3b0] sm:$0xff]
      %v438 = vld [vmem:[%s1 + $0x3b8] sm:$0xff]
      %v439 = vld [vmem:[%s1 + $0x3c0] sm:$0xff]
      %v440 = vld [vmem:[%s1 + $0x3c8] sm:$0xff]
      %v441 = vld [vmem:[%s1 + $0x3d0] sm:$0xff]
      %v442 = vld [vmem:[%s1 + $0x3d8] sm:$0xff]
      %v443 = vld [vmem:[%s1 + $0x3e0] sm:$0xff]
      %v444 = vld [vmem:[%s1 + $0x3e8] sm:$0xff]
      %v445 = vld [vmem:[%s1 + $0x3f0] sm:$0xff]
      %v446 = vld [vmem:[%s1 + $0x3f8] sm:$0xff]
      %v447 = vld [vmem:[%s1 + $0x400] sm:$0xff]
      %v448 = vld [vmem:[%s1 + $0x408] sm:$0xff]
      %v449 = vld [vmem:[%s1 + $0x410] sm:$0xff]
      %v450 = vld [vmem:[%s1 + $0x418] sm:$0xff]
      %v451 = vld [vmem:[%s1 + $0x420] sm:$0xff]
      %v452 = vld [vmem:[%s1 + $0x428] sm:$0xff]
      %v453 = vld [vmem:[%s1 + $0x430] sm:$0xff]
      %v454 = vld [vmem:[%s1 + $0x438] sm:$0xff]
      %v455 = vld [vmem:[%s1 + $0x440] sm:$0xff]
      %v456 = vld [vmem:[%s1 + $0x448] sm:$0xff]
      %v457 = vld [vmem:[%s1 + $0x450] sm:$0xff]
      %v458 = vld [vmem:[%s1 + $0x458] sm:$0xff]
      %v459 = vld [vmem:[%s1 + $0x460] sm:$0xff]
      %v460 = vld [vmem:[%s1 + $0x468] sm:$0xff]
      %v461 = vld [vmem:[%s1 + $0x470] sm:$0xff]
      %v462 = vld [vmem:[%s1 + $0x478] sm:$0xff]
      %v463 = vld [vmem:[%s1 + $0x480] sm:$0xff]
      %v464 = vld [vmem:[%s1 + $0x488] sm:$0xff]
      %v465 = vld [vmem:[%s1 + $0x490] sm:$0xff]
      %v466 = vld [vmem:[%s1 + $0x498] sm:$0xff]
      %v467 = vld [vmem:[%s1 + $0x4a0] sm:$0xff]
      %v468 = vld [vmem:[%s1 + $0x4a8] sm:$0xff]
      %v469 = vld [vmem:[%s1 + $0x4b0] sm:$0xff]
      %v470 = vld [vmem:[%s1 + $0x4b8] sm:$0xff]
      %v471 = vld [vmem:[%s1 + $0x4c0] sm:$0xff]
      %v472 = vld [vmem:[%s1 + $0x4c8] sm:$0xff]
      %v473 = vld [vmem:[%s1 + $0x4d0] sm:$0xff]
      %v474 = vld [vmem:[%s1 + $0x4d8] sm:$0xff]
      %v475 = vld [vmem:[%s1 + $0x4e0] sm:$0xff]
      %v476 = vld [vmem:[%s1 + $0x4e8] sm:$0xff]
      %v477 = vld [vmem:[%s1 + $0x4f0] sm:$0xff]
      %v478 = vld [vmem:[%s1 + $0x4f8] sm:$0xff]
      %v479 = vld [vmem:[%s1 + $0x500] sm:$0xff]
      %v480 = vld [vmem:[%s1 + $0x508] sm:$0xff]
      %v481 = vld [vmem:[%s1 + $0x510] sm:$0xff]
      %v482 = vld [vmem:[%s1 + $0x518] sm:$0xff]
      %v483 = vld [vmem:[%s1 + $0x520] sm:$0xff]
      %v484 = vld [vmem:[%s1 + $0x528] sm:$0xff]
      %v485 = vld [vmem:[%s1 + $0x530] sm:$0xff]
      %v486 = vld [vmem:[%s1 + $0x538] sm:$0xff]
      %v487 = vld [vmem:[%s1 + $0x540] sm:$0xff]
      %v488 = vld [vmem:[%s1 + $0x548] sm:$0xff]
      %v489 = vld [vmem:[%s1 + $0x550] sm:$0xff]
      %v490 = vld [vmem:[%s1 + $0x558] sm:$0xff]
      %v491 = vld [vmem:[%s1 + $0x560] sm:$0xff]
      %v492 = vld [vmem:[%s1 + $0x568] sm:$0xff]
      %v493 = vld [vmem:[%s1 + $0x570] sm:$0xff]
      %v494 = vld [vmem:[%s1 + $0x578] sm:$0xff]
      %v495 = vld [vmem:[%s1 + $0x580] sm:$0xff]
      %v496 = vld [vmem:[%s1 + $0x588] sm:$0xff]
      %v497 = vld [vmem:[%s1 + $0x590] sm:$0xff]
      %v498 = vld [vmem:[%s1 + $0x598] sm:$0xff]
      %v499 = vld [vmem:[%s1 + $0x5a0] sm:$0xff]
      %v500 = vld [vmem:[%s1 + $0x5a8] sm:$0xff]
      %v501 = vld [vmem:[%s1 + $0x5b0] sm:$0xff]
      %v502 = vld [vmem:[%s1 + $0x5b8] sm:$0xff]
      %v503 = vld [vmem:[%s1 + $0x5c0] sm:$0xff]
      %v504 = vld [vmem:[%s1 + $0x5c8] sm:$0xff]
      %v505 = vld [vmem:[%s1 + $0x5d0] sm:$0xff]
      %v506 = vld [vmem:[%s1 + $0x5d8] sm:$0xff]
      %v507 = vld [vmem:[%s1 + $0x5e0] sm:$0xff]
      %v508 = vld [vmem:[%s1 + $0x5e8] sm:$0xff]
      %v509 = vld [vmem:[%s1 + $0x5f0] sm:$0xff]
      %v510 = vld [vmem:[%s1 + $0x5f8] sm:$0xff]
      %v511 = vld [vmem:[%s1 + $0x600] sm:$0xff]
      %v512 = vld [vmem:[%s1 + $0x608] sm:$0xff]
      %v513 = vld [vmem:[%s1 + $0x610] sm:$0xff]
      %v514 = vld [vmem:[%s1 + $0x618] sm:$0xff]
      %v515 = vld [vmem:[%s1 + $0x620] sm:$0xff]
      %v516 = vld [vmem:[%s1 + $0x628] sm:$0xff]
      %v517 = vld [vmem:[%s1 + $0x630] sm:$0xff]
      %v518 = vld [vmem:[%s1 + $0x638] sm:$0xff]
      %v519 = vld [vmem:[%s1 + $0x640] sm:$0xff]
      %v520 = vld [vmem:[%s1 + $0x648] sm:$0xff]
      %v521 = vld [vmem:[%s1 + $0x650] sm:$0xff]
      %v522 = vld [vmem:[%s1 + $0x658] sm:$0xff]
      %v523 = vld [vmem:[%s1 + $0x660] sm:$0xff]
      %v524 = vld [vmem:[%s1 + $0x668] sm:$0xff]
      %v525 = vld [vmem:[%s1 + $0x670] sm:$0xff]
      %v526 = vld [vmem:[%s1 + $0x678] sm:$0xff]
      %v527 = vld [vmem:[%s1 + $0x680] sm:$0xff]
      %v528 = vld [vmem:[%s1 + $0x688] sm:$0xff]
      %v529 = vld [vmem:[%s1 + $0x690] sm:$0xff]
      %v530 = vld [vmem:[%s1 + $0x698] sm:$0xff]
      %v531 = vld [vmem:[%s1 + $0x6a0] sm:$0xff]
      %v532 = vld [vmem:[%s1 + $0x6a8] sm:$0xff]
      %v533 = vld [vmem:[%s1 + $0x6b0] sm:$0xff]
      %v534 = vld [vmem:[%s1 + $0x6b8] sm:$0xff]
      %v535 = vld [vmem:[%s1 + $0x6c0] sm:$0xff]
      %v536 = vld [vmem:[%s1 + $0x6c8] sm:$0xff]
      %v537 = vld [vmem:[%s1 + $0x6d0] sm:$0xff]
      %v538 = vld [vmem:[%s1 + $0x6d8] sm:$0xff]
      %v539 = vld [vmem:[%s1 + $0x6e0] sm:$0xff]
      %v540 = vld [vmem:[%s1 + $0x6e8] sm:$0xff]
      %v541 = vld [vmem:[%s1 + $0x6f0] sm:$0xff]
      %v542 = vld [vmem:[%s1 + $0x6f8] sm:$0xff]
      %v543 = vld [vmem:[%s1 + $0x700] sm:$0xff]
      %v544 = vld [vmem:[%s1 + $0x708] sm:$0xff]
      %v545 = vld [vmem:[%s1 + $0x710] sm:$0xff]
      %v546 = vld [vmem:[%s1 + $0x718] sm:$0xff]
      %v547 = vld [vmem:[%s1 + $0x720] sm:$0xff]
      %v548 = vld [vmem:[%s1 + $0x728] sm:$0xff]
      %v549 = vld [vmem:[%s1 + $0x730] sm:$0xff]
      %v550 = vld [vmem:[%s1 + $0x738] sm:$0xff]
      %v551 = vld [vmem:[%s1 + $0x740] sm:$0xff]
      %v552 = vld [vmem:[%s1 + $0x748] sm:$0xff]
      %v553 = vld [vmem:[%s1 + $0x750] sm:$0xff]
      %v554 = vld [vmem:[%s1 + $0x758] sm:$0xff]
      %v555 = vld [vmem:[%s1 + $0x760] sm:$0xff]
      %v556 = vld [vmem:[%s1 + $0x768] sm:$0xff]
      %v557 = vld [vmem:[%s1 + $0x770] sm:$0xff]
      %v558 = vld [vmem:[%s1 + $0x778] sm:$0xff]
      %v559 = vld [vmem:[%s1 + $0x780] sm:$0xff]
      %v560 = vld [vmem:[%s1 + $0x788] sm:$0xff]
      %v561 = vld [vmem:[%s1 + $0x790] sm:$0xff]
      %v562 = vld [vmem:[%s1 + $0x798] sm:$0xff]
      %v563 = vld [vmem:[%s1 + $0x7a0] sm:$0xff]
      %v564 = vld [vmem:[%s1 + $0x7a8] sm:$0xff]
      %v565 = vld [vmem:[%s1 + $0x7b0] sm:$0xff]
      %v566 = vld [vmem:[%s1 + $0x7b8] sm:$0xff]
      %v567 = vld [vmem:[%s1 + $0x7c0] sm:$0xff]
      %v568 = vld [vmem:[%s1 + $0x7c8] sm:$0xff]
      %v569 = vld [vmem:[%s1 + $0x7d0] sm:$0xff]
      %v570 = vld [vmem:[%s1 + $0x7d8] sm:$0xff]
      %v571 = vld [vmem:[%s1 + $0x7e0] sm:$0xff]
      %v572 = vld [vmem:[%s1 + $0x7e8] sm:$0xff]
      %v573 = vld [vmem:[%s1 + $0x7f0] sm:$0xff]
      %v574 = vld [vmem:[%s1 + $0x7f8] sm:$0xff]
      %v575 = vld [vmem:[%s1 + $0x800] sm:$0xff]
      %v576 = vld [vmem:[%s1 + $0x808] sm:$0xff]
      %v577 = vld [vmem:[%s1 + $0x810] sm:$0xff]
      %v578 = vld [vmem:[%s1 + $0x818] sm:$0xff]
      %v579 = vld [vmem:[%s1 + $0x820] sm:$0xff]
      %v580 = vld [vmem:[%s1 + $0x828] sm:$0xff]
      %v581 = vld [vmem:[%s1 + $0x830] sm:$0xff]
      %v582 = vld [vmem:[%s1 + $0x838] sm:$0xff]
      %v583 = vld [vmem:[%s1 + $0x840] sm:$0xff]
      %v584 = vld [vmem:[%s1 + $0x848] sm:$0xff]
      %v585 = vld [vmem:[%s1 + $0x850] sm:$0xff]
      %v586 = vld [vmem:[%s1 + $0x858] sm:$0xff]
      %v587 = vld [vmem:[%s1 + $0x860] sm:$0xff]
      %v588 = vld [vmem:[%s1 + $0x868] sm:$0xff]
      %v589 = vld [vmem:[%s1 + $0x870] sm:$0xff]
      %v590 = vld [vmem:[%s1 + $0x878] sm:$0xff]
      %v591 = vld [vmem:[%s1 + $0x880] sm:$0xff]
      %v592 = vld [vmem:[%s1 + $0x888] sm:$0xff]
      %v593 = vld [vmem:[%s1 + $0x890] sm:$0xff]
      %v594 = vld [vmem:[%s1 + $0x898] sm:$0xff]
      %v595 = vld [vmem:[%s1 + $0x8a0] sm:$0xff]
      %v596 = vld [vmem:[%s1 + $0x8a8] sm:$0xff]
      %v597 = vld [vmem:[%s1 + $0x8b0] sm:$0xff]
      %v598 = vld [vmem:[%s1 + $0x8b8] sm:$0xff]
      %v599 = vld [vmem:[%s1 + $0x8c0] sm:$0xff]
      %v600 = vld [vmem:[%s1 + $0x8c8] sm:$0xff]
      %v601 = vld [vmem:[%s1 + $0x8d0] sm:$0xff]
      %v602 = vld [vmem:[%s1 + $0x8d8] sm:$0xff]
      %v603 = vld [vmem:[%s1 + $0x8e0] sm:$0xff]
      %v604 = vld [vmem:[%s1 + $0x8e8] sm:$0xff]
      %v605 = vld [vmem:[%s1 + $0x8f0] sm:$0xff]
      %v606 = vld [vmem:[%s1 + $0x8f8] sm:$0xff]
      %v607 = vld [vmem:[%s1 + $0x900] sm:$0xff]
      %v608 = vld [vmem:[%s1 + $0x908] sm:$0xff]
      %v609 = vld [vmem:[%s1 + $0x910] sm:$0xff]
      %v610 = vld [vmem:[%s1 + $0x918] sm:$0xff]
      %v611 = vld [vmem:[%s1 + $0x920] sm:$0xff]
      %v612 = vld [vmem:[%s1 + $0x928] sm:$0xff]
      %v613 = vld [vmem:[%s1 + $0x930] sm:$0xff]
      %v614 = vld [vmem:[%s1 + $0x938] sm:$0xff]
      %v615 = vld [vmem:[%s1 + $0x940] sm:$0xff]
      %v616 = vld [vmem:[%s1 + $0x948] sm:$0xff]
      %v617 = vld [vmem:[%s1 + $0x950] sm:$0xff]
      %v618 = vld [vmem:[%s1 + $0x958] sm:$0xff]
      %v619 = vld [vmem:[%s1 + $0x960] sm:$0xff]
      %v620 = vld [vmem:[%s1 + $0x968] sm:$0xff]
      %v621 = vld [vmem:[%s1 + $0x970] sm:$0xff]
      %v622 = vld [vmem:[%s1 + $0x978] sm:$0xff]
      %v623 = vld [vmem:[%s1 + $0x980] sm:$0xff]
      %v624 = vld [vmem:[%s1 + $0x988] sm:$0xff]
      %v625 = vld [vmem:[%s1 + $0x990] sm:$0xff]
      %v626 = vld [vmem:[%s1 + $0x998] sm:$0xff]
      %v627 = vld [vmem:[%s1 + $0x9a0] sm:$0xff]
      %v628 = vld [vmem:[%s1 + $0x9a8] sm:$0xff]
      %v629 = vld [vmem:[%s1 + $0x9b0] sm:$0xff]
      %v630 = vld [vmem:[%s1 + $0x9b8] sm:$0xff]
      %v631 = vld [vmem:[%s1 + $0x9c0] sm:$0xff]
      %v632 = vld [vmem:[%s1 + $0x9c8] sm:$0xff]
      %v633 = vld [vmem:[%s1 + $0x9d0] sm:$0xff]
      %v634 = vld [vmem:[%s1 + $0x9d8] sm:$0xff]
      %v635 = vld [vmem:[%s1 + $0x9e0] sm:$0xff]
      %v636 = vld [vmem:[%s1 + $0x9e8] sm:$0xff]
      %v637 = vld [vmem:[%s1 + $0x9f0] sm:$0xff]
      %v638 = vld [vmem:[%s1 + $0x9f8] sm:$0xff]
      %v639 = vld [vmem:[%s1 + $0xa00] sm:$0xff]
      %v640 = vld [vmem:[%s1 + $0xa08] sm:$0xff]
      %v641 = vld [vmem:[%s1 + $0xa10] sm:$0xff]
      %v642 = vld [vmem:[%s1 + $0xa18] sm:$0xff]
      %v643 = vld [vmem:[%s1 + $0xa20] sm:$0xff]
      %v644 = vld [vmem:[%s1 + $0xa28] sm:$0xff]
      %v645 = vld [vmem:[%s1 + $0xa30] sm:$0xff]
      %v646 = vld [vmem:[%s1 + $0xa38] sm:$0xff]
      %v647 = vld [vmem:[%s1 + $0xa40] sm:$0xff]
      %v648 = vld [vmem:[%s1 + $0xa48] sm:$0xff]
      %v649 = vld [vmem:[%s1 + $0xa50] sm:$0xff]
      %v650 = vld [vmem:[%s1 + $0xa58] sm:$0xff]
      %v651 = vld [vmem:[%s1 + $0xa60] sm:$0xff]
      %v652 = vld [vmem:[%s1 + $0xa68] sm:$0xff]
      %v653 = vld [vmem:[%s1 + $0xa70] sm:$0xff]
      %v654 = vld [vmem:[%s1 + $0xa78] sm:$0xff]
      %v655 = vld [vmem:[%s1 + $0xa80] sm:$0xff]
      %v656 = vld [vmem:[%s1 + $0xa88] sm:$0xff]
      %v657 = vld [vmem:[%s1 + $0xa90] sm:$0xff]
      %v658 = vld [vmem:[%s1 + $0xa98] sm:$0xff]
      %v659 = vld [vmem:[%s1 + $0xaa0] sm:$0xff]
      %v660 = vld [vmem:[%s1 + $0xaa8] sm:$0xff]
      %v661 = vld [vmem:[%s1 + $0xab0] sm:$0xff]
      %v662 = vld [vmem:[%s1 + $0xab8] sm:$0xff]
      %v663 = vld [vmem:[%s1 + $0xac0] sm:$0xff]
      %v664 = vld [vmem:[%s1 + $0xac8] sm:$0xff]
      %v665 = vld [vmem:[%s1 + $0xad0] sm:$0xff]
      %v666 = vld [vmem:[%s1 + $0xad8] sm:$0xff]
      %v667 = vld [vmem:[%s1 + $0xae0] sm:$0xff]
      %v668 = vld [vmem:[%s1 + $0xae8] sm:$0xff]
      %v669 = vld [vmem:[%s1 + $0xaf0] sm:$0xff]
      %v670 = vld [vmem:[%s1 + $0xaf8] sm:$0xff]
      %v671 = vld [vmem:[%s1 + $0xb00] sm:$0xff]
      %v672 = vld [vmem:[%s1 + $0xb08] sm:$0xff]
      %v673 = vld [vmem:[%s1 + $0xb10] sm:$0xff]
      %v674 = vld [vmem:[%s1 + $0xb18] sm:$0xff]
      %v675 = vld [vmem:[%s1 + $0xb20] sm:$0xff]
      %v676 = vld [vmem:[%s1 + $0xb28] sm:$0xff]
      %v677 = vld [vmem:[%s1 + $0xb30] sm:$0xff]
      %v678 = vld [vmem:[%s1 + $0xb38] sm:$0xff]
      %v679 = vld [vmem:[%s1 + $0xb40] sm:$0xff]
      %v680 = vld [vmem:[%s1 + $0xb48] sm:$0xff]
      %v681 = vld [vmem:[%s1 + $0xb50] sm:$0xff]
      %v682 = vld [vmem:[%s1 + $0xb58] sm:$0xff]
      %v683 = vld [vmem:[%s1 + $0xb60] sm:$0xff]
      %v684 = vld [vmem:[%s1 + $0xb68] sm:$0xff]
      %v685 = vld [vmem:[%s1 + $0xb70] sm:$0xff]
      %v686 = vld [vmem:[%s1 + $0xb78] sm:$0xff]
      %v687 = vld [vmem:[%s1 + $0xb80] sm:$0xff]
      %v688 = vld [vmem:[%s1 + $0xb88] sm:$0xff]
      %v689 = vld [vmem:[%s1 + $0xb90] sm:$0xff]
      %v690 = vld [vmem:[%s1 + $0xb98] sm:$0xff]
      %v691 = vld [vmem:[%s1 + $0xba0] sm:$0xff]
      %v692 = vld [vmem:[%s1 + $0xba8] sm:$0xff]
      %v693 = vld [vmem:[%s1 + $0xbb0] sm:$0xff]
      %v694 = vld [vmem:[%s1 + $0xbb8] sm:$0xff]
      %v695 = vld [vmem:[%s1 + $0xbc0] sm:$0xff]
      %v696 = vld [vmem:[%s1 + $0xbc8] sm:$0xff]
      %v697 = vld [vmem:[%s1 + $0xbd0] sm:$0xff]
      %v698 = vld [vmem:[%s1 + $0xbd8] sm:$0xff]
      %v699 = vld [vmem:[%s1 + $0xbe0] sm:$0xff]
      %v700 = vld [vmem:[%s1 + $0xbe8] sm:$0xff]
      %v701 = vld [vmem:[%s1 + $0xbf0] sm:$0xff]
      %v702 = vld [vmem:[%s1 + $0xbf8] sm:$0xff]
      %v703 = vld [vmem:[%s1 + $0xc00] sm:$0xff]
      %v704 = vld [vmem:[%s1 + $0xc08] sm:$0xff]
      %v705 = vld [vmem:[%s1 + $0xc10] sm:$0xff]
      %v706 = vld [vmem:[%s1 + $0xc18] sm:$0xff]
      %v707 = vld [vmem:[%s1 + $0xc20] sm:$0xff]
      %v708 = vld [vmem:[%s1 + $0xc28] sm:$0xff]
      %v709 = vld [vmem:[%s1 + $0xc30] sm:$0xff]
      %v710 = vld [vmem:[%s1 + $0xc38] sm:$0xff]
      %v711 = vld [vmem:[%s1 + $0xc40] sm:$0xff]
      %v712 = vld [vmem:[%s1 + $0xc48] sm:$0xff]
      %v713 = vld [vmem:[%s1 + $0xc50] sm:$0xff]
      %v714 = vld [vmem:[%s1 + $0xc58] sm:$0xff]
      %v715 = vld [vmem:[%s1 + $0xc60] sm:$0xff]
      %v716 = vld [vmem:[%s1 + $0xc68] sm:$0xff]
      %v717 = vld [vmem:[%s1 + $0xc70] sm:$0xff]
      %v718 = vld [vmem:[%s1 + $0xc78] sm:$0xff]
      %v719 = vld [vmem:[%s1 + $0xc80] sm:$0xff]
      %v720 = vld [vmem:[%s1 + $0xc88] sm:$0xff]
      %v721 = vld [vmem:[%s1 + $0xc90] sm:$0xff]
      %v722 = vld [vmem:[%s1 + $0xc98] sm:$0xff]
      %v723 = vld [vmem:[%s1 + $0xca0] sm:$0xff]
      %v724 = vld [vmem:[%s1 + $0xca8] sm:$0xff]
      %v725 = vld [vmem:[%s1 + $0xcb0] sm:$0xff]
      %v726 = vld [vmem:[%s1 + $0xcb8] sm:$0xff]
      %v727 = vld [vmem:[%s1 + $0xcc0] sm:$0xff]
      %v728 = vld [vmem:[%s1 + $0xcc8] sm:$0xff]
      %v729 = vld [vmem:[%s1 + $0xcd0] sm:$0xff]
      %v730 = vld [vmem:[%s1 + $0xcd8] sm:$0xff]
      %v731 = vld [vmem:[%s1 + $0xce0] sm:$0xff]
      %v732 = vld [vmem:[%s1 + $0xce8] sm:$0xff]
      %v733 = vld [vmem:[%s1 + $0xcf0] sm:$0xff]
      %v734 = vld [vmem:[%s1 + $0xcf8] sm:$0xff]
      %v735 = vld [vmem:[%s1 + $0xd00] sm:$0xff]
      %v736 = vld [vmem:[%s1 + $0xd08] sm:$0xff]
      %v737 = vld [vmem:[%s1 + $0xd10] sm:$0xff]
      %v738 = vld [vmem:[%s1 + $0xd18] sm:$0xff]
      %v739 = vld [vmem:[%s1 + $0xd20] sm:$0xff]
      %v740 = vld [vmem:[%s1 + $0xd28] sm:$0xff]
      %v741 = vld [vmem:[%s1 + $0xd30] sm:$0xff]
      %v742 = vld [vmem:[%s1 + $0xd38] sm:$0xff]
      %v743 = vld [vmem:[%s1 + $0xd40] sm:$0xff]
      %v744 = vld [vmem:[%s1 + $0xd48] sm:$0xff]
      %v745 = vld [vmem:[%s1 + $0xd50] sm:$0xff]
      %v746 = vld [vmem:[%s1 + $0xd58] sm:$0xff]
      %v747 = vld [vmem:[%s1 + $0xd60] sm:$0xff]
      %v748 = vld [vmem:[%s1 + $0xd68] sm:$0xff]
      %v749 = vld [vmem:[%s1 + $0xd70] sm:$0xff]
      %v750 = vld [vmem:[%s1 + $0xd78] sm:$0xff]
      %v751 = vld [vmem:[%s1 + $0xd80] sm:$0xff]
      %v752 = vld [vmem:[%s1 + $0xd88] sm:$0xff]
      %v753 = vld [vmem:[%s1 + $0xd90] sm:$0xff]
      %v754 = vld [vmem:[%s1 + $0xd98] sm:$0xff]
      %v755 = vld [vmem:[%s1 + $0xda0] sm:$0xff]
      %v756 = vld [vmem:[%s1 + $0xda8] sm:$0xff]
      %v757 = vld [vmem:[%s1 + $0xdb0] sm:$0xff]
      %v758 = vld [vmem:[%s1 + $0xdb8] sm:$0xff]
      %v759 = vld [vmem:[%s1 + $0xdc0] sm:$0xff]
      %v760 = vld [vmem:[%s1 + $0xdc8] sm:$0xff]
      %v761 = vld [vmem:[%s1 + $0xdd0] sm:$0xff]
      %v762 = vld [vmem:[%s1 + $0xdd8] sm:$0xff]
      %v763 = vld [vmem:[%s1 + $0xde0] sm:$0xff]
      %v764 = vld [vmem:[%s1 + $0xde8] sm:$0xff]
      %v765 = vld [vmem:[%s1 + $0xdf0] sm:$0xff]
      %v766 = vld [vmem:[%s1 + $0xdf8] sm:$0xff]
      %v767 = vld [vmem:[%s1 + $0xe00] sm:$0xff]
      %v768 = vld [vmem:[%s1 + $0xe08] sm:$0xff]
      %v769 = vld [vmem:[%s1 + $0xe10] sm:$0xff]
      %v770 = vld [vmem:[%s1 + $0xe18] sm:$0xff]
      %v771 = vld [vmem:[%s1 + $0xe20] sm:$0xff]
      %v772 = vld [vmem:[%s1 + $0xe28] sm:$0xff]
      %v773 = vld [vmem:[%s1 + $0xe30] sm:$0xff]
      %v774 = vld [vmem:[%s1 + $0xe38] sm:$0xff]
      %v775 = vld [vmem:[%s1 + $0xe40] sm:$0xff]
      %v776 = vld [vmem:[%s1 + $0xe48] sm:$0xff]
      %v777 = vld [vmem:[%s1 + $0xe50] sm:$0xff]
      %v778 = vld [vmem:[%s1 + $0xe58] sm:$0xff]
      %v779 = vld [vmem:[%s1 + $0xe60] sm:$0xff]
      %v780 = vld [vmem:[%s1 + $0xe68] sm:$0xff]
      %v781 = vld [vmem:[%s1 + $0xe70] sm:$0xff]
      %v782 = vld [vmem:[%s1 + $0xe78] sm:$0xff]
      %v783 = vld [vmem:[%s1 + $0xe80] sm:$0xff]
      %v784 = vld [vmem:[%s1 + $0xe88] sm:$0xff]
      %v785 = vld [vmem:[%s1 + $0xe90] sm:$0xff]
      %v786 = vld [vmem:[%s1 + $0xe98] sm:$0xff]
      %v787 = vld [vmem:[%s1 + $0xea0] sm:$0xff]
      %v788 = vld [vmem:[%s1 + $0xea8] sm:$0xff]
      %v789 = vld [vmem:[%s1 + $0xeb0] sm:$0xff]
      %v790 = vld [vmem:[%s1 + $0xeb8] sm:$0xff]
      %v791 = vld [vmem:[%s1 + $0xec0] sm:$0xff]
      %v792 = vld [vmem:[%s1 + $0xec8] sm:$0xff]
      %v793 = vld [vmem:[%s1 + $0xed0] sm:$0xff]
      %v794 = vld [vmem:[%s1 + $0xed8] sm:$0xff]
      %v795 = vld [vmem:[%s1 + $0xee0] sm:$0xff]
      %v796 = vld [vmem:[%s1 + $0xee8] sm:$0xff]
      %v797 = vld [vmem:[%s1 + $0xef0] sm:$0xff]
      %v798 = vld [vmem:[%s1 + $0xef8] sm:$0xff]
      %v799 = vld [vmem:[%s1 + $0xf00] sm:$0xff]
      %v800 = vld [vmem:[%s1 + $0xf08] sm:$0xff]
      %v801 = vld [vmem:[%s1 + $0xf10] sm:$0xff]
      %v802 = vld [vmem:[%s1 + $0xf18] sm:$0xff]
      %v803 = vld [vmem:[%s1 + $0xf20] sm:$0xff]
      %v804 = vld [vmem:[%s1 + $0xf28] sm:$0xff]
      %v805 = vld [vmem:[%s1 + $0xf30] sm:$0xff]
      %v806 = vld [vmem:[%s1 + $0xf38] sm:$0xff]
      %v807 = vld [vmem:[%s1 + $0xf40] sm:$0xff]
      %v808 = vld [vmem:[%s1 + $0xf48] sm:$0xff]
      %v809 = vld [vmem:[%s1 + $0xf50] sm:$0xff]
      %v810 = vld [vmem:[%s1 + $0xf58] sm:$0xff]
      %v811 = vld [vmem:[%s1 + $0xf60] sm:$0xff]
      %v812 = vld [vmem:[%s1 + $0xf68] sm:$0xff]
      %v813 = vld [vmem:[%s1 + $0xf70] sm:$0xff]
      %v814 = vld [vmem:[%s1 + $0xf78] sm:$0xff]
      %v815 = vld [vmem:[%s1 + $0xf80] sm:$0xff]
      %v816 = vld [vmem:[%s1 + $0xf88] sm:$0xff]
      %v817 = vld [vmem:[%s1 + $0xf90] sm:$0xff]
      %v818 = vld [vmem:[%s1 + $0xf98] sm:$0xff]
      %v819 = vld [vmem:[%s1 + $0xfa0] sm:$0xff]
      %v820 = vld [vmem:[%s1 + $0xfa8] sm:$0xff]
      %v821 = vld [vmem:[%s1 + $0xfb0] sm:$0xff]
      %v822 = vld [vmem:[%s1 + $0xfb8] sm:$0xff]
      %v823 = vld [vmem:[%s1 + $0xfc0] sm:$0xff]
      %v824 = vld [vmem:[%s1 + $0xfc8] sm:$0xff]
      %v825 = vld [vmem:[%s1 + $0xfd0] sm:$0xff]
      %v826 = vld [vmem:[%s1 + $0xfd8] sm:$0xff]
      %v827 = vld [vmem:[%s1 + $0xfe0] sm:$0xff]
      %v828 = vld [vmem:[%s1 + $0xfe8] sm:$0xff]
      %v829 = vld [vmem:[%s1 + $0xff0] sm:$0xff]
      %v830 = vld [vmem:[%s1 + $0xff8] sm:$0xff]
      %v831 = vld [vmem:[%s1 + $0x1000] sm:$0xff]
      %v832 = vld [vmem:[%s1 + $0x1008] sm:$0xff]
      %v833 = vld [vmem:[%s1 + $0x1010] sm:$0xff]
      %v834 = vld [vmem:[%s1 + $0x1018] sm:$0xff]
      %v835 = vld [vmem:[%s1 + $0x1020] sm:$0xff]
      %v836 = vld [vmem:[%s1 + $0x1028] sm:$0xff]
      %v837 = vld [vmem:[%s1 + $0x1030] sm:$0xff]
      %v838 = vld [vmem:[%s1 + $0x1038] sm:$0xff]
      %v839 = vld [vmem:[%s1 + $0x1040] sm:$0xff]
      %v840 = vld [vmem:[%s1 + $0x1048] sm:$0xff]
      %v841 = vld [vmem:[%s1 + $0x1050] sm:$0xff]
      %v842 = vld [vmem:[%s1 + $0x1058] sm:$0xff]
      %v843 = vld [vmem:[%s1 + $0x1060] sm:$0xff]
      %v844 = vld [vmem:[%s1 + $0x1068] sm:$0xff]
      %v845 = vld [vmem:[%s1 + $0x1070] sm:$0xff]
      %v846 = vld [vmem:[%s1 + $0x1078] sm:$0xff]
      %v847 = vld [vmem:[%s1 + $0x1080] sm:$0xff]
      %v848 = vld [vmem:[%s1 + $0x1088] sm:$0xff]
      %v849 = vld [vmem:[%s1 + $0x1090] sm:$0xff]
      %v850 = vld [vmem:[%s1 + $0x1098] sm:$0xff]
      %v851 = vld [vmem:[%s1 + $0x10a0] sm:$0xff]
      %v852 = vld [vmem:[%s1 + $0x10a8] sm:$0xff]
      %v853 = vld [vmem:[%s1 + $0x10b0] sm:$0xff]
      %v854 = vld [vmem:[%s1 + $0x10b8] sm:$0xff]
      %v855 = vld [vmem:[%s1 + $0x10c0] sm:$0xff]
      %v856 = vld [vmem:[%s1 + $0x10c8] sm:$0xff]
      %v857 = vld [vmem:[%s1 + $0x10d0] sm:$0xff]
      %v858 = vld [vmem:[%s1 + $0x10d8] sm:$0xff]
      %v859 = vld [vmem:[%s1 + $0x10e0] sm:$0xff]
      %v860 = vld [vmem:[%s1 + $0x10e8] sm:$0xff]
      %v861 = vld [vmem:[%s1 + $0x10f0] sm:$0xff]
      %v862 = vld [vmem:[%s1 + $0x10f8] sm:$0xff]
      %v863 = vld [vmem:[%s1 + $0x1100] sm:$0xff]
      %v864 = vld [vmem:[%s1 + $0x1108] sm:$0xff]
      %v865 = vld [vmem:[%s1 + $0x1110] sm:$0xff]
      %v866 = vld [vmem:[%s1 + $0x1118] sm:$0xff]
      %v867 = vld [vmem:[%s1 + $0x1120] sm:$0xff]
      %v868 = vld [vmem:[%s1 + $0x1128] sm:$0xff]
      %v869 = vld [vmem:[%s1 + $0x1130] sm:$0xff]
      %v870 = vld [vmem:[%s1 + $0x1138] sm:$0xff]
      %v871 = vld [vmem:[%s1 + $0x1140] sm:$0xff]
      %v872 = vld [vmem:[%s1 + $0x1148] sm:$0xff]
      %v873 = vld [vmem:[%s1 + $0x1150] sm:$0xff]
      %v874 = vld [vmem:[%s1 + $0x1158] sm:$0xff]
      %v875 = vld [vmem:[%s1 + $0x1160] sm:$0xff]
      %v876 = vld [vmem:[%s1 + $0x1168] sm:$0xff]
      %v877 = vld [vmem:[%s1 + $0x1170] sm:$0xff]
      %v878 = vld [vmem:[%s1 + $0x1178] sm:$0xff]
      %v879 = vld [vmem:[%s1 + $0x1180] sm:$0xff]
      %v880 = vld [vmem:[%s1 + $0x1188] sm:$0xff]
      %v881 = vld [vmem:[%s1 + $0x1190] sm:$0xff]
      %v882 = vld [vmem:[%s1 + $0x1198] sm:$0xff]
      %v883 = vld [vmem:[%s1 + $0x11a0] sm:$0xff]
      %v884 = vld [vmem:[%s1 + $0x11a8] sm:$0xff]
      %v885 = vld [vmem:[%s1 + $0x11b0] sm:$0xff]
      %v886 = vld [vmem:[%s1 + $0x11b8] sm:$0xff]
      %v887 = vld [vmem:[%s1 + $0x11c0] sm:$0xff]
      %v888 = vld [vmem:[%s1 + $0x11c8] sm:$0xff]
      %v889 = vld [vmem:[%s1 + $0x11d0] sm:$0xff]
      %v890 = vld [vmem:[%s1 + $0x11d8] sm:$0xff]
      %v891 = vld [vmem:[%s1 + $0x11e0] sm:$0xff]
      %v892 = vld [vmem:[%s1 + $0x11e8] sm:$0xff]
      %v893 = vld [vmem:[%s1 + $0x11f0] sm:$0xff]
      %v894 = vld [vmem:[%s1 + $0x11f8] sm:$0xff]
      %v895 = vld [vmem:[%s1 + $0x1200] sm:$0xff]
      %v896 = vld [vmem:[%s1 + $0x1208] sm:$0xff]
      %v897 = vld [vmem:[%s1 + $0x1210] sm:$0xff]
      %v898 = vld [vmem:[%s1 + $0x1218] sm:$0xff]
      %v899 = vld [vmem:[%s1 + $0x1220] sm:$0xff]
      %v900 = vld [vmem:[%s1 + $0x1228] sm:$0xff]
      %v901 = vld [vmem:[%s1 + $0x1230] sm:$0xff]
      %v902 = vld [vmem:[%s1 + $0x1238] sm:$0xff]
      %v903 = vld [vmem:[%s1 + $0x1240] sm:$0xff]
      %v904 = vld [vmem:[%s1 + $0x1248] sm:$0xff]
      %v905 = vld [vmem:[%s1 + $0x1250] sm:$0xff]
      %v906 = vld [vmem:[%s1 + $0x1258] sm:$0xff]
      %v907 = vld [vmem:[%s1 + $0x1260] sm:$0xff]
      %v908 = vld [vmem:[%s1 + $0x1268] sm:$0xff]
      %v909 = vld [vmem:[%s1 + $0x1270] sm:$0xff]
      %v910 = vld [vmem:[%s1 + $0x1278] sm:$0xff]
      %v911 = vld [vmem:[%s1 + $0x1280] sm:$0xff]
      %v912 = vld [vmem:[%s1 + $0x1288] sm:$0xff]
      %v913 = vld [vmem:[%s1 + $0x1290] sm:$0xff]
      %v914 = vld [vmem:[%s1 + $0x1298] sm:$0xff]
      %v915 = vld [vmem:[%s1 + $0x12a0] sm:$0xff]
      %v916 = vld [vmem:[%s1 + $0x12a8] sm:$0xff]
      %v917 = vld [vmem:[%s1 + $0x12b0] sm:$0xff]
      %v918 = vld [vmem:[%s1 + $0x12b8] sm:$0xff]
      %v919 = vld [vmem:[%s1 + $0x12c0] sm:$0xff]
      %v920 = vld [vmem:[%s1 + $0x12c8] sm:$0xff]
      %v921 = vld [vmem:[%s1 + $0x12d0] sm:$0xff]
      %v922 = vld [vmem:[%s1 + $0x12d8] sm:$0xff]
      %v923 = vld [vmem:[%s1 + $0x12e0] sm:$0xff]
      %v924 = vld [vmem:[%s1 + $0x12e8] sm:$0xff]
      %v925 = vld [vmem:[%s1 + $0x12f0] sm:$0xff]
      %v926 = vld [vmem:[%s1 + $0x12f8] sm:$0xff]
      %v927 = vld [vmem:[%s1 + $0x1300] sm:$0xff]
      %v928 = vld [vmem:[%s1 + $0x1308] sm:$0xff]
      %v929 = vld [vmem:[%s1 + $0x1310] sm:$0xff]
      %v930 = vld [vmem:[%s1 + $0x1318] sm:$0xff]
      %v931 = vld [vmem:[%s1 + $0x1320] sm:$0xff]
      %v932 = vld [vmem:[%s1 + $0x1328] sm:$0xff]
      %v933 = vld [vmem:[%s1 + $0x1330] sm:$0xff]
      %v934 = vld [vmem:[%s1 + $0x1338] sm:$0xff]
      %v935 = vld [vmem:[%s1 + $0x1340] sm:$0xff]
      %v936 = vld [vmem:[%s1 + $0x1348] sm:$0xff]
      %v937 = vld [vmem:[%s1 + $0x1350] sm:$0xff]
      %v938 = vld [vmem:[%s1 + $0x1358] sm:$0xff]
      %v939 = vld [vmem:[%s1 + $0x1360] sm:$0xff]
      %v940 = vld [vmem:[%s1 + $0x1368] sm:$0xff]
      %v941 = vld [vmem:[%s1 + $0x1370] sm:$0xff]
      %v942 = vld [vmem:[%s1 + $0x1378] sm:$0xff]
      %v943 = vld [vmem:[%s1 + $0x1380] sm:$0xff]
      %v944 = vld [vmem:[%s1 + $0x1388] sm:$0xff]
      %v945 = vld [vmem:[%s1 + $0x1390] sm:$0xff]
      %v946 = vld [vmem:[%s1 + $0x1398] sm:$0xff]
      %v947 = vld [vmem:[%s1 + $0x13a0] sm:$0xff]
      %v948 = vld [vmem:[%s1 + $0x13a8] sm:$0xff]
      %v949 = vld [vmem:[%s1 + $0x13b0] sm:$0xff]
      %v950 = vld [vmem:[%s1 + $0x13b8] sm:$0xff]
      %v951 = vld [vmem:[%s1 + $0x13c0] sm:$0xff]
      %v952 = vld [vmem:[%s1 + $0x13c8] sm:$0xff]
      %v953 = vld [vmem:[%s1 + $0x13d0] sm:$0xff]
      %v954 = vld [vmem:[%s1 + $0x13d8] sm:$0xff]
      %v955 = vld [vmem:[%s1 + $0x13e0] sm:$0xff]
      %v956 = vld [vmem:[%s1 + $0x13e8] sm:$0xff]
      %v957 = vld [vmem:[%s1 + $0x13f0] sm:$0xff]
      %v958 = vld [vmem:[%s1 + $0x13f8] sm:$0xff]
      %v959 = vld [vmem:[%s2] sm:$0x3]
      %v961 = vperm.slane %v959, 0
      %v962 = vperm.slane %v959, 1
      %v1105 = vunpack.c.l.b16 %v179
      %v1106 = vunpack.c.h.b16 %v179
      %v1107 = vunpack.c.l.b16 %v180
      %v1108 = vunpack.c.h.b16 %v180
      %v1109 = vunpack.c.l.b16 %v181
      %v1110 = vunpack.c.h.b16 %v181
      %v1111 = vunpack.c.l.b16 %v182
      %v1112 = vunpack.c.h.b16 %v182
      %v1113 = vunpack.c.l.b16 %v183
      %v1114 = vunpack.c.h.b16 %v183
      %v1115 = vunpack.c.l.b16 %v184
      %v1116 = vunpack.c.h.b16 %v184
      %v1117 = vunpack.c.l.b16 %v185
      %v1118 = vunpack.c.h.b16 %v185
      %v1119 = vunpack.c.l.b16 %v186
      %v1120 = vunpack.c.h.b16 %v186
      %v1121 = vunpack.c.l.b16 %v187
      %v1122 = vunpack.c.h.b16 %v187
      %v1123 = vunpack.c.l.b16 %v188
      %v1124 = vunpack.c.h.b16 %v188
      %v1125 = vunpack.c.l.b16 %v189
      %v1126 = vunpack.c.h.b16 %v189
      %v1127 = vunpack.c.l.b16 %v190
      %v1128 = vunpack.c.h.b16 %v190
      %v1129 = vunpack.c.l.b16 %v191
      %v1130 = vunpack.c.h.b16 %v191
      %v1131 = vunpack.c.l.b16 %v192
      %v1132 = vunpack.c.h.b16 %v192
      %v1133 = vunpack.c.l.b16 %v193
      %v1134 = vunpack.c.h.b16 %v193
      %v1135 = vunpack.c.l.b16 %v194
      %v1136 = vunpack.c.h.b16 %v194
      %v1137 = vunpack.c.l.b16 %v195
      %v1138 = vunpack.c.h.b16 %v195
      %v1139 = vunpack.c.l.b16 %v196
      %v1140 = vunpack.c.h.b16 %v196
      %v1141 = vunpack.c.l.b16 %v197
      %v1142 = vunpack.c.h.b16 %v197
      %v1143 = vunpack.c.l.b16 %v198
      %v1144 = vunpack.c.h.b16 %v198
      %v1145 = vunpack.c.l.b16 %v199
      %v1146 = vunpack.c.h.b16 %v199
      %v1147 = vunpack.c.l.b16 %v200
      %v1148 = vunpack.c.h.b16 %v200
      %v1149 = vunpack.c.l.b16 %v201
      %v1150 = vunpack.c.h.b16 %v201
      %v1151 = vunpack.c.l.b16 %v202
      %v1152 = vunpack.c.h.b16 %v202
      %v1153 = vunpack.c.l.b16 %v203
      %v1154 = vunpack.c.h.b16 %v203
      %v1155 = vunpack.c.l.b16 %v204
      %v1156 = vunpack.c.h.b16 %v204
      %v1157 = vunpack.c.l.b16 %v205
      %v1158 = vunpack.c.h.b16 %v205
      %v1159 = vunpack.c.l.b16 %v206
      %v1160 = vunpack.c.h.b16 %v206
      %v1161 = vunpack.c.l.b16 %v207
      %v1162 = vunpack.c.h.b16 %v207
      %v1163 = vunpack.c.l.b16 %v208
      %v1164 = vunpack.c.h.b16 %v208
      %v1165 = vunpack.c.l.b16 %v209
      %v1166 = vunpack.c.h.b16 %v209
      %v1167 = vunpack.c.l.b16 %v210
      %v1168 = vunpack.c.h.b16 %v210
      %v1169 = vunpack.c.l.b16 %v211
      %v1170 = vunpack.c.h.b16 %v211
      %v1171 = vunpack.c.l.b16 %v212
      %v1172 = vunpack.c.h.b16 %v212
      %v1173 = vunpack.c.l.b16 %v213
      %v1174 = vunpack.c.h.b16 %v213
      %v1175 = vunpack.c.l.b16 %v214
      %v1176 = vunpack.c.h.b16 %v214
      %v1177 = vunpack.c.l.b16 %v215
      %v1178 = vunpack.c.h.b16 %v215
      %v1179 = vunpack.c.l.b16 %v216
      %v1180 = vunpack.c.h.b16 %v216
      %v1181 = vunpack.c.l.b16 %v217
      %v1182 = vunpack.c.h.b16 %v217
      %v1183 = vunpack.c.l.b16 %v218
      %v1184 = vunpack.c.h.b16 %v218
      %v1185 = vunpack.c.l.b16 %v219
      %v1186 = vunpack.c.h.b16 %v219
      %v1187 = vunpack.c.l.b16 %v220
      %v1188 = vunpack.c.h.b16 %v220
      %v1189 = vunpack.c.l.b16 %v221
      %v1190 = vunpack.c.h.b16 %v221
      %v1191 = vunpack.c.l.b16 %v222
      %v1192 = vunpack.c.h.b16 %v222
      %v1193 = vunpack.c.l.b16 %v223
      %v1194 = vunpack.c.h.b16 %v223
      %v1195 = vunpack.c.l.b16 %v224
      %v1196 = vunpack.c.h.b16 %v224
      %v1197 = vunpack.c.l.b16 %v225
      %v1198 = vunpack.c.h.b16 %v225
      %v1199 = vunpack.c.l.b16 %v226
      %v1200 = vunpack.c.h.b16 %v226
      %v1201 = vunpack.c.l.b16 %v227
      %v1202 = vunpack.c.h.b16 %v227
      %v1203 = vunpack.c.l.b16 %v228
      %v1204 = vunpack.c.h.b16 %v228
      %v1205 = vunpack.c.l.b16 %v229
      %v1206 = vunpack.c.h.b16 %v229
      %v1207 = vunpack.c.l.b16 %v230
      %v1208 = vunpack.c.h.b16 %v230
      %v1209 = vunpack.c.l.b16 %v231
      %v1210 = vunpack.c.h.b16 %v231
      %v1211 = vunpack.c.l.b16 %v232
      %v1212 = vunpack.c.h.b16 %v232
      %v1213 = vunpack.c.l.b16 %v233
      %v1214 = vunpack.c.h.b16 %v233
      %v1215 = vunpack.c.l.b16 %v234
      %v1216 = vunpack.c.h.b16 %v234
      %v1217 = vunpack.c.l.b16 %v235
      %v1218 = vunpack.c.h.b16 %v235
      %v1219 = vunpack.c.l.b16 %v236
      %v1220 = vunpack.c.h.b16 %v236
      %v1221 = vunpack.c.l.b16 %v237
      %v1222 = vunpack.c.h.b16 %v237
      %v1223 = vunpack.c.l.b16 %v238
      %v1224 = vunpack.c.h.b16 %v238
      %v1225 = vunpack.c.l.b16 %v239
      %v1226 = vunpack.c.h.b16 %v239
      %v1227 = vunpack.c.l.b16 %v240
      %v1228 = vunpack.c.h.b16 %v240
      %v1229 = vunpack.c.l.b16 %v241
      %v1230 = vunpack.c.h.b16 %v241
      %v1231 = vunpack.c.l.b16 %v242
      %v1232 = vunpack.c.h.b16 %v242
      %v1233 = vunpack.c.l.b16 %v243
      %v1234 = vunpack.c.h.b16 %v243
      %v1235 = vunpack.c.l.b16 %v244
      %v1236 = vunpack.c.h.b16 %v244
      %v1237 = vunpack.c.l.b16 %v245
      %v1238 = vunpack.c.h.b16 %v245
      %v1239 = vunpack.c.l.b16 %v246
      %v1240 = vunpack.c.h.b16 %v246
      %v1241 = vunpack.c.l.b16 %v247
      %v1242 = vunpack.c.h.b16 %v247
      %v1243 = vunpack.c.l.b16 %v248
      %v1244 = vunpack.c.h.b16 %v248
      %v1245 = vunpack.c.l.b16 %v249
      %v1246 = vunpack.c.h.b16 %v249
      %v1247 = vunpack.c.l.b16 %v250
      %v1248 = vunpack.c.h.b16 %v250
      %v1249 = vunpack.c.l.b16 %v251
      %v1250 = vunpack.c.h.b16 %v251
      %v1251 = vunpack.c.l.b16 %v252
      %v1252 = vunpack.c.h.b16 %v252
      %v1253 = vunpack.c.l.b16 %v253
      %v1254 = vunpack.c.h.b16 %v253
      %v1255 = vunpack.c.l.b16 %v254
      %v1256 = vunpack.c.h.b16 %v254
      %v1257 = vunpack.c.l.b16 %v255
      %v1258 = vunpack.c.h.b16 %v255
      %v1259 = vunpack.c.l.b16 %v256
      %v1260 = vunpack.c.h.b16 %v256
      %v1261 = vunpack.c.l.b16 %v257
      %v1262 = vunpack.c.h.b16 %v257
      %v1263 = vunpack.c.l.b16 %v258
      %v1264 = vunpack.c.h.b16 %v258
      %v1265 = vunpack.c.l.b16 %v259
      %v1266 = vunpack.c.h.b16 %v259
      %v1267 = vunpack.c.l.b16 %v260
      %v1268 = vunpack.c.h.b16 %v260
      %v1269 = vunpack.c.l.b16 %v261
      %v1270 = vunpack.c.h.b16 %v261
      %v1271 = vunpack.c.l.b16 %v262
      %v1272 = vunpack.c.h.b16 %v262
      %v1273 = vunpack.c.l.b16 %v263
      %v1274 = vunpack.c.h.b16 %v263
      %v1275 = vunpack.c.l.b16 %v264
      %v1276 = vunpack.c.h.b16 %v264
      %v1277 = vunpack.c.l.b16 %v265
      %v1278 = vunpack.c.h.b16 %v265
      %v1279 = vunpack.c.l.b16 %v266
      %v1280 = vunpack.c.h.b16 %v266
      %v1281 = vunpack.c.l.b16 %v267
      %v1282 = vunpack.c.h.b16 %v267
      %v1283 = vunpack.c.l.b16 %v268
      %v1284 = vunpack.c.h.b16 %v268
      %v1285 = vunpack.c.l.b16 %v269
      %v1286 = vunpack.c.h.b16 %v269
      %v1287 = vunpack.c.l.b16 %v270
      %v1288 = vunpack.c.h.b16 %v270
      %v1289 = vunpack.c.l.b16 %v271
      %v1290 = vunpack.c.h.b16 %v271
      %v1291 = vunpack.c.l.b16 %v272
      %v1292 = vunpack.c.h.b16 %v272
      %v1293 = vunpack.c.l.b16 %v273
      %v1294 = vunpack.c.h.b16 %v273
      %v1295 = vunpack.c.l.b16 %v274
      %v1296 = vunpack.c.h.b16 %v274
      %v1297 = vunpack.c.l.b16 %v275
      %v1298 = vunpack.c.h.b16 %v275
      %v1299 = vunpack.c.l.b16 %v276
      %v1300 = vunpack.c.h.b16 %v276
      %v1301 = vunpack.c.l.b16 %v277
      %v1302 = vunpack.c.h.b16 %v277
      %v1303 = vunpack.c.l.b16 %v278
      %v1304 = vunpack.c.h.b16 %v278
      %v1305 = vunpack.c.l.b16 %v279
      %v1306 = vunpack.c.h.b16 %v279
      %v1307 = vunpack.c.l.b16 %v280
      %v1308 = vunpack.c.h.b16 %v280
      %v1309 = vunpack.c.l.b16 %v281
      %v1310 = vunpack.c.h.b16 %v281
      %v1311 = vunpack.c.l.b16 %v282
      %v1312 = vunpack.c.h.b16 %v282
      %v1313 = vunpack.c.l.b16 %v283
      %v1314 = vunpack.c.h.b16 %v283
      %v1315 = vunpack.c.l.b16 %v284
      %v1316 = vunpack.c.h.b16 %v284
      %v1317 = vunpack.c.l.b16 %v285
      %v1318 = vunpack.c.h.b16 %v285
      %v1319 = vunpack.c.l.b16 %v286
      %v1320 = vunpack.c.h.b16 %v286
      %v1321 = vunpack.c.l.b16 %v287
      %v1322 = vunpack.c.h.b16 %v287
      %v1323 = vunpack.c.l.b16 %v288
      %v1324 = vunpack.c.h.b16 %v288
      %v1325 = vunpack.c.l.b16 %v289
      %v1326 = vunpack.c.h.b16 %v289
      %v1327 = vunpack.c.l.b16 %v290
      %v1328 = vunpack.c.h.b16 %v290
      %v1329 = vunpack.c.l.b16 %v291
      %v1330 = vunpack.c.h.b16 %v291
      %v1331 = vunpack.c.l.b16 %v292
      %v1332 = vunpack.c.h.b16 %v292
      %v1333 = vunpack.c.l.b16 %v293
      %v1334 = vunpack.c.h.b16 %v293
      %v1335 = vunpack.c.l.b16 %v294
      %v1336 = vunpack.c.h.b16 %v294
      %v1337 = vunpack.c.l.b16 %v295
      %v1338 = vunpack.c.h.b16 %v295
      %v1339 = vunpack.c.l.b16 %v296
      %v1340 = vunpack.c.h.b16 %v296
      %v1341 = vunpack.c.l.b16 %v297
      %v1342 = vunpack.c.h.b16 %v297
      %v1343 = vunpack.c.l.b16 %v298
      %v1344 = vunpack.c.h.b16 %v298
      %v1345 = vunpack.c.l.b16 %v299
      %v1346 = vunpack.c.h.b16 %v299
      %v1347 = vunpack.c.l.b16 %v300
      %v1348 = vunpack.c.h.b16 %v300
      %v1349 = vunpack.c.l.b16 %v301
      %v1350 = vunpack.c.h.b16 %v301
      %v1351 = vunpack.c.l.b16 %v302
      %v1352 = vunpack.c.h.b16 %v302
      %v1353 = vunpack.c.l.b16 %v303
      %v1354 = vunpack.c.h.b16 %v303
      %v1355 = vunpack.c.l.b16 %v304
      %v1356 = vunpack.c.h.b16 %v304
      %v1357 = vunpack.c.l.b16 %v305
      %v1358 = vunpack.c.h.b16 %v305
      %v1359 = vunpack.c.l.b16 %v306
      %v1360 = vunpack.c.h.b16 %v306
      %v1361 = vunpack.c.l.b16 %v307
      %v1362 = vunpack.c.h.b16 %v307
      %v1363 = vunpack.c.l.b16 %v308
      %v1364 = vunpack.c.h.b16 %v308
      %v1365 = vunpack.c.l.b16 %v309
      %v1366 = vunpack.c.h.b16 %v309
      %v1367 = vunpack.c.l.b16 %v310
      %v1368 = vunpack.c.h.b16 %v310
      %v1369 = vunpack.c.l.b16 %v311
      %v1370 = vunpack.c.h.b16 %v311
      %v1371 = vunpack.c.l.b16 %v312
      %v1372 = vunpack.c.h.b16 %v312
      %v1373 = vunpack.c.l.b16 %v313
      %v1374 = vunpack.c.h.b16 %v313
      %v1375 = vunpack.c.l.b16 %v314
      %v1376 = vunpack.c.h.b16 %v314
      %v1377 = vunpack.c.l.b16 %v315
      %v1378 = vunpack.c.h.b16 %v315
      %v1379 = vunpack.c.l.b16 %v316
      %v1380 = vunpack.c.h.b16 %v316
      %v1381 = vunpack.c.l.b16 %v317
      %v1382 = vunpack.c.h.b16 %v317
      %v1383 = vunpack.c.l.b16 %v318
      %v1384 = vunpack.c.h.b16 %v318
      %v1385 = vpack.c.b16 %v1145, %v1105
      %v1386 = vpack.c.b16 %v1146, %v1106
      %v1387 = vpack.c.b16 %v1147, %v1107
      %v1388 = vpack.c.b16 %v1148, %v1108
      %v1389 = vpack.c.b16 %v1149, %v1109
      %v1390 = vpack.c.b16 %v1150, %v1110
      %v1391 = vpack.c.b16 %v1151, %v1111
      %v1392 = vpack.c.b16 %v1152, %v1112
      %v1393 = vpack.c.b16 %v1153, %v1113
      %v1394 = vpack.c.b16 %v1154, %v1114
      %v1395 = vpack.c.b16 %v1155, %v1115
      %v1396 = vpack.c.b16 %v1156, %v1116
      %v1397 = vpack.c.b16 %v1157, %v1117
      %v1398 = vpack.c.b16 %v1158, %v1118
      %v1399 = vpack.c.b16 %v1159, %v1119
      %v1400 = vpack.c.b16 %v1160, %v1120
      %v1401 = vpack.c.b16 %v1161, %v1121
      %v1402 = vpack.c.b16 %v1162, %v1122
      %v1403 = vpack.c.b16 %v1163, %v1123
      %v1404 = vpack.c.b16 %v1164, %v1124
      %v1405 = vpack.c.b16 %v1165, %v1125
      %v1406 = vpack.c.b16 %v1166, %v1126
      %v1407 = vpack.c.b16 %v1167, %v1127
      %v1408 = vpack.c.b16 %v1168, %v1128
      %v1409 = vpack.c.b16 %v1169, %v1129
      %v1410 = vpack.c.b16 %v1170, %v1130
      %v1411 = vpack.c.b16 %v1171, %v1131
      %v1412 = vpack.c.b16 %v1172, %v1132
      %v1413 = vpack.c.b16 %v1173, %v1133
      %v1414 = vpack.c.b16 %v1174, %v1134
      %v1415 = vpack.c.b16 %v1175, %v1135
      %v1416 = vpack.c.b16 %v1176, %v1136
      %v1417 = vpack.c.b16 %v1177, %v1137
      %v1418 = vpack.c.b16 %v1178, %v1138
      %v1419 = vpack.c.b16 %v1179, %v1139
      %v1420 = vpack.c.b16 %v1180, %v1140
      %v1421 = vpack.c.b16 %v1181, %v1141
      %v1422 = vpack.c.b16 %v1182, %v1142
      %v1423 = vpack.c.b16 %v1183, %v1143
      %v1424 = vpack.c.b16 %v1184, %v1144
      %v1425 = vpack.c.b16 %v1225, %v1185
      %v1426 = vpack.c.b16 %v1226, %v1186
      %v1427 = vpack.c.b16 %v1227, %v1187
      %v1428 = vpack.c.b16 %v1228, %v1188
      %v1429 = vpack.c.b16 %v1229, %v1189
      %v1430 = vpack.c.b16 %v1230, %v1190
      %v1431 = vpack.c.b16 %v1231, %v1191
      %v1432 = vpack.c.b16 %v1232, %v1192
      %v1433 = vpack.c.b16 %v1233, %v1193
      %v1434 = vpack.c.b16 %v1234, %v1194
      %v1435 = vpack.c.b16 %v1235, %v1195
      %v1436 = vpack.c.b16 %v1236, %v1196
      %v1437 = vpack.c.b16 %v1237, %v1197
      %v1438 = vpack.c.b16 %v1238, %v1198
      %v1439 = vpack.c.b16 %v1239, %v1199
      %v1440 = vpack.c.b16 %v1240, %v1200
      %v1441 = vpack.c.b16 %v1241, %v1201
      %v1442 = vpack.c.b16 %v1242, %v1202
      %v1443 = vpack.c.b16 %v1243, %v1203
      %v1444 = vpack.c.b16 %v1244, %v1204
      %v1445 = vpack.c.b16 %v1245, %v1205
      %v1446 = vpack.c.b16 %v1246, %v1206
      %v1447 = vpack.c.b16 %v1247, %v1207
      %v1448 = vpack.c.b16 %v1248, %v1208
      %v1449 = vpack.c.b16 %v1249, %v1209
      %v1450 = vpack.c.b16 %v1250, %v1210
      %v1451 = vpack.c.b16 %v1251, %v1211
      %v1452 = vpack.c.b16 %v1252, %v1212
      %v1453 = vpack.c.b16 %v1253, %v1213
      %v1454 = vpack.c.b16 %v1254, %v1214
      %v1455 = vpack.c.b16 %v1255, %v1215
      %v1456 = vpack.c.b16 %v1256, %v1216
      %v1457 = vpack.c.b16 %v1257, %v1217
      %v1458 = vpack.c.b16 %v1258, %v1218
      %v1459 = vpack.c.b16 %v1259, %v1219
      %v1460 = vpack.c.b16 %v1260, %v1220
      %v1461 = vpack.c.b16 %v1261, %v1221
      %v1462 = vpack.c.b16 %v1262, %v1222
      %v1463 = vpack.c.b16 %v1263, %v1223
      %v1464 = vpack.c.b16 %v1264, %v1224
      %v1465 = vpack.c.b16 %v1305, %v1265
      %v1466 = vpack.c.b16 %v1306, %v1266
      %v1467 = vpack.c.b16 %v1307, %v1267
      %v1468 = vpack.c.b16 %v1308, %v1268
      %v1469 = vpack.c.b16 %v1309, %v1269
      %v1470 = vpack.c.b16 %v1310, %v1270
      %v1471 = vpack.c.b16 %v1311, %v1271
      %v1472 = vpack.c.b16 %v1312, %v1272
      %v1473 = vpack.c.b16 %v1313, %v1273
      %v1474 = vpack.c.b16 %v1314, %v1274
      %v1475 = vpack.c.b16 %v1315, %v1275
      %v1476 = vpack.c.b16 %v1316, %v1276
      %v1477 = vpack.c.b16 %v1317, %v1277
      %v1478 = vpack.c.b16 %v1318, %v1278
      %v1479 = vpack.c.b16 %v1319, %v1279
      %v1480 = vpack.c.b16 %v1320, %v1280
      %v1481 = vpack.c.b16 %v1321, %v1281
      %v1482 = vpack.c.b16 %v1322, %v1282
      %v1483 = vpack.c.b16 %v1323, %v1283
      %v1484 = vpack.c.b16 %v1324, %v1284
      %v1485 = vpack.c.b16 %v1325, %v1285
      %v1486 = vpack.c.b16 %v1326, %v1286
      %v1487 = vpack.c.b16 %v1327, %v1287
      %v1488 = vpack.c.b16 %v1328, %v1288
      %v1489 = vpack.c.b16 %v1329, %v1289
      %v1490 = vpack.c.b16 %v1330, %v1290
      %v1491 = vpack.c.b16 %v1331, %v1291
      %v1492 = vpack.c.b16 %v1332, %v1292
      %v1493 = vpack.c.b16 %v1333, %v1293
      %v1494 = vpack.c.b16 %v1334, %v1294
      %v1495 = vpack.c.b16 %v1335, %v1295
      %v1496 = vpack.c.b16 %v1336, %v1296
      %v1497 = vpack.c.b16 %v1337, %v1297
      %v1498 = vpack.c.b16 %v1338, %v1298
      %v1499 = vpack.c.b16 %v1339, %v1299
      %v1500 = vpack.c.b16 %v1340, %v1300
      %v1501 = vpack.c.b16 %v1341, %v1301
      %v1502 = vpack.c.b16 %v1342, %v1302
      %v1503 = vpack.c.b16 %v1343, %v1303
      %v1504 = vpack.c.b16 %v1344, %v1304
      %v1505 = vpack.c.b16 %v1345, %v1345
      %v1506 = vpack.c.b16 %v1346, %v1346
      %v1507 = vpack.c.b16 %v1347, %v1347
      %v1508 = vpack.c.b16 %v1348, %v1348
      %v1509 = vpack.c.b16 %v1349, %v1349
      %v1510 = vpack.c.b16 %v1350, %v1350
      %v1511 = vpack.c.b16 %v1351, %v1351
      %v1512 = vpack.c.b16 %v1352, %v1352
      %v1513 = vpack.c.b16 %v1353, %v1353
      %v1514 = vpack.c.b16 %v1354, %v1354
      %v1515 = vpack.c.b16 %v1355, %v1355
      %v1516 = vpack.c.b16 %v1356, %v1356
      %v1517 = vpack.c.b16 %v1357, %v1357
      %v1518 = vpack.c.b16 %v1358, %v1358
      %v1519 = vpack.c.b16 %v1359, %v1359
      %v1520 = vpack.c.b16 %v1360, %v1360
      %v1521 = vpack.c.b16 %v1361, %v1361
      %v1522 = vpack.c.b16 %v1362, %v1362
      %v1523 = vpack.c.b16 %v1363, %v1363
      %v1524 = vpack.c.b16 %v1364, %v1364
      %v1525 = vpack.c.b16 %v1365, %v1365
      %v1526 = vpack.c.b16 %v1366, %v1366
      %v1527 = vpack.c.b16 %v1367, %v1367
      %v1528 = vpack.c.b16 %v1368, %v1368
      %v1529 = vpack.c.b16 %v1369, %v1369
      %v1530 = vpack.c.b16 %v1370, %v1370
      %v1531 = vpack.c.b16 %v1371, %v1371
      %v1532 = vpack.c.b16 %v1372, %v1372
      %v1533 = vpack.c.b16 %v1373, %v1373
      %v1534 = vpack.c.b16 %v1374, %v1374
      %v1535 = vpack.c.b16 %v1375, %v1375
      %v1536 = vpack.c.b16 %v1376, %v1376
      %v1537 = vpack.c.b16 %v1377, %v1377
      %v1538 = vpack.c.b16 %v1378, %v1378
      %v1539 = vpack.c.b16 %v1379, %v1379
      %v1540 = vpack.c.b16 %v1380, %v1380
      %v1541 = vpack.c.b16 %v1381, %v1381
      %v1542 = vpack.c.b16 %v1382, %v1382
      %v1543 = vpack.c.b16 %v1383, %v1383
      %v1544 = vpack.c.b16 %v1384, %v1384
      %v2345 = vunpack.c.l.b16 %v319
      %v2346 = vunpack.c.h.b16 %v319
      %v2347 = vunpack.c.l.b16 %v320
      %v2348 = vunpack.c.h.b16 %v320
      %v2349 = vunpack.c.l.b16 %v321
      %v2350 = vunpack.c.h.b16 %v321
      %v2351 = vunpack.c.l.b16 %v322
      %v2352 = vunpack.c.h.b16 %v322
      %v2353 = vunpack.c.l.b16 %v323
      %v2354 = vunpack.c.h.b16 %v323
      %v2355 = vunpack.c.l.b16 %v324
      %v2356 = vunpack.c.h.b16 %v324
      %v2357 = vunpack.c.l.b16 %v325
      %v2358 = vunpack.c.h.b16 %v325
      %v2359 = vunpack.c.l.b16 %v326
      %v2360 = vunpack.c.h.b16 %v326
      %v2361 = vunpack.c.l.b16 %v327
      %v2362 = vunpack.c.h.b16 %v327
      %v2363 = vunpack.c.l.b16 %v328
      %v2364 = vunpack.c.h.b16 %v328
      %v2365 = vunpack.c.l.b16 %v329
      %v2366 = vunpack.c.h.b16 %v329
      %v2367 = vunpack.c.l.b16 %v330
      %v2368 = vunpack.c.h.b16 %v330
      %v2369 = vunpack.c.l.b16 %v331
      %v2370 = vunpack.c.h.b16 %v331
      %v2371 = vunpack.c.l.b16 %v332
      %v2372 = vunpack.c.h.b16 %v332
      %v2373 = vunpack.c.l.b16 %v333
      %v2374 = vunpack.c.h.b16 %v333
      %v2375 = vunpack.c.l.b16 %v334
      %v2376 = vunpack.c.h.b16 %v334
      %v2377 = vunpack.c.l.b16 %v335
      %v2378 = vunpack.c.h.b16 %v335
      %v2379 = vunpack.c.l.b16 %v336
      %v2380 = vunpack.c.h.b16 %v336
      %v2381 = vunpack.c.l.b16 %v337
      %v2382 = vunpack.c.h.b16 %v337
      %v2383 = vunpack.c.l.b16 %v338
      %v2384 = vunpack.c.h.b16 %v338
      %v2385 = vunpack.c.l.b16 %v339
      %v2386 = vunpack.c.h.b16 %v339
      %v2387 = vunpack.c.l.b16 %v340
      %v2388 = vunpack.c.h.b16 %v340
      %v2389 = vunpack.c.l.b16 %v341
      %v2390 = vunpack.c.h.b16 %v341
      %v2391 = vunpack.c.l.b16 %v342
      %v2392 = vunpack.c.h.b16 %v342
      %v2393 = vunpack.c.l.b16 %v343
      %v2394 = vunpack.c.h.b16 %v343
      %v2395 = vunpack.c.l.b16 %v344
      %v2396 = vunpack.c.h.b16 %v344
      %v2397 = vunpack.c.l.b16 %v345
      %v2398 = vunpack.c.h.b16 %v345
      %v2399 = vunpack.c.l.b16 %v346
      %v2400 = vunpack.c.h.b16 %v346
      %v2401 = vunpack.c.l.b16 %v347
      %v2402 = vunpack.c.h.b16 %v347
      %v2403 = vunpack.c.l.b16 %v348
      %v2404 = vunpack.c.h.b16 %v348
      %v2405 = vunpack.c.l.b16 %v349
      %v2406 = vunpack.c.h.b16 %v349
      %v2407 = vunpack.c.l.b16 %v350
      %v2408 = vunpack.c.h.b16 %v350
      %v2409 = vunpack.c.l.b16 %v351
      %v2410 = vunpack.c.h.b16 %v351
      %v2411 = vunpack.c.l.b16 %v352
      %v2412 = vunpack.c.h.b16 %v352
      %v2413 = vunpack.c.l.b16 %v353
      %v2414 = vunpack.c.h.b16 %v353
      %v2415 = vunpack.c.l.b16 %v354
      %v2416 = vunpack.c.h.b16 %v354
      %v2417 = vunpack.c.l.b16 %v355
      %v2418 = vunpack.c.h.b16 %v355
      %v2419 = vunpack.c.l.b16 %v356
      %v2420 = vunpack.c.h.b16 %v356
      %v2421 = vunpack.c.l.b16 %v357
      %v2422 = vunpack.c.h.b16 %v357
      %v2423 = vunpack.c.l.b16 %v358
      %v2424 = vunpack.c.h.b16 %v358
      %v2425 = vunpack.c.l.b16 %v359
      %v2426 = vunpack.c.h.b16 %v359
      %v2427 = vunpack.c.l.b16 %v360
      %v2428 = vunpack.c.h.b16 %v360
      %v2429 = vunpack.c.l.b16 %v361
      %v2430 = vunpack.c.h.b16 %v361
      %v2431 = vunpack.c.l.b16 %v362
      %v2432 = vunpack.c.h.b16 %v362
      %v2433 = vunpack.c.l.b16 %v363
      %v2434 = vunpack.c.h.b16 %v363
      %v2435 = vunpack.c.l.b16 %v364
      %v2436 = vunpack.c.h.b16 %v364
      %v2437 = vunpack.c.l.b16 %v365
      %v2438 = vunpack.c.h.b16 %v365
      %v2439 = vunpack.c.l.b16 %v366
      %v2440 = vunpack.c.h.b16 %v366
      %v2441 = vunpack.c.l.b16 %v367
      %v2442 = vunpack.c.h.b16 %v367
      %v2443 = vunpack.c.l.b16 %v368
      %v2444 = vunpack.c.h.b16 %v368
      %v2445 = vunpack.c.l.b16 %v369
      %v2446 = vunpack.c.h.b16 %v369
      %v2447 = vunpack.c.l.b16 %v370
      %v2448 = vunpack.c.h.b16 %v370
      %v2449 = vunpack.c.l.b16 %v371
      %v2450 = vunpack.c.h.b16 %v371
      %v2451 = vunpack.c.l.b16 %v372
      %v2452 = vunpack.c.h.b16 %v372
      %v2453 = vunpack.c.l.b16 %v373
      %v2454 = vunpack.c.h.b16 %v373
      %v2455 = vunpack.c.l.b16 %v374
      %v2456 = vunpack.c.h.b16 %v374
      %v2457 = vunpack.c.l.b16 %v375
      %v2458 = vunpack.c.h.b16 %v375
      %v2459 = vunpack.c.l.b16 %v376
      %v2460 = vunpack.c.h.b16 %v376
      %v2461 = vunpack.c.l.b16 %v377
      %v2462 = vunpack.c.h.b16 %v377
      %v2463 = vunpack.c.l.b16 %v378
      %v2464 = vunpack.c.h.b16 %v378
      %v2465 = vunpack.c.l.b16 %v379
      %v2466 = vunpack.c.h.b16 %v379
      %v2467 = vunpack.c.l.b16 %v380
      %v2468 = vunpack.c.h.b16 %v380
      %v2469 = vunpack.c.l.b16 %v381
      %v2470 = vunpack.c.h.b16 %v381
      %v2471 = vunpack.c.l.b16 %v382
      %v2472 = vunpack.c.h.b16 %v382
      %v2473 = vunpack.c.l.b16 %v383
      %v2474 = vunpack.c.h.b16 %v383
      %v2475 = vunpack.c.l.b16 %v384
      %v2476 = vunpack.c.h.b16 %v384
      %v2477 = vunpack.c.l.b16 %v385
      %v2478 = vunpack.c.h.b16 %v385
      %v2479 = vunpack.c.l.b16 %v386
      %v2480 = vunpack.c.h.b16 %v386
      %v2481 = vunpack.c.l.b16 %v387
      %v2482 = vunpack.c.h.b16 %v387
      %v2483 = vunpack.c.l.b16 %v388
      %v2484 = vunpack.c.h.b16 %v388
      %v2485 = vunpack.c.l.b16 %v389
      %v2486 = vunpack.c.h.b16 %v389
      %v2487 = vunpack.c.l.b16 %v390
      %v2488 = vunpack.c.h.b16 %v390
      %v2489 = vunpack.c.l.b16 %v391
      %v2490 = vunpack.c.h.b16 %v391
      %v2491 = vunpack.c.l.b16 %v392
      %v2492 = vunpack.c.h.b16 %v392
      %v2493 = vunpack.c.l.b16 %v393
      %v2494 = vunpack.c.h.b16 %v393
      %v2495 = vunpack.c.l.b16 %v394
      %v2496 = vunpack.c.h.b16 %v394
      %v2497 = vunpack.c.l.b16 %v395
      %v2498 = vunpack.c.h.b16 %v395
      %v2499 = vunpack.c.l.b16 %v396
      %v2500 = vunpack.c.h.b16 %v396
      %v2501 = vunpack.c.l.b16 %v397
      %v2502 = vunpack.c.h.b16 %v397
      %v2503 = vunpack.c.l.b16 %v398
      %v2504 = vunpack.c.h.b16 %v398
      %v2505 = vunpack.c.l.b16 %v399
      %v2506 = vunpack.c.h.b16 %v399
      %v2507 = vunpack.c.l.b16 %v400
      %v2508 = vunpack.c.h.b16 %v400
      %v2509 = vunpack.c.l.b16 %v401
      %v2510 = vunpack.c.h.b16 %v401
      %v2511 = vunpack.c.l.b16 %v402
      %v2512 = vunpack.c.h.b16 %v402
      %v2513 = vunpack.c.l.b16 %v403
      %v2514 = vunpack.c.h.b16 %v403
      %v2515 = vunpack.c.l.b16 %v404
      %v2516 = vunpack.c.h.b16 %v404
      %v2517 = vunpack.c.l.b16 %v405
      %v2518 = vunpack.c.h.b16 %v405
      %v2519 = vunpack.c.l.b16 %v406
      %v2520 = vunpack.c.h.b16 %v406
      %v2521 = vunpack.c.l.b16 %v407
      %v2522 = vunpack.c.h.b16 %v407
      %v2523 = vunpack.c.l.b16 %v408
      %v2524 = vunpack.c.h.b16 %v408
      %v2525 = vunpack.c.l.b16 %v409
      %v2526 = vunpack.c.h.b16 %v409
      %v2527 = vunpack.c.l.b16 %v410
      %v2528 = vunpack.c.h.b16 %v410
      %v2529 = vunpack.c.l.b16 %v411
      %v2530 = vunpack.c.h.b16 %v411
      %v2531 = vunpack.c.l.b16 %v412
      %v2532 = vunpack.c.h.b16 %v412
      %v2533 = vunpack.c.l.b16 %v413
      %v2534 = vunpack.c.h.b16 %v413
      %v2535 = vunpack.c.l.b16 %v414
      %v2536 = vunpack.c.h.b16 %v414
      %v2537 = vunpack.c.l.b16 %v415
      %v2538 = vunpack.c.h.b16 %v415
      %v2539 = vunpack.c.l.b16 %v416
      %v2540 = vunpack.c.h.b16 %v416
      %v2541 = vunpack.c.l.b16 %v417
      %v2542 = vunpack.c.h.b16 %v417
      %v2543 = vunpack.c.l.b16 %v418
      %v2544 = vunpack.c.h.b16 %v418
      %v2545 = vunpack.c.l.b16 %v419
      %v2546 = vunpack.c.h.b16 %v419
      %v2547 = vunpack.c.l.b16 %v420
      %v2548 = vunpack.c.h.b16 %v420
      %v2549 = vunpack.c.l.b16 %v421
      %v2550 = vunpack.c.h.b16 %v421
      %v2551 = vunpack.c.l.b16 %v422
      %v2552 = vunpack.c.h.b16 %v422
      %v2553 = vunpack.c.l.b16 %v423
      %v2554 = vunpack.c.h.b16 %v423
      %v2555 = vunpack.c.l.b16 %v424
      %v2556 = vunpack.c.h.b16 %v424
      %v2557 = vunpack.c.l.b16 %v425
      %v2558 = vunpack.c.h.b16 %v425
      %v2559 = vunpack.c.l.b16 %v426
      %v2560 = vunpack.c.h.b16 %v426
      %v2561 = vunpack.c.l.b16 %v427
      %v2562 = vunpack.c.h.b16 %v427
      %v2563 = vunpack.c.l.b16 %v428
      %v2564 = vunpack.c.h.b16 %v428
      %v2565 = vunpack.c.l.b16 %v429
      %v2566 = vunpack.c.h.b16 %v429
      %v2567 = vunpack.c.l.b16 %v430
      %v2568 = vunpack.c.h.b16 %v430
      %v2569 = vunpack.c.l.b16 %v431
      %v2570 = vunpack.c.h.b16 %v431
      %v2571 = vunpack.c.l.b16 %v432
      %v2572 = vunpack.c.h.b16 %v432
      %v2573 = vunpack.c.l.b16 %v433
      %v2574 = vunpack.c.h.b16 %v433
      %v2575 = vunpack.c.l.b16 %v434
      %v2576 = vunpack.c.h.b16 %v434
      %v2577 = vunpack.c.l.b16 %v435
      %v2578 = vunpack.c.h.b16 %v435
      %v2579 = vunpack.c.l.b16 %v436
      %v2580 = vunpack.c.h.b16 %v436
      %v2581 = vunpack.c.l.b16 %v437
      %v2582 = vunpack.c.h.b16 %v437
      %v2583 = vunpack.c.l.b16 %v438
      %v2584 = vunpack.c.h.b16 %v438
      %v2585 = vunpack.c.l.b16 %v439
      %v2586 = vunpack.c.h.b16 %v439
      %v2587 = vunpack.c.l.b16 %v440
      %v2588 = vunpack.c.h.b16 %v440
      %v2589 = vunpack.c.l.b16 %v441
      %v2590 = vunpack.c.h.b16 %v441
      %v2591 = vunpack.c.l.b16 %v442
      %v2592 = vunpack.c.h.b16 %v442
      %v2593 = vunpack.c.l.b16 %v443
      %v2594 = vunpack.c.h.b16 %v443
      %v2595 = vunpack.c.l.b16 %v444
      %v2596 = vunpack.c.h.b16 %v444
      %v2597 = vunpack.c.l.b16 %v445
      %v2598 = vunpack.c.h.b16 %v445
      %v2599 = vunpack.c.l.b16 %v446
      %v2600 = vunpack.c.h.b16 %v446
      %v2601 = vunpack.c.l.b16 %v447
      %v2602 = vunpack.c.h.b16 %v447
      %v2603 = vunpack.c.l.b16 %v448
      %v2604 = vunpack.c.h.b16 %v448
      %v2605 = vunpack.c.l.b16 %v449
      %v2606 = vunpack.c.h.b16 %v449
      %v2607 = vunpack.c.l.b16 %v450
      %v2608 = vunpack.c.h.b16 %v450
      %v2609 = vunpack.c.l.b16 %v451
      %v2610 = vunpack.c.h.b16 %v451
      %v2611 = vunpack.c.l.b16 %v452
      %v2612 = vunpack.c.h.b16 %v452
      %v2613 = vunpack.c.l.b16 %v453
      %v2614 = vunpack.c.h.b16 %v453
      %v2615 = vunpack.c.l.b16 %v454
      %v2616 = vunpack.c.h.b16 %v454
      %v2617 = vunpack.c.l.b16 %v455
      %v2618 = vunpack.c.h.b16 %v455
      %v2619 = vunpack.c.l.b16 %v456
      %v2620 = vunpack.c.h.b16 %v456
      %v2621 = vunpack.c.l.b16 %v457
      %v2622 = vunpack.c.h.b16 %v457
      %v2623 = vunpack.c.l.b16 %v458
      %v2624 = vunpack.c.h.b16 %v458
      %v2625 = vunpack.c.l.b16 %v459
      %v2626 = vunpack.c.h.b16 %v459
      %v2627 = vunpack.c.l.b16 %v460
      %v2628 = vunpack.c.h.b16 %v460
      %v2629 = vunpack.c.l.b16 %v461
      %v2630 = vunpack.c.h.b16 %v461
      %v2631 = vunpack.c.l.b16 %v462
      %v2632 = vunpack.c.h.b16 %v462
      %v2633 = vunpack.c.l.b16 %v463
      %v2634 = vunpack.c.h.b16 %v463
      %v2635 = vunpack.c.l.b16 %v464
      %v2636 = vunpack.c.h.b16 %v464
      %v2637 = vunpack.c.l.b16 %v465
      %v2638 = vunpack.c.h.b16 %v465
      %v2639 = vunpack.c.l.b16 %v466
      %v2640 = vunpack.c.h.b16 %v466
      %v2641 = vunpack.c.l.b16 %v467
      %v2642 = vunpack.c.h.b16 %v467
      %v2643 = vunpack.c.l.b16 %v468
      %v2644 = vunpack.c.h.b16 %v468
      %v2645 = vunpack.c.l.b16 %v469
      %v2646 = vunpack.c.h.b16 %v469
      %v2647 = vunpack.c.l.b16 %v470
      %v2648 = vunpack.c.h.b16 %v470
      %v2649 = vunpack.c.l.b16 %v471
      %v2650 = vunpack.c.h.b16 %v471
      %v2651 = vunpack.c.l.b16 %v472
      %v2652 = vunpack.c.h.b16 %v472
      %v2653 = vunpack.c.l.b16 %v473
      %v2654 = vunpack.c.h.b16 %v473
      %v2655 = vunpack.c.l.b16 %v474
      %v2656 = vunpack.c.h.b16 %v474
      %v2657 = vunpack.c.l.b16 %v475
      %v2658 = vunpack.c.h.b16 %v475
      %v2659 = vunpack.c.l.b16 %v476
      %v2660 = vunpack.c.h.b16 %v476
      %v2661 = vunpack.c.l.b16 %v477
      %v2662 = vunpack.c.h.b16 %v477
      %v2663 = vunpack.c.l.b16 %v478
      %v2664 = vunpack.c.h.b16 %v478
      %v2665 = vunpack.c.l.b16 %v479
      %v2666 = vunpack.c.h.b16 %v479
      %v2667 = vunpack.c.l.b16 %v480
      %v2668 = vunpack.c.h.b16 %v480
      %v2669 = vunpack.c.l.b16 %v481
      %v2670 = vunpack.c.h.b16 %v481
      %v2671 = vunpack.c.l.b16 %v482
      %v2672 = vunpack.c.h.b16 %v482
      %v2673 = vunpack.c.l.b16 %v483
      %v2674 = vunpack.c.h.b16 %v483
      %v2675 = vunpack.c.l.b16 %v484
      %v2676 = vunpack.c.h.b16 %v484
      %v2677 = vunpack.c.l.b16 %v485
      %v2678 = vunpack.c.h.b16 %v485
      %v2679 = vunpack.c.l.b16 %v486
      %v2680 = vunpack.c.h.b16 %v486
      %v2681 = vunpack.c.l.b16 %v487
      %v2682 = vunpack.c.h.b16 %v487
      %v2683 = vunpack.c.l.b16 %v488
      %v2684 = vunpack.c.h.b16 %v488
      %v2685 = vunpack.c.l.b16 %v489
      %v2686 = vunpack.c.h.b16 %v489
      %v2687 = vunpack.c.l.b16 %v490
      %v2688 = vunpack.c.h.b16 %v490
      %v2689 = vunpack.c.l.b16 %v491
      %v2690 = vunpack.c.h.b16 %v491
      %v2691 = vunpack.c.l.b16 %v492
      %v2692 = vunpack.c.h.b16 %v492
      %v2693 = vunpack.c.l.b16 %v493
      %v2694 = vunpack.c.h.b16 %v493
      %v2695 = vunpack.c.l.b16 %v494
      %v2696 = vunpack.c.h.b16 %v494
      %v2697 = vunpack.c.l.b16 %v495
      %v2698 = vunpack.c.h.b16 %v495
      %v2699 = vunpack.c.l.b16 %v496
      %v2700 = vunpack.c.h.b16 %v496
      %v2701 = vunpack.c.l.b16 %v497
      %v2702 = vunpack.c.h.b16 %v497
      %v2703 = vunpack.c.l.b16 %v498
      %v2704 = vunpack.c.h.b16 %v498
      %v2705 = vunpack.c.l.b16 %v499
      %v2706 = vunpack.c.h.b16 %v499
      %v2707 = vunpack.c.l.b16 %v500
      %v2708 = vunpack.c.h.b16 %v500
      %v2709 = vunpack.c.l.b16 %v501
      %v2710 = vunpack.c.h.b16 %v501
      %v2711 = vunpack.c.l.b16 %v502
      %v2712 = vunpack.c.h.b16 %v502
      %v2713 = vunpack.c.l.b16 %v503
      %v2714 = vunpack.c.h.b16 %v503
      %v2715 = vunpack.c.l.b16 %v504
      %v2716 = vunpack.c.h.b16 %v504
      %v2717 = vunpack.c.l.b16 %v505
      %v2718 = vunpack.c.h.b16 %v505
      %v2719 = vunpack.c.l.b16 %v506
      %v2720 = vunpack.c.h.b16 %v506
      %v2721 = vunpack.c.l.b16 %v507
      %v2722 = vunpack.c.h.b16 %v507
      %v2723 = vunpack.c.l.b16 %v508
      %v2724 = vunpack.c.h.b16 %v508
      %v2725 = vunpack.c.l.b16 %v509
      %v2726 = vunpack.c.h.b16 %v509
      %v2727 = vunpack.c.l.b16 %v510
      %v2728 = vunpack.c.h.b16 %v510
      %v2729 = vunpack.c.l.b16 %v511
      %v2730 = vunpack.c.h.b16 %v511
      %v2731 = vunpack.c.l.b16 %v512
      %v2732 = vunpack.c.h.b16 %v512
      %v2733 = vunpack.c.l.b16 %v513
      %v2734 = vunpack.c.h.b16 %v513
      %v2735 = vunpack.c.l.b16 %v514
      %v2736 = vunpack.c.h.b16 %v514
      %v2737 = vunpack.c.l.b16 %v515
      %v2738 = vunpack.c.h.b16 %v515
      %v2739 = vunpack.c.l.b16 %v516
      %v2740 = vunpack.c.h.b16 %v516
      %v2741 = vunpack.c.l.b16 %v517
      %v2742 = vunpack.c.h.b16 %v517
      %v2743 = vunpack.c.l.b16 %v518
      %v2744 = vunpack.c.h.b16 %v518
      %v2745 = vunpack.c.l.b16 %v519
      %v2746 = vunpack.c.h.b16 %v519
      %v2747 = vunpack.c.l.b16 %v520
      %v2748 = vunpack.c.h.b16 %v520
      %v2749 = vunpack.c.l.b16 %v521
      %v2750 = vunpack.c.h.b16 %v521
      %v2751 = vunpack.c.l.b16 %v522
      %v2752 = vunpack.c.h.b16 %v522
      %v2753 = vunpack.c.l.b16 %v523
      %v2754 = vunpack.c.h.b16 %v523
      %v2755 = vunpack.c.l.b16 %v524
      %v2756 = vunpack.c.h.b16 %v524
      %v2757 = vunpack.c.l.b16 %v525
      %v2758 = vunpack.c.h.b16 %v525
      %v2759 = vunpack.c.l.b16 %v526
      %v2760 = vunpack.c.h.b16 %v526
      %v2761 = vunpack.c.l.b16 %v527
      %v2762 = vunpack.c.h.b16 %v527
      %v2763 = vunpack.c.l.b16 %v528
      %v2764 = vunpack.c.h.b16 %v528
      %v2765 = vunpack.c.l.b16 %v529
      %v2766 = vunpack.c.h.b16 %v529
      %v2767 = vunpack.c.l.b16 %v530
      %v2768 = vunpack.c.h.b16 %v530
      %v2769 = vunpack.c.l.b16 %v531
      %v2770 = vunpack.c.h.b16 %v531
      %v2771 = vunpack.c.l.b16 %v532
      %v2772 = vunpack.c.h.b16 %v532
      %v2773 = vunpack.c.l.b16 %v533
      %v2774 = vunpack.c.h.b16 %v533
      %v2775 = vunpack.c.l.b16 %v534
      %v2776 = vunpack.c.h.b16 %v534
      %v2777 = vunpack.c.l.b16 %v535
      %v2778 = vunpack.c.h.b16 %v535
      %v2779 = vunpack.c.l.b16 %v536
      %v2780 = vunpack.c.h.b16 %v536
      %v2781 = vunpack.c.l.b16 %v537
      %v2782 = vunpack.c.h.b16 %v537
      %v2783 = vunpack.c.l.b16 %v538
      %v2784 = vunpack.c.h.b16 %v538
      %v2785 = vunpack.c.l.b16 %v539
      %v2786 = vunpack.c.h.b16 %v539
      %v2787 = vunpack.c.l.b16 %v540
      %v2788 = vunpack.c.h.b16 %v540
      %v2789 = vunpack.c.l.b16 %v541
      %v2790 = vunpack.c.h.b16 %v541
      %v2791 = vunpack.c.l.b16 %v542
      %v2792 = vunpack.c.h.b16 %v542
      %v2793 = vunpack.c.l.b16 %v543
      %v2794 = vunpack.c.h.b16 %v543
      %v2795 = vunpack.c.l.b16 %v544
      %v2796 = vunpack.c.h.b16 %v544
      %v2797 = vunpack.c.l.b16 %v545
      %v2798 = vunpack.c.h.b16 %v545
      %v2799 = vunpack.c.l.b16 %v546
      %v2800 = vunpack.c.h.b16 %v546
      %v2801 = vunpack.c.l.b16 %v547
      %v2802 = vunpack.c.h.b16 %v547
      %v2803 = vunpack.c.l.b16 %v548
      %v2804 = vunpack.c.h.b16 %v548
      %v2805 = vunpack.c.l.b16 %v549
      %v2806 = vunpack.c.h.b16 %v549
      %v2807 = vunpack.c.l.b16 %v550
      %v2808 = vunpack.c.h.b16 %v550
      %v2809 = vunpack.c.l.b16 %v551
      %v2810 = vunpack.c.h.b16 %v551
      %v2811 = vunpack.c.l.b16 %v552
      %v2812 = vunpack.c.h.b16 %v552
      %v2813 = vunpack.c.l.b16 %v553
      %v2814 = vunpack.c.h.b16 %v553
      %v2815 = vunpack.c.l.b16 %v554
      %v2816 = vunpack.c.h.b16 %v554
      %v2817 = vunpack.c.l.b16 %v555
      %v2818 = vunpack.c.h.b16 %v555
      %v2819 = vunpack.c.l.b16 %v556
      %v2820 = vunpack.c.h.b16 %v556
      %v2821 = vunpack.c.l.b16 %v557
      %v2822 = vunpack.c.h.b16 %v557
      %v2823 = vunpack.c.l.b16 %v558
      %v2824 = vunpack.c.h.b16 %v558
      %v2825 = vunpack.c.l.b16 %v559
      %v2826 = vunpack.c.h.b16 %v559
      %v2827 = vunpack.c.l.b16 %v560
      %v2828 = vunpack.c.h.b16 %v560
      %v2829 = vunpack.c.l.b16 %v561
      %v2830 = vunpack.c.h.b16 %v561
      %v2831 = vunpack.c.l.b16 %v562
      %v2832 = vunpack.c.h.b16 %v562
      %v2833 = vunpack.c.l.b16 %v563
      %v2834 = vunpack.c.h.b16 %v563
      %v2835 = vunpack.c.l.b16 %v564
      %v2836 = vunpack.c.h.b16 %v564
      %v2837 = vunpack.c.l.b16 %v565
      %v2838 = vunpack.c.h.b16 %v565
      %v2839 = vunpack.c.l.b16 %v566
      %v2840 = vunpack.c.h.b16 %v566
      %v2841 = vunpack.c.l.b16 %v567
      %v2842 = vunpack.c.h.b16 %v567
      %v2843 = vunpack.c.l.b16 %v568
      %v2844 = vunpack.c.h.b16 %v568
      %v2845 = vunpack.c.l.b16 %v569
      %v2846 = vunpack.c.h.b16 %v569
      %v2847 = vunpack.c.l.b16 %v570
      %v2848 = vunpack.c.h.b16 %v570
      %v2849 = vunpack.c.l.b16 %v571
      %v2850 = vunpack.c.h.b16 %v571
      %v2851 = vunpack.c.l.b16 %v572
      %v2852 = vunpack.c.h.b16 %v572
      %v2853 = vunpack.c.l.b16 %v573
      %v2854 = vunpack.c.h.b16 %v573
      %v2855 = vunpack.c.l.b16 %v574
      %v2856 = vunpack.c.h.b16 %v574
      %v2857 = vunpack.c.l.b16 %v575
      %v2858 = vunpack.c.h.b16 %v575
      %v2859 = vunpack.c.l.b16 %v576
      %v2860 = vunpack.c.h.b16 %v576
      %v2861 = vunpack.c.l.b16 %v577
      %v2862 = vunpack.c.h.b16 %v577
      %v2863 = vunpack.c.l.b16 %v578
      %v2864 = vunpack.c.h.b16 %v578
      %v2865 = vunpack.c.l.b16 %v579
      %v2866 = vunpack.c.h.b16 %v579
      %v2867 = vunpack.c.l.b16 %v580
      %v2868 = vunpack.c.h.b16 %v580
      %v2869 = vunpack.c.l.b16 %v581
      %v2870 = vunpack.c.h.b16 %v581
      %v2871 = vunpack.c.l.b16 %v582
      %v2872 = vunpack.c.h.b16 %v582
      %v2873 = vunpack.c.l.b16 %v583
      %v2874 = vunpack.c.h.b16 %v583
      %v2875 = vunpack.c.l.b16 %v584
      %v2876 = vunpack.c.h.b16 %v584
      %v2877 = vunpack.c.l.b16 %v585
      %v2878 = vunpack.c.h.b16 %v585
      %v2879 = vunpack.c.l.b16 %v586
      %v2880 = vunpack.c.h.b16 %v586
      %v2881 = vunpack.c.l.b16 %v587
      %v2882 = vunpack.c.h.b16 %v587
      %v2883 = vunpack.c.l.b16 %v588
      %v2884 = vunpack.c.h.b16 %v588
      %v2885 = vunpack.c.l.b16 %v589
      %v2886 = vunpack.c.h.b16 %v589
      %v2887 = vunpack.c.l.b16 %v590
      %v2888 = vunpack.c.h.b16 %v590
      %v2889 = vunpack.c.l.b16 %v591
      %v2890 = vunpack.c.h.b16 %v591
      %v2891 = vunpack.c.l.b16 %v592
      %v2892 = vunpack.c.h.b16 %v592
      %v2893 = vunpack.c.l.b16 %v593
      %v2894 = vunpack.c.h.b16 %v593
      %v2895 = vunpack.c.l.b16 %v594
      %v2896 = vunpack.c.h.b16 %v594
      %v2897 = vunpack.c.l.b16 %v595
      %v2898 = vunpack.c.h.b16 %v595
      %v2899 = vunpack.c.l.b16 %v596
      %v2900 = vunpack.c.h.b16 %v596
      %v2901 = vunpack.c.l.b16 %v597
      %v2902 = vunpack.c.h.b16 %v597
      %v2903 = vunpack.c.l.b16 %v598
      %v2904 = vunpack.c.h.b16 %v598
      %v2905 = vunpack.c.l.b16 %v599
      %v2906 = vunpack.c.h.b16 %v599
      %v2907 = vunpack.c.l.b16 %v600
      %v2908 = vunpack.c.h.b16 %v600
      %v2909 = vunpack.c.l.b16 %v601
      %v2910 = vunpack.c.h.b16 %v601
      %v2911 = vunpack.c.l.b16 %v602
      %v2912 = vunpack.c.h.b16 %v602
      %v2913 = vunpack.c.l.b16 %v603
      %v2914 = vunpack.c.h.b16 %v603
      %v2915 = vunpack.c.l.b16 %v604
      %v2916 = vunpack.c.h.b16 %v604
      %v2917 = vunpack.c.l.b16 %v605
      %v2918 = vunpack.c.h.b16 %v605
      %v2919 = vunpack.c.l.b16 %v606
      %v2920 = vunpack.c.h.b16 %v606
      %v2921 = vunpack.c.l.b16 %v607
      %v2922 = vunpack.c.h.b16 %v607
      %v2923 = vunpack.c.l.b16 %v608
      %v2924 = vunpack.c.h.b16 %v608
      %v2925 = vunpack.c.l.b16 %v609
      %v2926 = vunpack.c.h.b16 %v609
      %v2927 = vunpack.c.l.b16 %v610
      %v2928 = vunpack.c.h.b16 %v610
      %v2929 = vunpack.c.l.b16 %v611
      %v2930 = vunpack.c.h.b16 %v611
      %v2931 = vunpack.c.l.b16 %v612
      %v2932 = vunpack.c.h.b16 %v612
      %v2933 = vunpack.c.l.b16 %v613
      %v2934 = vunpack.c.h.b16 %v613
      %v2935 = vunpack.c.l.b16 %v614
      %v2936 = vunpack.c.h.b16 %v614
      %v2937 = vunpack.c.l.b16 %v615
      %v2938 = vunpack.c.h.b16 %v615
      %v2939 = vunpack.c.l.b16 %v616
      %v2940 = vunpack.c.h.b16 %v616
      %v2941 = vunpack.c.l.b16 %v617
      %v2942 = vunpack.c.h.b16 %v617
      %v2943 = vunpack.c.l.b16 %v618
      %v2944 = vunpack.c.h.b16 %v618
      %v2945 = vunpack.c.l.b16 %v619
      %v2946 = vunpack.c.h.b16 %v619
      %v2947 = vunpack.c.l.b16 %v620
      %v2948 = vunpack.c.h.b16 %v620
      %v2949 = vunpack.c.l.b16 %v621
      %v2950 = vunpack.c.h.b16 %v621
      %v2951 = vunpack.c.l.b16 %v622
      %v2952 = vunpack.c.h.b16 %v622
      %v2953 = vunpack.c.l.b16 %v623
      %v2954 = vunpack.c.h.b16 %v623
      %v2955 = vunpack.c.l.b16 %v624
      %v2956 = vunpack.c.h.b16 %v624
      %v2957 = vunpack.c.l.b16 %v625
      %v2958 = vunpack.c.h.b16 %v625
      %v2959 = vunpack.c.l.b16 %v626
      %v2960 = vunpack.c.h.b16 %v626
      %v2961 = vunpack.c.l.b16 %v627
      %v2962 = vunpack.c.h.b16 %v627
      %v2963 = vunpack.c.l.b16 %v628
      %v2964 = vunpack.c.h.b16 %v628
      %v2965 = vunpack.c.l.b16 %v629
      %v2966 = vunpack.c.h.b16 %v629
      %v2967 = vunpack.c.l.b16 %v630
      %v2968 = vunpack.c.h.b16 %v630
      %v2969 = vunpack.c.l.b16 %v631
      %v2970 = vunpack.c.h.b16 %v631
      %v2971 = vunpack.c.l.b16 %v632
      %v2972 = vunpack.c.h.b16 %v632
      %v2973 = vunpack.c.l.b16 %v633
      %v2974 = vunpack.c.h.b16 %v633
      %v2975 = vunpack.c.l.b16 %v634
      %v2976 = vunpack.c.h.b16 %v634
      %v2977 = vunpack.c.l.b16 %v635
      %v2978 = vunpack.c.h.b16 %v635
      %v2979 = vunpack.c.l.b16 %v636
      %v2980 = vunpack.c.h.b16 %v636
      %v2981 = vunpack.c.l.b16 %v637
      %v2982 = vunpack.c.h.b16 %v637
      %v2983 = vunpack.c.l.b16 %v638
      %v2984 = vunpack.c.h.b16 %v638
      %v2985 = vunpack.c.l.b16 %v639
      %v2986 = vunpack.c.h.b16 %v639
      %v2987 = vunpack.c.l.b16 %v640
      %v2988 = vunpack.c.h.b16 %v640
      %v2989 = vunpack.c.l.b16 %v641
      %v2990 = vunpack.c.h.b16 %v641
      %v2991 = vunpack.c.l.b16 %v642
      %v2992 = vunpack.c.h.b16 %v642
      %v2993 = vunpack.c.l.b16 %v643
      %v2994 = vunpack.c.h.b16 %v643
      %v2995 = vunpack.c.l.b16 %v644
      %v2996 = vunpack.c.h.b16 %v644
      %v2997 = vunpack.c.l.b16 %v645
      %v2998 = vunpack.c.h.b16 %v645
      %v2999 = vunpack.c.l.b16 %v646
      %v3000 = vunpack.c.h.b16 %v646
      %v3001 = vunpack.c.l.b16 %v647
      %v3002 = vunpack.c.h.b16 %v647
      %v3003 = vunpack.c.l.b16 %v648
      %v3004 = vunpack.c.h.b16 %v648
      %v3005 = vunpack.c.l.b16 %v649
      %v3006 = vunpack.c.h.b16 %v649
      %v3007 = vunpack.c.l.b16 %v650
      %v3008 = vunpack.c.h.b16 %v650
      %v3009 = vunpack.c.l.b16 %v651
      %v3010 = vunpack.c.h.b16 %v651
      %v3011 = vunpack.c.l.b16 %v652
      %v3012 = vunpack.c.h.b16 %v652
      %v3013 = vunpack.c.l.b16 %v653
      %v3014 = vunpack.c.h.b16 %v653
      %v3015 = vunpack.c.l.b16 %v654
      %v3016 = vunpack.c.h.b16 %v654
      %v3017 = vunpack.c.l.b16 %v655
      %v3018 = vunpack.c.h.b16 %v655
      %v3019 = vunpack.c.l.b16 %v656
      %v3020 = vunpack.c.h.b16 %v656
      %v3021 = vunpack.c.l.b16 %v657
      %v3022 = vunpack.c.h.b16 %v657
      %v3023 = vunpack.c.l.b16 %v658
      %v3024 = vunpack.c.h.b16 %v658
      %v3025 = vunpack.c.l.b16 %v659
      %v3026 = vunpack.c.h.b16 %v659
      %v3027 = vunpack.c.l.b16 %v660
      %v3028 = vunpack.c.h.b16 %v660
      %v3029 = vunpack.c.l.b16 %v661
      %v3030 = vunpack.c.h.b16 %v661
      %v3031 = vunpack.c.l.b16 %v662
      %v3032 = vunpack.c.h.b16 %v662
      %v3033 = vunpack.c.l.b16 %v663
      %v3034 = vunpack.c.h.b16 %v663
      %v3035 = vunpack.c.l.b16 %v664
      %v3036 = vunpack.c.h.b16 %v664
      %v3037 = vunpack.c.l.b16 %v665
      %v3038 = vunpack.c.h.b16 %v665
      %v3039 = vunpack.c.l.b16 %v666
      %v3040 = vunpack.c.h.b16 %v666
      %v3041 = vunpack.c.l.b16 %v667
      %v3042 = vunpack.c.h.b16 %v667
      %v3043 = vunpack.c.l.b16 %v668
      %v3044 = vunpack.c.h.b16 %v668
      %v3045 = vunpack.c.l.b16 %v669
      %v3046 = vunpack.c.h.b16 %v669
      %v3047 = vunpack.c.l.b16 %v670
      %v3048 = vunpack.c.h.b16 %v670
      %v3049 = vunpack.c.l.b16 %v671
      %v3050 = vunpack.c.h.b16 %v671
      %v3051 = vunpack.c.l.b16 %v672
      %v3052 = vunpack.c.h.b16 %v672
      %v3053 = vunpack.c.l.b16 %v673
      %v3054 = vunpack.c.h.b16 %v673
      %v3055 = vunpack.c.l.b16 %v674
      %v3056 = vunpack.c.h.b16 %v674
      %v3057 = vunpack.c.l.b16 %v675
      %v3058 = vunpack.c.h.b16 %v675
      %v3059 = vunpack.c.l.b16 %v676
      %v3060 = vunpack.c.h.b16 %v676
      %v3061 = vunpack.c.l.b16 %v677
      %v3062 = vunpack.c.h.b16 %v677
      %v3063 = vunpack.c.l.b16 %v678
      %v3064 = vunpack.c.h.b16 %v678
      %v3065 = vunpack.c.l.b16 %v679
      %v3066 = vunpack.c.h.b16 %v679
      %v3067 = vunpack.c.l.b16 %v680
      %v3068 = vunpack.c.h.b16 %v680
      %v3069 = vunpack.c.l.b16 %v681
      %v3070 = vunpack.c.h.b16 %v681
      %v3071 = vunpack.c.l.b16 %v682
      %v3072 = vunpack.c.h.b16 %v682
      %v3073 = vunpack.c.l.b16 %v683
      %v3074 = vunpack.c.h.b16 %v683
      %v3075 = vunpack.c.l.b16 %v684
      %v3076 = vunpack.c.h.b16 %v684
      %v3077 = vunpack.c.l.b16 %v685
      %v3078 = vunpack.c.h.b16 %v685
      %v3079 = vunpack.c.l.b16 %v686
      %v3080 = vunpack.c.h.b16 %v686
      %v3081 = vunpack.c.l.b16 %v687
      %v3082 = vunpack.c.h.b16 %v687
      %v3083 = vunpack.c.l.b16 %v688
      %v3084 = vunpack.c.h.b16 %v688
      %v3085 = vunpack.c.l.b16 %v689
      %v3086 = vunpack.c.h.b16 %v689
      %v3087 = vunpack.c.l.b16 %v690
      %v3088 = vunpack.c.h.b16 %v690
      %v3089 = vunpack.c.l.b16 %v691
      %v3090 = vunpack.c.h.b16 %v691
      %v3091 = vunpack.c.l.b16 %v692
      %v3092 = vunpack.c.h.b16 %v692
      %v3093 = vunpack.c.l.b16 %v693
      %v3094 = vunpack.c.h.b16 %v693
      %v3095 = vunpack.c.l.b16 %v694
      %v3096 = vunpack.c.h.b16 %v694
      %v3097 = vunpack.c.l.b16 %v695
      %v3098 = vunpack.c.h.b16 %v695
      %v3099 = vunpack.c.l.b16 %v696
      %v3100 = vunpack.c.h.b16 %v696
      %v3101 = vunpack.c.l.b16 %v697
      %v3102 = vunpack.c.h.b16 %v697
      %v3103 = vunpack.c.l.b16 %v698
      %v3104 = vunpack.c.h.b16 %v698
      %v3105 = vunpack.c.l.b16 %v699
      %v3106 = vunpack.c.h.b16 %v699
      %v3107 = vunpack.c.l.b16 %v700
      %v3108 = vunpack.c.h.b16 %v700
      %v3109 = vunpack.c.l.b16 %v701
      %v3110 = vunpack.c.h.b16 %v701
      %v3111 = vunpack.c.l.b16 %v702
      %v3112 = vunpack.c.h.b16 %v702
      %v3113 = vunpack.c.l.b16 %v703
      %v3114 = vunpack.c.h.b16 %v703
      %v3115 = vunpack.c.l.b16 %v704
      %v3116 = vunpack.c.h.b16 %v704
      %v3117 = vunpack.c.l.b16 %v705
      %v3118 = vunpack.c.h.b16 %v705
      %v3119 = vunpack.c.l.b16 %v706
      %v3120 = vunpack.c.h.b16 %v706
      %v3121 = vunpack.c.l.b16 %v707
      %v3122 = vunpack.c.h.b16 %v707
      %v3123 = vunpack.c.l.b16 %v708
      %v3124 = vunpack.c.h.b16 %v708
      %v3125 = vunpack.c.l.b16 %v709
      %v3126 = vunpack.c.h.b16 %v709
      %v3127 = vunpack.c.l.b16 %v710
      %v3128 = vunpack.c.h.b16 %v710
      %v3129 = vunpack.c.l.b16 %v711
      %v3130 = vunpack.c.h.b16 %v711
      %v3131 = vunpack.c.l.b16 %v712
      %v3132 = vunpack.c.h.b16 %v712
      %v3133 = vunpack.c.l.b16 %v713
      %v3134 = vunpack.c.h.b16 %v713
      %v3135 = vunpack.c.l.b16 %v714
      %v3136 = vunpack.c.h.b16 %v714
      %v3137 = vunpack.c.l.b16 %v715
      %v3138 = vunpack.c.h.b16 %v715
      %v3139 = vunpack.c.l.b16 %v716
      %v3140 = vunpack.c.h.b16 %v716
      %v3141 = vunpack.c.l.b16 %v717
      %v3142 = vunpack.c.h.b16 %v717
      %v3143 = vunpack.c.l.b16 %v718
      %v3144 = vunpack.c.h.b16 %v718
      %v3145 = vunpack.c.l.b16 %v719
      %v3146 = vunpack.c.h.b16 %v719
      %v3147 = vunpack.c.l.b16 %v720
      %v3148 = vunpack.c.h.b16 %v720
      %v3149 = vunpack.c.l.b16 %v721
      %v3150 = vunpack.c.h.b16 %v721
      %v3151 = vunpack.c.l.b16 %v722
      %v3152 = vunpack.c.h.b16 %v722
      %v3153 = vunpack.c.l.b16 %v723
      %v3154 = vunpack.c.h.b16 %v723
      %v3155 = vunpack.c.l.b16 %v724
      %v3156 = vunpack.c.h.b16 %v724
      %v3157 = vunpack.c.l.b16 %v725
      %v3158 = vunpack.c.h.b16 %v725
      %v3159 = vunpack.c.l.b16 %v726
      %v3160 = vunpack.c.h.b16 %v726
      %v3161 = vunpack.c.l.b16 %v727
      %v3162 = vunpack.c.h.b16 %v727
      %v3163 = vunpack.c.l.b16 %v728
      %v3164 = vunpack.c.h.b16 %v728
      %v3165 = vunpack.c.l.b16 %v729
      %v3166 = vunpack.c.h.b16 %v729
      %v3167 = vunpack.c.l.b16 %v730
      %v3168 = vunpack.c.h.b16 %v730
      %v3169 = vunpack.c.l.b16 %v731
      %v3170 = vunpack.c.h.b16 %v731
      %v3171 = vunpack.c.l.b16 %v732
      %v3172 = vunpack.c.h.b16 %v732
      %v3173 = vunpack.c.l.b16 %v733
      %v3174 = vunpack.c.h.b16 %v733
      %v3175 = vunpack.c.l.b16 %v734
      %v3176 = vunpack.c.h.b16 %v734
      %v3177 = vunpack.c.l.b16 %v735
      %v3178 = vunpack.c.h.b16 %v735
      %v3179 = vunpack.c.l.b16 %v736
      %v3180 = vunpack.c.h.b16 %v736
      %v3181 = vunpack.c.l.b16 %v737
      %v3182 = vunpack.c.h.b16 %v737
      %v3183 = vunpack.c.l.b16 %v738
      %v3184 = vunpack.c.h.b16 %v738
      %v3185 = vunpack.c.l.b16 %v739
      %v3186 = vunpack.c.h.b16 %v739
      %v3187 = vunpack.c.l.b16 %v740
      %v3188 = vunpack.c.h.b16 %v740
      %v3189 = vunpack.c.l.b16 %v741
      %v3190 = vunpack.c.h.b16 %v741
      %v3191 = vunpack.c.l.b16 %v742
      %v3192 = vunpack.c.h.b16 %v742
      %v3193 = vunpack.c.l.b16 %v743
      %v3194 = vunpack.c.h.b16 %v743
      %v3195 = vunpack.c.l.b16 %v744
      %v3196 = vunpack.c.h.b16 %v744
      %v3197 = vunpack.c.l.b16 %v745
      %v3198 = vunpack.c.h.b16 %v745
      %v3199 = vunpack.c.l.b16 %v746
      %v3200 = vunpack.c.h.b16 %v746
      %v3201 = vunpack.c.l.b16 %v747
      %v3202 = vunpack.c.h.b16 %v747
      %v3203 = vunpack.c.l.b16 %v748
      %v3204 = vunpack.c.h.b16 %v748
      %v3205 = vunpack.c.l.b16 %v749
      %v3206 = vunpack.c.h.b16 %v749
      %v3207 = vunpack.c.l.b16 %v750
      %v3208 = vunpack.c.h.b16 %v750
      %v3209 = vunpack.c.l.b16 %v751
      %v3210 = vunpack.c.h.b16 %v751
      %v3211 = vunpack.c.l.b16 %v752
      %v3212 = vunpack.c.h.b16 %v752
      %v3213 = vunpack.c.l.b16 %v753
      %v3214 = vunpack.c.h.b16 %v753
      %v3215 = vunpack.c.l.b16 %v754
      %v3216 = vunpack.c.h.b16 %v754
      %v3217 = vunpack.c.l.b16 %v755
      %v3218 = vunpack.c.h.b16 %v755
      %v3219 = vunpack.c.l.b16 %v756
      %v3220 = vunpack.c.h.b16 %v756
      %v3221 = vunpack.c.l.b16 %v757
      %v3222 = vunpack.c.h.b16 %v757
      %v3223 = vunpack.c.l.b16 %v758
      %v3224 = vunpack.c.h.b16 %v758
      %v3225 = vunpack.c.l.b16 %v759
      %v3226 = vunpack.c.h.b16 %v759
      %v3227 = vunpack.c.l.b16 %v760
      %v3228 = vunpack.c.h.b16 %v760
      %v3229 = vunpack.c.l.b16 %v761
      %v3230 = vunpack.c.h.b16 %v761
      %v3231 = vunpack.c.l.b16 %v762
      %v3232 = vunpack.c.h.b16 %v762
      %v3233 = vunpack.c.l.b16 %v763
      %v3234 = vunpack.c.h.b16 %v763
      %v3235 = vunpack.c.l.b16 %v764
      %v3236 = vunpack.c.h.b16 %v764
      %v3237 = vunpack.c.l.b16 %v765
      %v3238 = vunpack.c.h.b16 %v765
      %v3239 = vunpack.c.l.b16 %v766
      %v3240 = vunpack.c.h.b16 %v766
      %v3241 = vunpack.c.l.b16 %v767
      %v3242 = vunpack.c.h.b16 %v767
      %v3243 = vunpack.c.l.b16 %v768
      %v3244 = vunpack.c.h.b16 %v768
      %v3245 = vunpack.c.l.b16 %v769
      %v3246 = vunpack.c.h.b16 %v769
      %v3247 = vunpack.c.l.b16 %v770
      %v3248 = vunpack.c.h.b16 %v770
      %v3249 = vunpack.c.l.b16 %v771
      %v3250 = vunpack.c.h.b16 %v771
      %v3251 = vunpack.c.l.b16 %v772
      %v3252 = vunpack.c.h.b16 %v772
      %v3253 = vunpack.c.l.b16 %v773
      %v3254 = vunpack.c.h.b16 %v773
      %v3255 = vunpack.c.l.b16 %v774
      %v3256 = vunpack.c.h.b16 %v774
      %v3257 = vunpack.c.l.b16 %v775
      %v3258 = vunpack.c.h.b16 %v775
      %v3259 = vunpack.c.l.b16 %v776
      %v3260 = vunpack.c.h.b16 %v776
      %v3261 = vunpack.c.l.b16 %v777
      %v3262 = vunpack.c.h.b16 %v777
      %v3263 = vunpack.c.l.b16 %v778
      %v3264 = vunpack.c.h.b16 %v778
      %v3265 = vunpack.c.l.b16 %v779
      %v3266 = vunpack.c.h.b16 %v779
      %v3267 = vunpack.c.l.b16 %v780
      %v3268 = vunpack.c.h.b16 %v780
      %v3269 = vunpack.c.l.b16 %v781
      %v3270 = vunpack.c.h.b16 %v781
      %v3271 = vunpack.c.l.b16 %v782
      %v3272 = vunpack.c.h.b16 %v782
      %v3273 = vunpack.c.l.b16 %v783
      %v3274 = vunpack.c.h.b16 %v783
      %v3275 = vunpack.c.l.b16 %v784
      %v3276 = vunpack.c.h.b16 %v784
      %v3277 = vunpack.c.l.b16 %v785
      %v3278 = vunpack.c.h.b16 %v785
      %v3279 = vunpack.c.l.b16 %v786
      %v3280 = vunpack.c.h.b16 %v786
      %v3281 = vunpack.c.l.b16 %v787
      %v3282 = vunpack.c.h.b16 %v787
      %v3283 = vunpack.c.l.b16 %v788
      %v3284 = vunpack.c.h.b16 %v788
      %v3285 = vunpack.c.l.b16 %v789
      %v3286 = vunpack.c.h.b16 %v789
      %v3287 = vunpack.c.l.b16 %v790
      %v3288 = vunpack.c.h.b16 %v790
      %v3289 = vunpack.c.l.b16 %v791
      %v3290 = vunpack.c.h.b16 %v791
      %v3291 = vunpack.c.l.b16 %v792
      %v3292 = vunpack.c.h.b16 %v792
      %v3293 = vunpack.c.l.b16 %v793
      %v3294 = vunpack.c.h.b16 %v793
      %v3295 = vunpack.c.l.b16 %v794
      %v3296 = vunpack.c.h.b16 %v794
      %v3297 = vunpack.c.l.b16 %v795
      %v3298 = vunpack.c.h.b16 %v795
      %v3299 = vunpack.c.l.b16 %v796
      %v3300 = vunpack.c.h.b16 %v796
      %v3301 = vunpack.c.l.b16 %v797
      %v3302 = vunpack.c.h.b16 %v797
      %v3303 = vunpack.c.l.b16 %v798
      %v3304 = vunpack.c.h.b16 %v798
      %v3305 = vunpack.c.l.b16 %v799
      %v3306 = vunpack.c.h.b16 %v799
      %v3307 = vunpack.c.l.b16 %v800
      %v3308 = vunpack.c.h.b16 %v800
      %v3309 = vunpack.c.l.b16 %v801
      %v3310 = vunpack.c.h.b16 %v801
      %v3311 = vunpack.c.l.b16 %v802
      %v3312 = vunpack.c.h.b16 %v802
      %v3313 = vunpack.c.l.b16 %v803
      %v3314 = vunpack.c.h.b16 %v803
      %v3315 = vunpack.c.l.b16 %v804
      %v3316 = vunpack.c.h.b16 %v804
      %v3317 = vunpack.c.l.b16 %v805
      %v3318 = vunpack.c.h.b16 %v805
      %v3319 = vunpack.c.l.b16 %v806
      %v3320 = vunpack.c.h.b16 %v806
      %v3321 = vunpack.c.l.b16 %v807
      %v3322 = vunpack.c.h.b16 %v807
      %v3323 = vunpack.c.l.b16 %v808
      %v3324 = vunpack.c.h.b16 %v808
      %v3325 = vunpack.c.l.b16 %v809
      %v3326 = vunpack.c.h.b16 %v809
      %v3327 = vunpack.c.l.b16 %v810
      %v3328 = vunpack.c.h.b16 %v810
      %v3329 = vunpack.c.l.b16 %v811
      %v3330 = vunpack.c.h.b16 %v811
      %v3331 = vunpack.c.l.b16 %v812
      %v3332 = vunpack.c.h.b16 %v812
      %v3333 = vunpack.c.l.b16 %v813
      %v3334 = vunpack.c.h.b16 %v813
      %v3335 = vunpack.c.l.b16 %v814
      %v3336 = vunpack.c.h.b16 %v814
      %v3337 = vunpack.c.l.b16 %v815
      %v3338 = vunpack.c.h.b16 %v815
      %v3339 = vunpack.c.l.b16 %v816
      %v3340 = vunpack.c.h.b16 %v816
      %v3341 = vunpack.c.l.b16 %v817
      %v3342 = vunpack.c.h.b16 %v817
      %v3343 = vunpack.c.l.b16 %v818
      %v3344 = vunpack.c.h.b16 %v818
      %v3345 = vunpack.c.l.b16 %v819
      %v3346 = vunpack.c.h.b16 %v819
      %v3347 = vunpack.c.l.b16 %v820
      %v3348 = vunpack.c.h.b16 %v820
      %v3349 = vunpack.c.l.b16 %v821
      %v3350 = vunpack.c.h.b16 %v821
      %v3351 = vunpack.c.l.b16 %v822
      %v3352 = vunpack.c.h.b16 %v822
      %v3353 = vunpack.c.l.b16 %v823
      %v3354 = vunpack.c.h.b16 %v823
      %v3355 = vunpack.c.l.b16 %v824
      %v3356 = vunpack.c.h.b16 %v824
      %v3357 = vunpack.c.l.b16 %v825
      %v3358 = vunpack.c.h.b16 %v825
      %v3359 = vunpack.c.l.b16 %v826
      %v3360 = vunpack.c.h.b16 %v826
      %v3361 = vunpack.c.l.b16 %v827
      %v3362 = vunpack.c.h.b16 %v827
      %v3363 = vunpack.c.l.b16 %v828
      %v3364 = vunpack.c.h.b16 %v828
      %v3365 = vunpack.c.l.b16 %v829
      %v3366 = vunpack.c.h.b16 %v829
      %v3367 = vunpack.c.l.b16 %v830
      %v3368 = vunpack.c.h.b16 %v830
      %v3369 = vunpack.c.l.b16 %v831
      %v3370 = vunpack.c.h.b16 %v831
      %v3371 = vunpack.c.l.b16 %v832
      %v3372 = vunpack.c.h.b16 %v832
      %v3373 = vunpack.c.l.b16 %v833
      %v3374 = vunpack.c.h.b16 %v833
      %v3375 = vunpack.c.l.b16 %v834
      %v3376 = vunpack.c.h.b16 %v834
      %v3377 = vunpack.c.l.b16 %v835
      %v3378 = vunpack.c.h.b16 %v835
      %v3379 = vunpack.c.l.b16 %v836
      %v3380 = vunpack.c.h.b16 %v836
      %v3381 = vunpack.c.l.b16 %v837
      %v3382 = vunpack.c.h.b16 %v837
      %v3383 = vunpack.c.l.b16 %v838
      %v3384 = vunpack.c.h.b16 %v838
      %v3385 = vunpack.c.l.b16 %v839
      %v3386 = vunpack.c.h.b16 %v839
      %v3387 = vunpack.c.l.b16 %v840
      %v3388 = vunpack.c.h.b16 %v840
      %v3389 = vunpack.c.l.b16 %v841
      %v3390 = vunpack.c.h.b16 %v841
      %v3391 = vunpack.c.l.b16 %v842
      %v3392 = vunpack.c.h.b16 %v842
      %v3393 = vunpack.c.l.b16 %v843
      %v3394 = vunpack.c.h.b16 %v843
      %v3395 = vunpack.c.l.b16 %v844
      %v3396 = vunpack.c.h.b16 %v844
      %v3397 = vunpack.c.l.b16 %v845
      %v3398 = vunpack.c.h.b16 %v845
      %v3399 = vunpack.c.l.b16 %v846
      %v3400 = vunpack.c.h.b16 %v846
      %v3401 = vunpack.c.l.b16 %v847
      %v3402 = vunpack.c.h.b16 %v847
      %v3403 = vunpack.c.l.b16 %v848
      %v3404 = vunpack.c.h.b16 %v848
      %v3405 = vunpack.c.l.b16 %v849
      %v3406 = vunpack.c.h.b16 %v849
      %v3407 = vunpack.c.l.b16 %v850
      %v3408 = vunpack.c.h.b16 %v850
      %v3409 = vunpack.c.l.b16 %v851
      %v3410 = vunpack.c.h.b16 %v851
      %v3411 = vunpack.c.l.b16 %v852
      %v3412 = vunpack.c.h.b16 %v852
      %v3413 = vunpack.c.l.b16 %v853
      %v3414 = vunpack.c.h.b16 %v853
      %v3415 = vunpack.c.l.b16 %v854
      %v3416 = vunpack.c.h.b16 %v854
      %v3417 = vunpack.c.l.b16 %v855
      %v3418 = vunpack.c.h.b16 %v855
      %v3419 = vunpack.c.l.b16 %v856
      %v3420 = vunpack.c.h.b16 %v856
      %v3421 = vunpack.c.l.b16 %v857
      %v3422 = vunpack.c.h.b16 %v857
      %v3423 = vunpack.c.l.b16 %v858
      %v3424 = vunpack.c.h.b16 %v858
      %v3425 = vunpack.c.l.b16 %v859
      %v3426 = vunpack.c.h.b16 %v859
      %v3427 = vunpack.c.l.b16 %v860
      %v3428 = vunpack.c.h.b16 %v860
      %v3429 = vunpack.c.l.b16 %v861
      %v3430 = vunpack.c.h.b16 %v861
      %v3431 = vunpack.c.l.b16 %v862
      %v3432 = vunpack.c.h.b16 %v862
      %v3433 = vunpack.c.l.b16 %v863
      %v3434 = vunpack.c.h.b16 %v863
      %v3435 = vunpack.c.l.b16 %v864
      %v3436 = vunpack.c.h.b16 %v864
      %v3437 = vunpack.c.l.b16 %v865
      %v3438 = vunpack.c.h.b16 %v865
      %v3439 = vunpack.c.l.b16 %v866
      %v3440 = vunpack.c.h.b16 %v866
      %v3441 = vunpack.c.l.b16 %v867
      %v3442 = vunpack.c.h.b16 %v867
      %v3443 = vunpack.c.l.b16 %v868
      %v3444 = vunpack.c.h.b16 %v868
      %v3445 = vunpack.c.l.b16 %v869
      %v3446 = vunpack.c.h.b16 %v869
      %v3447 = vunpack.c.l.b16 %v870
      %v3448 = vunpack.c.h.b16 %v870
      %v3449 = vunpack.c.l.b16 %v871
      %v3450 = vunpack.c.h.b16 %v871
      %v3451 = vunpack.c.l.b16 %v872
      %v3452 = vunpack.c.h.b16 %v872
      %v3453 = vunpack.c.l.b16 %v873
      %v3454 = vunpack.c.h.b16 %v873
      %v3455 = vunpack.c.l.b16 %v874
      %v3456 = vunpack.c.h.b16 %v874
      %v3457 = vunpack.c.l.b16 %v875
      %v3458 = vunpack.c.h.b16 %v875
      %v3459 = vunpack.c.l.b16 %v876
      %v3460 = vunpack.c.h.b16 %v876
      %v3461 = vunpack.c.l.b16 %v877
      %v3462 = vunpack.c.h.b16 %v877
      %v3463 = vunpack.c.l.b16 %v878
      %v3464 = vunpack.c.h.b16 %v878
      %v3465 = vunpack.c.l.b16 %v879
      %v3466 = vunpack.c.h.b16 %v879
      %v3467 = vunpack.c.l.b16 %v880
      %v3468 = vunpack.c.h.b16 %v880
      %v3469 = vunpack.c.l.b16 %v881
      %v3470 = vunpack.c.h.b16 %v881
      %v3471 = vunpack.c.l.b16 %v882
      %v3472 = vunpack.c.h.b16 %v882
      %v3473 = vunpack.c.l.b16 %v883
      %v3474 = vunpack.c.h.b16 %v883
      %v3475 = vunpack.c.l.b16 %v884
      %v3476 = vunpack.c.h.b16 %v884
      %v3477 = vunpack.c.l.b16 %v885
      %v3478 = vunpack.c.h.b16 %v885
      %v3479 = vunpack.c.l.b16 %v886
      %v3480 = vunpack.c.h.b16 %v886
      %v3481 = vunpack.c.l.b16 %v887
      %v3482 = vunpack.c.h.b16 %v887
      %v3483 = vunpack.c.l.b16 %v888
      %v3484 = vunpack.c.h.b16 %v888
      %v3485 = vunpack.c.l.b16 %v889
      %v3486 = vunpack.c.h.b16 %v889
      %v3487 = vunpack.c.l.b16 %v890
      %v3488 = vunpack.c.h.b16 %v890
      %v3489 = vunpack.c.l.b16 %v891
      %v3490 = vunpack.c.h.b16 %v891
      %v3491 = vunpack.c.l.b16 %v892
      %v3492 = vunpack.c.h.b16 %v892
      %v3493 = vunpack.c.l.b16 %v893
      %v3494 = vunpack.c.h.b16 %v893
      %v3495 = vunpack.c.l.b16 %v894
      %v3496 = vunpack.c.h.b16 %v894
      %v3497 = vunpack.c.l.b16 %v895
      %v3498 = vunpack.c.h.b16 %v895
      %v3499 = vunpack.c.l.b16 %v896
      %v3500 = vunpack.c.h.b16 %v896
      %v3501 = vunpack.c.l.b16 %v897
      %v3502 = vunpack.c.h.b16 %v897
      %v3503 = vunpack.c.l.b16 %v898
      %v3504 = vunpack.c.h.b16 %v898
      %v3505 = vunpack.c.l.b16 %v899
      %v3506 = vunpack.c.h.b16 %v899
      %v3507 = vunpack.c.l.b16 %v900
      %v3508 = vunpack.c.h.b16 %v900
      %v3509 = vunpack.c.l.b16 %v901
      %v3510 = vunpack.c.h.b16 %v901
      %v3511 = vunpack.c.l.b16 %v902
      %v3512 = vunpack.c.h.b16 %v902
      %v3513 = vunpack.c.l.b16 %v903
      %v3514 = vunpack.c.h.b16 %v903
      %v3515 = vunpack.c.l.b16 %v904
      %v3516 = vunpack.c.h.b16 %v904
      %v3517 = vunpack.c.l.b16 %v905
      %v3518 = vunpack.c.h.b16 %v905
      %v3519 = vunpack.c.l.b16 %v906
      %v3520 = vunpack.c.h.b16 %v906
      %v3521 = vunpack.c.l.b16 %v907
      %v3522 = vunpack.c.h.b16 %v907
      %v3523 = vunpack.c.l.b16 %v908
      %v3524 = vunpack.c.h.b16 %v908
      %v3525 = vunpack.c.l.b16 %v909
      %v3526 = vunpack.c.h.b16 %v909
      %v3527 = vunpack.c.l.b16 %v910
      %v3528 = vunpack.c.h.b16 %v910
      %v3529 = vunpack.c.l.b16 %v911
      %v3530 = vunpack.c.h.b16 %v911
      %v3531 = vunpack.c.l.b16 %v912
      %v3532 = vunpack.c.h.b16 %v912
      %v3533 = vunpack.c.l.b16 %v913
      %v3534 = vunpack.c.h.b16 %v913
      %v3535 = vunpack.c.l.b16 %v914
      %v3536 = vunpack.c.h.b16 %v914
      %v3537 = vunpack.c.l.b16 %v915
      %v3538 = vunpack.c.h.b16 %v915
      %v3539 = vunpack.c.l.b16 %v916
      %v3540 = vunpack.c.h.b16 %v916
      %v3541 = vunpack.c.l.b16 %v917
      %v3542 = vunpack.c.h.b16 %v917
      %v3543 = vunpack.c.l.b16 %v918
      %v3544 = vunpack.c.h.b16 %v918
      %v3545 = vunpack.c.l.b16 %v919
      %v3546 = vunpack.c.h.b16 %v919
      %v3547 = vunpack.c.l.b16 %v920
      %v3548 = vunpack.c.h.b16 %v920
      %v3549 = vunpack.c.l.b16 %v921
      %v3550 = vunpack.c.h.b16 %v921
      %v3551 = vunpack.c.l.b16 %v922
      %v3552 = vunpack.c.h.b16 %v922
      %v3553 = vunpack.c.l.b16 %v923
      %v3554 = vunpack.c.h.b16 %v923
      %v3555 = vunpack.c.l.b16 %v924
      %v3556 = vunpack.c.h.b16 %v924
      %v3557 = vunpack.c.l.b16 %v925
      %v3558 = vunpack.c.h.b16 %v925
      %v3559 = vunpack.c.l.b16 %v926
      %v3560 = vunpack.c.h.b16 %v926
      %v3561 = vunpack.c.l.b16 %v927
      %v3562 = vunpack.c.h.b16 %v927
      %v3563 = vunpack.c.l.b16 %v928
      %v3564 = vunpack.c.h.b16 %v928
      %v3565 = vunpack.c.l.b16 %v929
      %v3566 = vunpack.c.h.b16 %v929
      %v3567 = vunpack.c.l.b16 %v930
      %v3568 = vunpack.c.h.b16 %v930
      %v3569 = vunpack.c.l.b16 %v931
      %v3570 = vunpack.c.h.b16 %v931
      %v3571 = vunpack.c.l.b16 %v932
      %v3572 = vunpack.c.h.b16 %v932
      %v3573 = vunpack.c.l.b16 %v933
      %v3574 = vunpack.c.h.b16 %v933
      %v3575 = vunpack.c.l.b16 %v934
      %v3576 = vunpack.c.h.b16 %v934
      %v3577 = vunpack.c.l.b16 %v935
      %v3578 = vunpack.c.h.b16 %v935
      %v3579 = vunpack.c.l.b16 %v936
      %v3580 = vunpack.c.h.b16 %v936
      %v3581 = vunpack.c.l.b16 %v937
      %v3582 = vunpack.c.h.b16 %v937
      %v3583 = vunpack.c.l.b16 %v938
      %v3584 = vunpack.c.h.b16 %v938
      %v3585 = vunpack.c.l.b16 %v939
      %v3586 = vunpack.c.h.b16 %v939
      %v3587 = vunpack.c.l.b16 %v940
      %v3588 = vunpack.c.h.b16 %v940
      %v3589 = vunpack.c.l.b16 %v941
      %v3590 = vunpack.c.h.b16 %v941
      %v3591 = vunpack.c.l.b16 %v942
      %v3592 = vunpack.c.h.b16 %v942
      %v3593 = vunpack.c.l.b16 %v943
      %v3594 = vunpack.c.h.b16 %v943
      %v3595 = vunpack.c.l.b16 %v944
      %v3596 = vunpack.c.h.b16 %v944
      %v3597 = vunpack.c.l.b16 %v945
      %v3598 = vunpack.c.h.b16 %v945
      %v3599 = vunpack.c.l.b16 %v946
      %v3600 = vunpack.c.h.b16 %v946
      %v3601 = vunpack.c.l.b16 %v947
      %v3602 = vunpack.c.h.b16 %v947
      %v3603 = vunpack.c.l.b16 %v948
      %v3604 = vunpack.c.h.b16 %v948
      %v3605 = vunpack.c.l.b16 %v949
      %v3606 = vunpack.c.h.b16 %v949
      %v3607 = vunpack.c.l.b16 %v950
      %v3608 = vunpack.c.h.b16 %v950
      %v3609 = vunpack.c.l.b16 %v951
      %v3610 = vunpack.c.h.b16 %v951
      %v3611 = vunpack.c.l.b16 %v952
      %v3612 = vunpack.c.h.b16 %v952
      %v3613 = vunpack.c.l.b16 %v953
      %v3614 = vunpack.c.h.b16 %v953
      %v3615 = vunpack.c.l.b16 %v954
      %v3616 = vunpack.c.h.b16 %v954
      %v3617 = vunpack.c.l.b16 %v955
      %v3618 = vunpack.c.h.b16 %v955
      %v3619 = vunpack.c.l.b16 %v956
      %v3620 = vunpack.c.h.b16 %v956
      %v3621 = vunpack.c.l.b16 %v957
      %v3622 = vunpack.c.h.b16 %v957
      %v3623 = vunpack.c.l.b16 %v958
      %v3624 = vunpack.c.h.b16 %v958
      %v3625 = vpack.c.b16 %v2347, %v2345
      %v3626 = vpack.c.b16 %v2348, %v2346
      %v3627 = vpack.c.b16 %v2351, %v2349
      %v3628 = vpack.c.b16 %v2352, %v2350
      %v3629 = vpack.c.b16 %v2355, %v2353
      %v3630 = vpack.c.b16 %v2356, %v2354
      %v3631 = vpack.c.b16 %v2359, %v2357
      %v3632 = vpack.c.b16 %v2360, %v2358
      %v3633 = vpack.c.b16 %v2363, %v2361
      %v3634 = vpack.c.b16 %v2364, %v2362
      %v3635 = vpack.c.b16 %v2367, %v2365
      %v3636 = vpack.c.b16 %v2368, %v2366
      %v3637 = vpack.c.b16 %v2371, %v2369
      %v3638 = vpack.c.b16 %v2372, %v2370
      %v3639 = vpack.c.b16 %v2375, %v2373
      %v3640 = vpack.c.b16 %v2376, %v2374
      %v3641 = vpack.c.b16 %v2379, %v2377
      %v3642 = vpack.c.b16 %v2380, %v2378
      %v3643 = vpack.c.b16 %v2383, %v2381
      %v3644 = vpack.c.b16 %v2384, %v2382
      %v3645 = vpack.c.b16 %v2387, %v2385
      %v3646 = vpack.c.b16 %v2388, %v2386
      %v3647 = vpack.c.b16 %v2391, %v2389
      %v3648 = vpack.c.b16 %v2392, %v2390
      %v3649 = vpack.c.b16 %v2395, %v2393
      %v3650 = vpack.c.b16 %v2396, %v2394
      %v3651 = vpack.c.b16 %v2399, %v2397
      %v3652 = vpack.c.b16 %v2400, %v2398
      %v3653 = vpack.c.b16 %v2403, %v2401
      %v3654 = vpack.c.b16 %v2404, %v2402
      %v3655 = vpack.c.b16 %v2407, %v2405
      %v3656 = vpack.c.b16 %v2408, %v2406
      %v3657 = vpack.c.b16 %v2411, %v2409
      %v3658 = vpack.c.b16 %v2412, %v2410
      %v3659 = vpack.c.b16 %v2415, %v2413
      %v3660 = vpack.c.b16 %v2416, %v2414
      %v3661 = vpack.c.b16 %v2419, %v2417
      %v3662 = vpack.c.b16 %v2420, %v2418
      %v3663 = vpack.c.b16 %v2423, %v2421
      %v3664 = vpack.c.b16 %v2424, %v2422
      %v3665 = vpack.c.b16 %v2427, %v2425
      %v3666 = vpack.c.b16 %v2428, %v2426
      %v3667 = vpack.c.b16 %v2431, %v2429
      %v3668 = vpack.c.b16 %v2432, %v2430
      %v3669 = vpack.c.b16 %v2435, %v2433
      %v3670 = vpack.c.b16 %v2436, %v2434
      %v3671 = vpack.c.b16 %v2439, %v2437
      %v3672 = vpack.c.b16 %v2440, %v2438
      %v3673 = vpack.c.b16 %v2443, %v2441
      %v3674 = vpack.c.b16 %v2444, %v2442
      %v3675 = vpack.c.b16 %v2447, %v2445
      %v3676 = vpack.c.b16 %v2448, %v2446
      %v3677 = vpack.c.b16 %v2451, %v2449
      %v3678 = vpack.c.b16 %v2452, %v2450
      %v3679 = vpack.c.b16 %v2455, %v2453
      %v3680 = vpack.c.b16 %v2456, %v2454
      %v3681 = vpack.c.b16 %v2459, %v2457
      %v3682 = vpack.c.b16 %v2460, %v2458
      %v3683 = vpack.c.b16 %v2463, %v2461
      %v3684 = vpack.c.b16 %v2464, %v2462
      %v3685 = vpack.c.b16 %v2467, %v2465
      %v3686 = vpack.c.b16 %v2468, %v2466
      %v3687 = vpack.c.b16 %v2471, %v2469
      %v3688 = vpack.c.b16 %v2472, %v2470
      %v3689 = vpack.c.b16 %v2475, %v2473
      %v3690 = vpack.c.b16 %v2476, %v2474
      %v3691 = vpack.c.b16 %v2479, %v2477
      %v3692 = vpack.c.b16 %v2480, %v2478
      %v3693 = vpack.c.b16 %v2483, %v2481
      %v3694 = vpack.c.b16 %v2484, %v2482
      %v3695 = vpack.c.b16 %v2487, %v2485
      %v3696 = vpack.c.b16 %v2488, %v2486
      %v3697 = vpack.c.b16 %v2491, %v2489
      %v3698 = vpack.c.b16 %v2492, %v2490
      %v3699 = vpack.c.b16 %v2495, %v2493
      %v3700 = vpack.c.b16 %v2496, %v2494
      %v3701 = vpack.c.b16 %v2499, %v2497
      %v3702 = vpack.c.b16 %v2500, %v2498
      %v3703 = vpack.c.b16 %v2503, %v2501
      %v3704 = vpack.c.b16 %v2504, %v2502
      %v3705 = vpack.c.b16 %v2507, %v2505
      %v3706 = vpack.c.b16 %v2508, %v2506
      %v3707 = vpack.c.b16 %v2511, %v2509
      %v3708 = vpack.c.b16 %v2512, %v2510
      %v3709 = vpack.c.b16 %v2515, %v2513
      %v3710 = vpack.c.b16 %v2516, %v2514
      %v3711 = vpack.c.b16 %v2519, %v2517
      %v3712 = vpack.c.b16 %v2520, %v2518
      %v3713 = vpack.c.b16 %v2523, %v2521
      %v3714 = vpack.c.b16 %v2524, %v2522
      %v3715 = vpack.c.b16 %v2527, %v2525
      %v3716 = vpack.c.b16 %v2528, %v2526
      %v3717 = vpack.c.b16 %v2531, %v2529
      %v3718 = vpack.c.b16 %v2532, %v2530
      %v3719 = vpack.c.b16 %v2535, %v2533
      %v3720 = vpack.c.b16 %v2536, %v2534
      %v3721 = vpack.c.b16 %v2539, %v2537
      %v3722 = vpack.c.b16 %v2540, %v2538
      %v3723 = vpack.c.b16 %v2543, %v2541
      %v3724 = vpack.c.b16 %v2544, %v2542
      %v3725 = vpack.c.b16 %v2547, %v2545
      %v3726 = vpack.c.b16 %v2548, %v2546
      %v3727 = vpack.c.b16 %v2551, %v2549
      %v3728 = vpack.c.b16 %v2552, %v2550
      %v3729 = vpack.c.b16 %v2555, %v2553
      %v3730 = vpack.c.b16 %v2556, %v2554
      %v3731 = vpack.c.b16 %v2559, %v2557
      %v3732 = vpack.c.b16 %v2560, %v2558
      %v3733 = vpack.c.b16 %v2563, %v2561
      %v3734 = vpack.c.b16 %v2564, %v2562
      %v3735 = vpack.c.b16 %v2567, %v2565
      %v3736 = vpack.c.b16 %v2568, %v2566
      %v3737 = vpack.c.b16 %v2571, %v2569
      %v3738 = vpack.c.b16 %v2572, %v2570
      %v3739 = vpack.c.b16 %v2575, %v2573
      %v3740 = vpack.c.b16 %v2576, %v2574
      %v3741 = vpack.c.b16 %v2579, %v2577
      %v3742 = vpack.c.b16 %v2580, %v2578
      %v3743 = vpack.c.b16 %v2583, %v2581
      %v3744 = vpack.c.b16 %v2584, %v2582
      %v3745 = vpack.c.b16 %v2587, %v2585
      %v3746 = vpack.c.b16 %v2588, %v2586
      %v3747 = vpack.c.b16 %v2591, %v2589
      %v3748 = vpack.c.b16 %v2592, %v2590
      %v3749 = vpack.c.b16 %v2595, %v2593
      %v3750 = vpack.c.b16 %v2596, %v2594
      %v3751 = vpack.c.b16 %v2599, %v2597
      %v3752 = vpack.c.b16 %v2600, %v2598
      %v3753 = vpack.c.b16 %v2603, %v2601
      %v3754 = vpack.c.b16 %v2604, %v2602
      %v3755 = vpack.c.b16 %v2607, %v2605
      %v3756 = vpack.c.b16 %v2608, %v2606
      %v3757 = vpack.c.b16 %v2611, %v2609
      %v3758 = vpack.c.b16 %v2612, %v2610
      %v3759 = vpack.c.b16 %v2615, %v2613
      %v3760 = vpack.c.b16 %v2616, %v2614
      %v3761 = vpack.c.b16 %v2619, %v2617
      %v3762 = vpack.c.b16 %v2620, %v2618
      %v3763 = vpack.c.b16 %v2623, %v2621
      %v3764 = vpack.c.b16 %v2624, %v2622
      %v3765 = vpack.c.b16 %v2627, %v2625
      %v3766 = vpack.c.b16 %v2628, %v2626
      %v3767 = vpack.c.b16 %v2631, %v2629
      %v3768 = vpack.c.b16 %v2632, %v2630
      %v3769 = vpack.c.b16 %v2635, %v2633
      %v3770 = vpack.c.b16 %v2636, %v2634
      %v3771 = vpack.c.b16 %v2639, %v2637
      %v3772 = vpack.c.b16 %v2640, %v2638
      %v3773 = vpack.c.b16 %v2643, %v2641
      %v3774 = vpack.c.b16 %v2644, %v2642
      %v3775 = vpack.c.b16 %v2647, %v2645
      %v3776 = vpack.c.b16 %v2648, %v2646
      %v3777 = vpack.c.b16 %v2651, %v2649
      %v3778 = vpack.c.b16 %v2652, %v2650
      %v3779 = vpack.c.b16 %v2655, %v2653
      %v3780 = vpack.c.b16 %v2656, %v2654
      %v3781 = vpack.c.b16 %v2659, %v2657
      %v3782 = vpack.c.b16 %v2660, %v2658
      %v3783 = vpack.c.b16 %v2663, %v2661
      %v3784 = vpack.c.b16 %v2664, %v2662
      %v3785 = vpack.c.b16 %v2667, %v2665
      %v3786 = vpack.c.b16 %v2668, %v2666
      %v3787 = vpack.c.b16 %v2671, %v2669
      %v3788 = vpack.c.b16 %v2672, %v2670
      %v3789 = vpack.c.b16 %v2675, %v2673
      %v3790 = vpack.c.b16 %v2676, %v2674
      %v3791 = vpack.c.b16 %v2679, %v2677
      %v3792 = vpack.c.b16 %v2680, %v2678
      %v3793 = vpack.c.b16 %v2683, %v2681
      %v3794 = vpack.c.b16 %v2684, %v2682
      %v3795 = vpack.c.b16 %v2687, %v2685
      %v3796 = vpack.c.b16 %v2688, %v2686
      %v3797 = vpack.c.b16 %v2691, %v2689
      %v3798 = vpack.c.b16 %v2692, %v2690
      %v3799 = vpack.c.b16 %v2695, %v2693
      %v3800 = vpack.c.b16 %v2696, %v2694
      %v3801 = vpack.c.b16 %v2699, %v2697
      %v3802 = vpack.c.b16 %v2700, %v2698
      %v3803 = vpack.c.b16 %v2703, %v2701
      %v3804 = vpack.c.b16 %v2704, %v2702
      %v3805 = vpack.c.b16 %v2707, %v2705
      %v3806 = vpack.c.b16 %v2708, %v2706
      %v3807 = vpack.c.b16 %v2711, %v2709
      %v3808 = vpack.c.b16 %v2712, %v2710
      %v3809 = vpack.c.b16 %v2715, %v2713
      %v3810 = vpack.c.b16 %v2716, %v2714
      %v3811 = vpack.c.b16 %v2719, %v2717
      %v3812 = vpack.c.b16 %v2720, %v2718
      %v3813 = vpack.c.b16 %v2723, %v2721
      %v3814 = vpack.c.b16 %v2724, %v2722
      %v3815 = vpack.c.b16 %v2727, %v2725
      %v3816 = vpack.c.b16 %v2728, %v2726
      %v3817 = vpack.c.b16 %v2731, %v2729
      %v3818 = vpack.c.b16 %v2732, %v2730
      %v3819 = vpack.c.b16 %v2735, %v2733
      %v3820 = vpack.c.b16 %v2736, %v2734
      %v3821 = vpack.c.b16 %v2739, %v2737
      %v3822 = vpack.c.b16 %v2740, %v2738
      %v3823 = vpack.c.b16 %v2743, %v2741
      %v3824 = vpack.c.b16 %v2744, %v2742
      %v3825 = vpack.c.b16 %v2747, %v2745
      %v3826 = vpack.c.b16 %v2748, %v2746
      %v3827 = vpack.c.b16 %v2751, %v2749
      %v3828 = vpack.c.b16 %v2752, %v2750
      %v3829 = vpack.c.b16 %v2755, %v2753
      %v3830 = vpack.c.b16 %v2756, %v2754
      %v3831 = vpack.c.b16 %v2759, %v2757
      %v3832 = vpack.c.b16 %v2760, %v2758
      %v3833 = vpack.c.b16 %v2763, %v2761
      %v3834 = vpack.c.b16 %v2764, %v2762
      %v3835 = vpack.c.b16 %v2767, %v2765
      %v3836 = vpack.c.b16 %v2768, %v2766
      %v3837 = vpack.c.b16 %v2771, %v2769
      %v3838 = vpack.c.b16 %v2772, %v2770
      %v3839 = vpack.c.b16 %v2775, %v2773
      %v3840 = vpack.c.b16 %v2776, %v2774
      %v3841 = vpack.c.b16 %v2779, %v2777
      %v3842 = vpack.c.b16 %v2780, %v2778
      %v3843 = vpack.c.b16 %v2783, %v2781
      %v3844 = vpack.c.b16 %v2784, %v2782
      %v3845 = vpack.c.b16 %v2787, %v2785
      %v3846 = vpack.c.b16 %v2788, %v2786
      %v3847 = vpack.c.b16 %v2791, %v2789
      %v3848 = vpack.c.b16 %v2792, %v2790
      %v3849 = vpack.c.b16 %v2795, %v2793
      %v3850 = vpack.c.b16 %v2796, %v2794
      %v3851 = vpack.c.b16 %v2799, %v2797
      %v3852 = vpack.c.b16 %v2800, %v2798
      %v3853 = vpack.c.b16 %v2803, %v2801
      %v3854 = vpack.c.b16 %v2804, %v2802
      %v3855 = vpack.c.b16 %v2807, %v2805
      %v3856 = vpack.c.b16 %v2808, %v2806
      %v3857 = vpack.c.b16 %v2811, %v2809
      %v3858 = vpack.c.b16 %v2812, %v2810
      %v3859 = vpack.c.b16 %v2815, %v2813
      %v3860 = vpack.c.b16 %v2816, %v2814
      %v3861 = vpack.c.b16 %v2819, %v2817
      %v3862 = vpack.c.b16 %v2820, %v2818
      %v3863 = vpack.c.b16 %v2823, %v2821
      %v3864 = vpack.c.b16 %v2824, %v2822
      %v3865 = vpack.c.b16 %v2827, %v2825
      %v3866 = vpack.c.b16 %v2828, %v2826
      %v3867 = vpack.c.b16 %v2831, %v2829
      %v3868 = vpack.c.b16 %v2832, %v2830
      %v3869 = vpack.c.b16 %v2835, %v2833
      %v3870 = vpack.c.b16 %v2836, %v2834
      %v3871 = vpack.c.b16 %v2839, %v2837
      %v3872 = vpack.c.b16 %v2840, %v2838
      %v3873 = vpack.c.b16 %v2843, %v2841
      %v3874 = vpack.c.b16 %v2844, %v2842
      %v3875 = vpack.c.b16 %v2847, %v2845
      %v3876 = vpack.c.b16 %v2848, %v2846
      %v3877 = vpack.c.b16 %v2851, %v2849
      %v3878 = vpack.c.b16 %v2852, %v2850
      %v3879 = vpack.c.b16 %v2855, %v2853
      %v3880 = vpack.c.b16 %v2856, %v2854
      %v3881 = vpack.c.b16 %v2859, %v2857
      %v3882 = vpack.c.b16 %v2860, %v2858
      %v3883 = vpack.c.b16 %v2863, %v2861
      %v3884 = vpack.c.b16 %v2864, %v2862
      %v3885 = vpack.c.b16 %v2867, %v2865
      %v3886 = vpack.c.b16 %v2868, %v2866
      %v3887 = vpack.c.b16 %v2871, %v2869
      %v3888 = vpack.c.b16 %v2872, %v2870
      %v3889 = vpack.c.b16 %v2875, %v2873
      %v3890 = vpack.c.b16 %v2876, %v2874
      %v3891 = vpack.c.b16 %v2879, %v2877
      %v3892 = vpack.c.b16 %v2880, %v2878
      %v3893 = vpack.c.b16 %v2883, %v2881
      %v3894 = vpack.c.b16 %v2884, %v2882
      %v3895 = vpack.c.b16 %v2887, %v2885
      %v3896 = vpack.c.b16 %v2888, %v2886
      %v3897 = vpack.c.b16 %v2891, %v2889
      %v3898 = vpack.c.b16 %v2892, %v2890
      %v3899 = vpack.c.b16 %v2895, %v2893
      %v3900 = vpack.c.b16 %v2896, %v2894
      %v3901 = vpack.c.b16 %v2899, %v2897
      %v3902 = vpack.c.b16 %v2900, %v2898
      %v3903 = vpack.c.b16 %v2903, %v2901
      %v3904 = vpack.c.b16 %v2904, %v2902
      %v3905 = vpack.c.b16 %v2907, %v2905
      %v3906 = vpack.c.b16 %v2908, %v2906
      %v3907 = vpack.c.b16 %v2911, %v2909
      %v3908 = vpack.c.b16 %v2912, %v2910
      %v3909 = vpack.c.b16 %v2915, %v2913
      %v3910 = vpack.c.b16 %v2916, %v2914
      %v3911 = vpack.c.b16 %v2919, %v2917
      %v3912 = vpack.c.b16 %v2920, %v2918
      %v3913 = vpack.c.b16 %v2923, %v2921
      %v3914 = vpack.c.b16 %v2924, %v2922
      %v3915 = vpack.c.b16 %v2927, %v2925
      %v3916 = vpack.c.b16 %v2928, %v2926
      %v3917 = vpack.c.b16 %v2931, %v2929
      %v3918 = vpack.c.b16 %v2932, %v2930
      %v3919 = vpack.c.b16 %v2935, %v2933
      %v3920 = vpack.c.b16 %v2936, %v2934
      %v3921 = vpack.c.b16 %v2939, %v2937
      %v3922 = vpack.c.b16 %v2940, %v2938
      %v3923 = vpack.c.b16 %v2943, %v2941
      %v3924 = vpack.c.b16 %v2944, %v2942
      %v3925 = vpack.c.b16 %v2947, %v2945
      %v3926 = vpack.c.b16 %v2948, %v2946
      %v3927 = vpack.c.b16 %v2951, %v2949
      %v3928 = vpack.c.b16 %v2952, %v2950
      %v3929 = vpack.c.b16 %v2955, %v2953
      %v3930 = vpack.c.b16 %v2956, %v2954
      %v3931 = vpack.c.b16 %v2959, %v2957
      %v3932 = vpack.c.b16 %v2960, %v2958
      %v3933 = vpack.c.b16 %v2963, %v2961
      %v3934 = vpack.c.b16 %v2964, %v2962
      %v3935 = vpack.c.b16 %v2967, %v2965
      %v3936 = vpack.c.b16 %v2968, %v2966
      %v3937 = vpack.c.b16 %v2971, %v2969
      %v3938 = vpack.c.b16 %v2972, %v2970
      %v3939 = vpack.c.b16 %v2975, %v2973
      %v3940 = vpack.c.b16 %v2976, %v2974
      %v3941 = vpack.c.b16 %v2979, %v2977
      %v3942 = vpack.c.b16 %v2980, %v2978
      %v3943 = vpack.c.b16 %v2983, %v2981
      %v3944 = vpack.c.b16 %v2984, %v2982
      %v3945 = vpack.c.b16 %v2987, %v2985
      %v3946 = vpack.c.b16 %v2988, %v2986
      %v3947 = vpack.c.b16 %v2991, %v2989
      %v3948 = vpack.c.b16 %v2992, %v2990
      %v3949 = vpack.c.b16 %v2995, %v2993
      %v3950 = vpack.c.b16 %v2996, %v2994
      %v3951 = vpack.c.b16 %v2999, %v2997
      %v3952 = vpack.c.b16 %v3000, %v2998
      %v3953 = vpack.c.b16 %v3003, %v3001
      %v3954 = vpack.c.b16 %v3004, %v3002
      %v3955 = vpack.c.b16 %v3007, %v3005
      %v3956 = vpack.c.b16 %v3008, %v3006
      %v3957 = vpack.c.b16 %v3011, %v3009
      %v3958 = vpack.c.b16 %v3012, %v3010
      %v3959 = vpack.c.b16 %v3015, %v3013
      %v3960 = vpack.c.b16 %v3016, %v3014
      %v3961 = vpack.c.b16 %v3019, %v3017
      %v3962 = vpack.c.b16 %v3020, %v3018
      %v3963 = vpack.c.b16 %v3023, %v3021
      %v3964 = vpack.c.b16 %v3024, %v3022
      %v3965 = vpack.c.b16 %v3027, %v3025
      %v3966 = vpack.c.b16 %v3028, %v3026
      %v3967 = vpack.c.b16 %v3031, %v3029
      %v3968 = vpack.c.b16 %v3032, %v3030
      %v3969 = vpack.c.b16 %v3035, %v3033
      %v3970 = vpack.c.b16 %v3036, %v3034
      %v3971 = vpack.c.b16 %v3039, %v3037
      %v3972 = vpack.c.b16 %v3040, %v3038
      %v3973 = vpack.c.b16 %v3043, %v3041
      %v3974 = vpack.c.b16 %v3044, %v3042
      %v3975 = vpack.c.b16 %v3047, %v3045
      %v3976 = vpack.c.b16 %v3048, %v3046
      %v3977 = vpack.c.b16 %v3051, %v3049
      %v3978 = vpack.c.b16 %v3052, %v3050
      %v3979 = vpack.c.b16 %v3055, %v3053
      %v3980 = vpack.c.b16 %v3056, %v3054
      %v3981 = vpack.c.b16 %v3059, %v3057
      %v3982 = vpack.c.b16 %v3060, %v3058
      %v3983 = vpack.c.b16 %v3063, %v3061
      %v3984 = vpack.c.b16 %v3064, %v3062
      %v3985 = vpack.c.b16 %v3067, %v3065
      %v3986 = vpack.c.b16 %v3068, %v3066
      %v3987 = vpack.c.b16 %v3071, %v3069
      %v3988 = vpack.c.b16 %v3072, %v3070
      %v3989 = vpack.c.b16 %v3075, %v3073
      %v3990 = vpack.c.b16 %v3076, %v3074
      %v3991 = vpack.c.b16 %v3079, %v3077
      %v3992 = vpack.c.b16 %v3080, %v3078
      %v3993 = vpack.c.b16 %v3083, %v3081
      %v3994 = vpack.c.b16 %v3084, %v3082
      %v3995 = vpack.c.b16 %v3087, %v3085
      %v3996 = vpack.c.b16 %v3088, %v3086
      %v3997 = vpack.c.b16 %v3091, %v3089
      %v3998 = vpack.c.b16 %v3092, %v3090
      %v3999 = vpack.c.b16 %v3095, %v3093
      %v4000 = vpack.c.b16 %v3096, %v3094
      %v4001 = vpack.c.b16 %v3099, %v3097
      %v4002 = vpack.c.b16 %v3100, %v3098
      %v4003 = vpack.c.b16 %v3103, %v3101
      %v4004 = vpack.c.b16 %v3104, %v3102
      %v4005 = vpack.c.b16 %v3107, %v3105
      %v4006 = vpack.c.b16 %v3108, %v3106
      %v4007 = vpack.c.b16 %v3111, %v3109
      %v4008 = vpack.c.b16 %v3112, %v3110
      %v4009 = vpack.c.b16 %v3115, %v3113
      %v4010 = vpack.c.b16 %v3116, %v3114
      %v4011 = vpack.c.b16 %v3119, %v3117
      %v4012 = vpack.c.b16 %v3120, %v3118
      %v4013 = vpack.c.b16 %v3123, %v3121
      %v4014 = vpack.c.b16 %v3124, %v3122
      %v4015 = vpack.c.b16 %v3127, %v3125
      %v4016 = vpack.c.b16 %v3128, %v3126
      %v4017 = vpack.c.b16 %v3131, %v3129
      %v4018 = vpack.c.b16 %v3132, %v3130
      %v4019 = vpack.c.b16 %v3135, %v3133
      %v4020 = vpack.c.b16 %v3136, %v3134
      %v4021 = vpack.c.b16 %v3139, %v3137
      %v4022 = vpack.c.b16 %v3140, %v3138
      %v4023 = vpack.c.b16 %v3143, %v3141
      %v4024 = vpack.c.b16 %v3144, %v3142
      %v4025 = vpack.c.b16 %v3147, %v3145
      %v4026 = vpack.c.b16 %v3148, %v3146
      %v4027 = vpack.c.b16 %v3151, %v3149
      %v4028 = vpack.c.b16 %v3152, %v3150
      %v4029 = vpack.c.b16 %v3155, %v3153
      %v4030 = vpack.c.b16 %v3156, %v3154
      %v4031 = vpack.c.b16 %v3159, %v3157
      %v4032 = vpack.c.b16 %v3160, %v3158
      %v4033 = vpack.c.b16 %v3163, %v3161
      %v4034 = vpack.c.b16 %v3164, %v3162
      %v4035 = vpack.c.b16 %v3167, %v3165
      %v4036 = vpack.c.b16 %v3168, %v3166
      %v4037 = vpack.c.b16 %v3171, %v3169
      %v4038 = vpack.c.b16 %v3172, %v3170
      %v4039 = vpack.c.b16 %v3175, %v3173
      %v4040 = vpack.c.b16 %v3176, %v3174
      %v4041 = vpack.c.b16 %v3179, %v3177
      %v4042 = vpack.c.b16 %v3180, %v3178
      %v4043 = vpack.c.b16 %v3183, %v3181
      %v4044 = vpack.c.b16 %v3184, %v3182
      %v4045 = vpack.c.b16 %v3187, %v3185
      %v4046 = vpack.c.b16 %v3188, %v3186
      %v4047 = vpack.c.b16 %v3191, %v3189
      %v4048 = vpack.c.b16 %v3192, %v3190
      %v4049 = vpack.c.b16 %v3195, %v3193
      %v4050 = vpack.c.b16 %v3196, %v3194
      %v4051 = vpack.c.b16 %v3199, %v3197
      %v4052 = vpack.c.b16 %v3200, %v3198
      %v4053 = vpack.c.b16 %v3203, %v3201
      %v4054 = vpack.c.b16 %v3204, %v3202
      %v4055 = vpack.c.b16 %v3207, %v3205
      %v4056 = vpack.c.b16 %v3208, %v3206
      %v4057 = vpack.c.b16 %v3211, %v3209
      %v4058 = vpack.c.b16 %v3212, %v3210
      %v4059 = vpack.c.b16 %v3215, %v3213
      %v4060 = vpack.c.b16 %v3216, %v3214
      %v4061 = vpack.c.b16 %v3219, %v3217
      %v4062 = vpack.c.b16 %v3220, %v3218
      %v4063 = vpack.c.b16 %v3223, %v3221
      %v4064 = vpack.c.b16 %v3224, %v3222
      %v4065 = vpack.c.b16 %v3227, %v3225
      %v4066 = vpack.c.b16 %v3228, %v3226
      %v4067 = vpack.c.b16 %v3231, %v3229
      %v4068 = vpack.c.b16 %v3232, %v3230
      %v4069 = vpack.c.b16 %v3235, %v3233
      %v4070 = vpack.c.b16 %v3236, %v3234
      %v4071 = vpack.c.b16 %v3239, %v3237
      %v4072 = vpack.c.b16 %v3240, %v3238
      %v4073 = vpack.c.b16 %v3243, %v3241
      %v4074 = vpack.c.b16 %v3244, %v3242
      %v4075 = vpack.c.b16 %v3247, %v3245
      %v4076 = vpack.c.b16 %v3248, %v3246
      %v4077 = vpack.c.b16 %v3251, %v3249
      %v4078 = vpack.c.b16 %v3252, %v3250
      %v4079 = vpack.c.b16 %v3255, %v3253
      %v4080 = vpack.c.b16 %v3256, %v3254
      %v4081 = vpack.c.b16 %v3259, %v3257
      %v4082 = vpack.c.b16 %v3260, %v3258
      %v4083 = vpack.c.b16 %v3263, %v3261
      %v4084 = vpack.c.b16 %v3264, %v3262
      %v4085 = vpack.c.b16 %v3267, %v3265
      %v4086 = vpack.c.b16 %v3268, %v3266
      %v4087 = vpack.c.b16 %v3271, %v3269
      %v4088 = vpack.c.b16 %v3272, %v3270
      %v4089 = vpack.c.b16 %v3275, %v3273
      %v4090 = vpack.c.b16 %v3276, %v3274
      %v4091 = vpack.c.b16 %v3279, %v3277
      %v4092 = vpack.c.b16 %v3280, %v3278
      %v4093 = vpack.c.b16 %v3283, %v3281
      %v4094 = vpack.c.b16 %v3284, %v3282
      %v4095 = vpack.c.b16 %v3287, %v3285
      %v4096 = vpack.c.b16 %v3288, %v3286
      %v4097 = vpack.c.b16 %v3291, %v3289
      %v4098 = vpack.c.b16 %v3292, %v3290
      %v4099 = vpack.c.b16 %v3295, %v3293
      %v4100 = vpack.c.b16 %v3296, %v3294
      %v4101 = vpack.c.b16 %v3299, %v3297
      %v4102 = vpack.c.b16 %v3300, %v3298
      %v4103 = vpack.c.b16 %v3303, %v3301
      %v4104 = vpack.c.b16 %v3304, %v3302
      %v4105 = vpack.c.b16 %v3307, %v3305
      %v4106 = vpack.c.b16 %v3308, %v3306
      %v4107 = vpack.c.b16 %v3311, %v3309
      %v4108 = vpack.c.b16 %v3312, %v3310
      %v4109 = vpack.c.b16 %v3315, %v3313
      %v4110 = vpack.c.b16 %v3316, %v3314
      %v4111 = vpack.c.b16 %v3319, %v3317
      %v4112 = vpack.c.b16 %v3320, %v3318
      %v4113 = vpack.c.b16 %v3323, %v3321
      %v4114 = vpack.c.b16 %v3324, %v3322
      %v4115 = vpack.c.b16 %v3327, %v3325
      %v4116 = vpack.c.b16 %v3328, %v3326
      %v4117 = vpack.c.b16 %v3331, %v3329
      %v4118 = vpack.c.b16 %v3332, %v3330
      %v4119 = vpack.c.b16 %v3335, %v3333
      %v4120 = vpack.c.b16 %v3336, %v3334
      %v4121 = vpack.c.b16 %v3339, %v3337
      %v4122 = vpack.c.b16 %v3340, %v3338
      %v4123 = vpack.c.b16 %v3343, %v3341
      %v4124 = vpack.c.b16 %v3344, %v3342
      %v4125 = vpack.c.b16 %v3347, %v3345
      %v4126 = vpack.c.b16 %v3348, %v3346
      %v4127 = vpack.c.b16 %v3351, %v3349
      %v4128 = vpack.c.b16 %v3352, %v3350
      %v4129 = vpack.c.b16 %v3355, %v3353
      %v4130 = vpack.c.b16 %v3356, %v3354
      %v4131 = vpack.c.b16 %v3359, %v3357
      %v4132 = vpack.c.b16 %v3360, %v3358
      %v4133 = vpack.c.b16 %v3363, %v3361
      %v4134 = vpack.c.b16 %v3364, %v3362
      %v4135 = vpack.c.b16 %v3367, %v3365
      %v4136 = vpack.c.b16 %v3368, %v3366
      %v4137 = vpack.c.b16 %v3371, %v3369
      %v4138 = vpack.c.b16 %v3372, %v3370
      %v4139 = vpack.c.b16 %v3375, %v3373
      %v4140 = vpack.c.b16 %v3376, %v3374
      %v4141 = vpack.c.b16 %v3379, %v3377
      %v4142 = vpack.c.b16 %v3380, %v3378
      %v4143 = vpack.c.b16 %v3383, %v3381
      %v4144 = vpack.c.b16 %v3384, %v3382
      %v4145 = vpack.c.b16 %v3387, %v3385
      %v4146 = vpack.c.b16 %v3388, %v3386
      %v4147 = vpack.c.b16 %v3391, %v3389
      %v4148 = vpack.c.b16 %v3392, %v3390
      %v4149 = vpack.c.b16 %v3395, %v3393
      %v4150 = vpack.c.b16 %v3396, %v3394
      %v4151 = vpack.c.b16 %v3399, %v3397
      %v4152 = vpack.c.b16 %v3400, %v3398
      %v4153 = vpack.c.b16 %v3403, %v3401
      %v4154 = vpack.c.b16 %v3404, %v3402
      %v4155 = vpack.c.b16 %v3407, %v3405
      %v4156 = vpack.c.b16 %v3408, %v3406
      %v4157 = vpack.c.b16 %v3411, %v3409
      %v4158 = vpack.c.b16 %v3412, %v3410
      %v4159 = vpack.c.b16 %v3415, %v3413
      %v4160 = vpack.c.b16 %v3416, %v3414
      %v4161 = vpack.c.b16 %v3419, %v3417
      %v4162 = vpack.c.b16 %v3420, %v3418
      %v4163 = vpack.c.b16 %v3423, %v3421
      %v4164 = vpack.c.b16 %v3424, %v3422
      %v4165 = vpack.c.b16 %v3427, %v3425
      %v4166 = vpack.c.b16 %v3428, %v3426
      %v4167 = vpack.c.b16 %v3431, %v3429
      %v4168 = vpack.c.b16 %v3432, %v3430
      %v4169 = vpack.c.b16 %v3435, %v3433
      %v4170 = vpack.c.b16 %v3436, %v3434
      %v4171 = vpack.c.b16 %v3439, %v3437
      %v4172 = vpack.c.b16 %v3440, %v3438
      %v4173 = vpack.c.b16 %v3443, %v3441
      %v4174 = vpack.c.b16 %v3444, %v3442
      %v4175 = vpack.c.b16 %v3447, %v3445
      %v4176 = vpack.c.b16 %v3448, %v3446
      %v4177 = vpack.c.b16 %v3451, %v3449
      %v4178 = vpack.c.b16 %v3452, %v3450
      %v4179 = vpack.c.b16 %v3455, %v3453
      %v4180 = vpack.c.b16 %v3456, %v3454
      %v4181 = vpack.c.b16 %v3459, %v3457
      %v4182 = vpack.c.b16 %v3460, %v3458
      %v4183 = vpack.c.b16 %v3463, %v3461
      %v4184 = vpack.c.b16 %v3464, %v3462
      %v4185 = vpack.c.b16 %v3467, %v3465
      %v4186 = vpack.c.b16 %v3468, %v3466
      %v4187 = vpack.c.b16 %v3471, %v3469
      %v4188 = vpack.c.b16 %v3472, %v3470
      %v4189 = vpack.c.b16 %v3475, %v3473
      %v4190 = vpack.c.b16 %v3476, %v3474
      %v4191 = vpack.c.b16 %v3479, %v3477
      %v4192 = vpack.c.b16 %v3480, %v3478
      %v4193 = vpack.c.b16 %v3483, %v3481
      %v4194 = vpack.c.b16 %v3484, %v3482
      %v4195 = vpack.c.b16 %v3487, %v3485
      %v4196 = vpack.c.b16 %v3488, %v3486
      %v4197 = vpack.c.b16 %v3491, %v3489
      %v4198 = vpack.c.b16 %v3492, %v3490
      %v4199 = vpack.c.b16 %v3495, %v3493
      %v4200 = vpack.c.b16 %v3496, %v3494
      %v4201 = vpack.c.b16 %v3499, %v3497
      %v4202 = vpack.c.b16 %v3500, %v3498
      %v4203 = vpack.c.b16 %v3503, %v3501
      %v4204 = vpack.c.b16 %v3504, %v3502
      %v4205 = vpack.c.b16 %v3507, %v3505
      %v4206 = vpack.c.b16 %v3508, %v3506
      %v4207 = vpack.c.b16 %v3511, %v3509
      %v4208 = vpack.c.b16 %v3512, %v3510
      %v4209 = vpack.c.b16 %v3515, %v3513
      %v4210 = vpack.c.b16 %v3516, %v3514
      %v4211 = vpack.c.b16 %v3519, %v3517
      %v4212 = vpack.c.b16 %v3520, %v3518
      %v4213 = vpack.c.b16 %v3523, %v3521
      %v4214 = vpack.c.b16 %v3524, %v3522
      %v4215 = vpack.c.b16 %v3527, %v3525
      %v4216 = vpack.c.b16 %v3528, %v3526
      %v4217 = vpack.c.b16 %v3531, %v3529
      %v4218 = vpack.c.b16 %v3532, %v3530
      %v4219 = vpack.c.b16 %v3535, %v3533
      %v4220 = vpack.c.b16 %v3536, %v3534
      %v4221 = vpack.c.b16 %v3539, %v3537
      %v4222 = vpack.c.b16 %v3540, %v3538
      %v4223 = vpack.c.b16 %v3543, %v3541
      %v4224 = vpack.c.b16 %v3544, %v3542
      %v4225 = vpack.c.b16 %v3547, %v3545
      %v4226 = vpack.c.b16 %v3548, %v3546
      %v4227 = vpack.c.b16 %v3551, %v3549
      %v4228 = vpack.c.b16 %v3552, %v3550
      %v4229 = vpack.c.b16 %v3555, %v3553
      %v4230 = vpack.c.b16 %v3556, %v3554
      %v4231 = vpack.c.b16 %v3559, %v3557
      %v4232 = vpack.c.b16 %v3560, %v3558
      %v4233 = vpack.c.b16 %v3563, %v3561
      %v4234 = vpack.c.b16 %v3564, %v3562
      %v4235 = vpack.c.b16 %v3567, %v3565
      %v4236 = vpack.c.b16 %v3568, %v3566
      %v4237 = vpack.c.b16 %v3571, %v3569
      %v4238 = vpack.c.b16 %v3572, %v3570
      %v4239 = vpack.c.b16 %v3575, %v3573
      %v4240 = vpack.c.b16 %v3576, %v3574
      %v4241 = vpack.c.b16 %v3579, %v3577
      %v4242 = vpack.c.b16 %v3580, %v3578
      %v4243 = vpack.c.b16 %v3583, %v3581
      %v4244 = vpack.c.b16 %v3584, %v3582
      %v4245 = vpack.c.b16 %v3587, %v3585
      %v4246 = vpack.c.b16 %v3588, %v3586
      %v4247 = vpack.c.b16 %v3591, %v3589
      %v4248 = vpack.c.b16 %v3592, %v3590
      %v4249 = vpack.c.b16 %v3595, %v3593
      %v4250 = vpack.c.b16 %v3596, %v3594
      %v4251 = vpack.c.b16 %v3599, %v3597
      %v4252 = vpack.c.b16 %v3600, %v3598
      %v4253 = vpack.c.b16 %v3603, %v3601
      %v4254 = vpack.c.b16 %v3604, %v3602
      %v4255 = vpack.c.b16 %v3607, %v3605
      %v4256 = vpack.c.b16 %v3608, %v3606
      %v4257 = vpack.c.b16 %v3611, %v3609
      %v4258 = vpack.c.b16 %v3612, %v3610
      %v4259 = vpack.c.b16 %v3615, %v3613
      %v4260 = vpack.c.b16 %v3616, %v3614
      %v4261 = vpack.c.b16 %v3619, %v3617
      %v4262 = vpack.c.b16 %v3620, %v3618
      %v4263 = vpack.c.b16 %v3623, %v3621
      %v4264 = vpack.c.b16 %v3624, %v3622
      %4905 = vmatpush.bf16.msra.mxu0 %v3639
      %4906 = vmatpush.bf16.msra.mxu0 %v3637
      %4907 = vmatpush.bf16.msra.mxu0 %v3635
      %4908 = vmatpush.bf16.msra.mxu0 %v3633
      %4909 = vmatpush.bf16.msra.mxu0 %v3631
      %4910 = vmatpush.bf16.msra.mxu0 %v3629
      %4911 = vmatpush.bf16.msra.mxu0 %v3627
      %4912 = vmatpush.bf16.msra.mxu0 %v3625
      %4913 = vmatmul.bf16.gmra.mxu0 %v1385
      %v4914 = vpop.f32.mrf.mxu0
      %v4915 = vadd.f32 %v961, %v4914
      %v4916 = vpop.f32.mrf.mxu0
      %v4917 = vadd.f32 %v961, %v4916
      %4918 = vmatmul.bf16.gmra.mxu0 %v1425
      %v4919 = vpop.f32.mrf.mxu0
      %v4920 = vadd.f32 %v961, %v4919
      %v4921 = vpop.f32.mrf.mxu0
      %v4922 = vadd.f32 %v961, %v4921
      %4923 = vmatmul.bf16.gmra.mxu0 %v1465
      %v4924 = vpop.f32.mrf.mxu0
      %v4925 = vadd.f32 %v961, %v4924
      %v4926 = vpop.f32.mrf.mxu0
      %v4927 = vadd.f32 %v961, %v4926
      %4928 = vmatmul.bf16.gmra.mxu0 %v1505
      %v4929 = vpop.f32.mrf.mxu0
      %v4930 = vadd.f32 %v961, %v4929
      %v4931 = vpop.f32.mrf.mxu0
      %4932 = vdwg.mxu0
      %4933 = vmatpush.bf16.msra.mxu0 %v3655
      %4934 = vmatpush.bf16.msra.mxu0 %v3653
      %4935 = vmatpush.bf16.msra.mxu0 %v3651
      %4936 = vmatpush.bf16.msra.mxu0 %v3649
      %4937 = vmatpush.bf16.msra.mxu0 %v3647
      %4938 = vmatpush.bf16.msra.mxu0 %v3645
      %4939 = vmatpush.bf16.msra.mxu0 %v3643
      %4940 = vmatpush.bf16.msra.mxu0 %v3641
      %4941 = vmatmul.bf16.gmra.mxu0 %v1386
      %v4942 = vpop.f32.mrf.mxu0
      %v4943 = vadd.f32 %v4915, %v4942
      %v4944 = vpop.f32.mrf.mxu0
      %v4945 = vadd.f32 %v4917, %v4944
      %4946 = vmatmul.bf16.gmra.mxu0 %v1426
      %v4947 = vpop.f32.mrf.mxu0
      %v4948 = vadd.f32 %v4920, %v4947
      %v4949 = vpop.f32.mrf.mxu0
      %v4950 = vadd.f32 %v4922, %v4949
      %4951 = vmatmul.bf16.gmra.mxu0 %v1466
      %v4952 = vpop.f32.mrf.mxu0
      %v4953 = vadd.f32 %v4925, %v4952
      %v4954 = vpop.f32.mrf.mxu0
      %v4955 = vadd.f32 %v4927, %v4954
      %4956 = vmatmul.bf16.gmra.mxu0 %v1506
      %v4957 = vpop.f32.mrf.mxu0
      %v4958 = vadd.f32 %v4930, %v4957
      %v4959 = vpop.f32.mrf.mxu0
      %4960 = vdwg.mxu0
      %4961 = vmatpush.bf16.msra.mxu0 %v3671
      %4962 = vmatpush.bf16.msra.mxu0 %v3669
      %4963 = vmatpush.bf16.msra.mxu0 %v3667
      %4964 = vmatpush.bf16.msra.mxu0 %v3665
      %4965 = vmatpush.bf16.msra.mxu0 %v3663
      %4966 = vmatpush.bf16.msra.mxu0 %v3661
      %4967 = vmatpush.bf16.msra.mxu0 %v3659
      %4968 = vmatpush.bf16.msra.mxu0 %v3657
      %4969 = vmatmul.bf16.gmra.mxu0 %v1387
      %v4970 = vpop.f32.mrf.mxu0
      %v4971 = vadd.f32 %v4943, %v4970
      %v4972 = vpop.f32.mrf.mxu0
      %v4973 = vadd.f32 %v4945, %v4972
      %4974 = vmatmul.bf16.gmra.mxu0 %v1427
      %v4975 = vpop.f32.mrf.mxu0
      %v4976 = vadd.f32 %v4948, %v4975
      %v4977 = vpop.f32.mrf.mxu0
      %v4978 = vadd.f32 %v4950, %v4977
      %4979 = vmatmul.bf16.gmra.mxu0 %v1467
      %v4980 = vpop.f32.mrf.mxu0
      %v4981 = vadd.f32 %v4953, %v4980
      %v4982 = vpop.f32.mrf.mxu0
      %v4983 = vadd.f32 %v4955, %v4982
      %4984 = vmatmul.bf16.gmra.mxu0 %v1507
      %v4985 = vpop.f32.mrf.mxu0
      %v4986 = vadd.f32 %v4958, %v4985
      %v4987 = vpop.f32.mrf.mxu0
      %4988 = vdwg.mxu0
      %4989 = vmatpush.bf16.msra.mxu0 %v3687
      %4990 = vmatpush.bf16.msra.mxu0 %v3685
      %4991 = vmatpush.bf16.msra.mxu0 %v3683
      %4992 = vmatpush.bf16.msra.mxu0 %v3681
      %4993 = vmatpush.bf16.msra.mxu0 %v3679
      %4994 = vmatpush.bf16.msra.mxu0 %v3677
      %4995 = vmatpush.bf16.msra.mxu0 %v3675
      %4996 = vmatpush.bf16.msra.mxu0 %v3673
      %4997 = vmatmul.bf16.gmra.mxu0 %v1388
      %v4998 = vpop.f32.mrf.mxu0
      %v4999 = vadd.f32 %v4971, %v4998
      %v5000 = vpop.f32.mrf.mxu0
      %v5001 = vadd.f32 %v4973, %v5000
      %5002 = vmatmul.bf16.gmra.mxu0 %v1428
      %v5003 = vpop.f32.mrf.mxu0
      %v5004 = vadd.f32 %v4976, %v5003
      %v5005 = vpop.f32.mrf.mxu0
      %v5006 = vadd.f32 %v4978, %v5005
      %5007 = vmatmul.bf16.gmra.mxu0 %v1468
      %v5008 = vpop.f32.mrf.mxu0
      %v5009 = vadd.f32 %v4981, %v5008
      %v5010 = vpop.f32.mrf.mxu0
      %v5011 = vadd.f32 %v4983, %v5010
      %5012 = vmatmul.bf16.gmra.mxu0 %v1508
      %v5013 = vpop.f32.mrf.mxu0
      %v5014 = vadd.f32 %v4986, %v5013
      %v5015 = vpop.f32.mrf.mxu0
      %5016 = vdwg.mxu0
      %5017 = vmatpush.bf16.msra.mxu0 %v3703
      %5018 = vmatpush.bf16.msra.mxu0 %v3701
      %5019 = vmatpush.bf16.msra.mxu0 %v3699
      %5020 = vmatpush.bf16.msra.mxu0 %v3697
      %5021 = vmatpush.bf16.msra.mxu0 %v3695
      %5022 = vmatpush.bf16.msra.mxu0 %v3693
      %5023 = vmatpush.bf16.msra.mxu0 %v3691
      %5024 = vmatpush.bf16.msra.mxu0 %v3689
      %5025 = vmatmul.bf16.gmra.mxu0 %v1389
      %v5026 = vpop.f32.mrf.mxu0
      %v5027 = vadd.f32 %v4999, %v5026
      %v5028 = vpop.f32.mrf.mxu0
      %v5029 = vadd.f32 %v5001, %v5028
      %5030 = vmatmul.bf16.gmra.mxu0 %v1429
      %v5031 = vpop.f32.mrf.mxu0
      %v5032 = vadd.f32 %v5004, %v5031
      %v5033 = vpop.f32.mrf.mxu0
      %v5034 = vadd.f32 %v5006, %v5033
      %5035 = vmatmul.bf16.gmra.mxu0 %v1469
      %v5036 = vpop.f32.mrf.mxu0
      %v5037 = vadd.f32 %v5009, %v5036
      %v5038 = vpop.f32.mrf.mxu0
      %v5039 = vadd.f32 %v5011, %v5038
      %5040 = vmatmul.bf16.gmra.mxu0 %v1509
      %v5041 = vpop.f32.mrf.mxu0
      %v5042 = vadd.f32 %v5014, %v5041
      %v5043 = vpop.f32.mrf.mxu0
      %5044 = vdwg.mxu0
      %5045 = vmatpush.bf16.msra.mxu0 %v3719
      %5046 = vmatpush.bf16.msra.mxu0 %v3717
      %5047 = vmatpush.bf16.msra.mxu0 %v3715
      %5048 = vmatpush.bf16.msra.mxu0 %v3713
      %5049 = vmatpush.bf16.msra.mxu0 %v3711
      %5050 = vmatpush.bf16.msra.mxu0 %v3709
      %5051 = vmatpush.bf16.msra.mxu0 %v3707
      %5052 = vmatpush.bf16.msra.mxu0 %v3705
      %5053 = vmatmul.bf16.gmra.mxu0 %v1390
      %v5054 = vpop.f32.mrf.mxu0
      %v5055 = vadd.f32 %v5027, %v5054
      %v5056 = vpop.f32.mrf.mxu0
      %v5057 = vadd.f32 %v5029, %v5056
      %5058 = vmatmul.bf16.gmra.mxu0 %v1430
      %v5059 = vpop.f32.mrf.mxu0
      %v5060 = vadd.f32 %v5032, %v5059
      %v5061 = vpop.f32.mrf.mxu0
      %v5062 = vadd.f32 %v5034, %v5061
      %5063 = vmatmul.bf16.gmra.mxu0 %v1470
      %v5064 = vpop.f32.mrf.mxu0
      %v5065 = vadd.f32 %v5037, %v5064
      %v5066 = vpop.f32.mrf.mxu0
      %v5067 = vadd.f32 %v5039, %v5066
      %5068 = vmatmul.bf16.gmra.mxu0 %v1510
      %v5069 = vpop.f32.mrf.mxu0
      %v5070 = vadd.f32 %v5042, %v5069
      %v5071 = vpop.f32.mrf.mxu0
      %5072 = vdwg.mxu0
      %5073 = vmatpush.bf16.msra.mxu0 %v3735
      %5074 = vmatpush.bf16.msra.mxu0 %v3733
      %5075 = vmatpush.bf16.msra.mxu0 %v3731
      %5076 = vmatpush.bf16.msra.mxu0 %v3729
      %5077 = vmatpush.bf16.msra.mxu0 %v3727
      %5078 = vmatpush.bf16.msra.mxu0 %v3725
      %5079 = vmatpush.bf16.msra.mxu0 %v3723
      %5080 = vmatpush.bf16.msra.mxu0 %v3721
      %5081 = vmatmul.bf16.gmra.mxu0 %v1391
      %v5082 = vpop.f32.mrf.mxu0
      %v5083 = vadd.f32 %v5055, %v5082
      %v5084 = vpop.f32.mrf.mxu0
      %v5085 = vadd.f32 %v5057, %v5084
      %5086 = vmatmul.bf16.gmra.mxu0 %v1431
      %v5087 = vpop.f32.mrf.mxu0
      %v5088 = vadd.f32 %v5060, %v5087
      %v5089 = vpop.f32.mrf.mxu0
      %v5090 = vadd.f32 %v5062, %v5089
      %5091 = vmatmul.bf16.gmra.mxu0 %v1471
      %v5092 = vpop.f32.mrf.mxu0
      %v5093 = vadd.f32 %v5065, %v5092
      %v5094 = vpop.f32.mrf.mxu0
      %v5095 = vadd.f32 %v5067, %v5094
      %5096 = vmatmul.bf16.gmra.mxu0 %v1511
      %v5097 = vpop.f32.mrf.mxu0
      %v5098 = vadd.f32 %v5070, %v5097
      %v5099 = vpop.f32.mrf.mxu0
      %5100 = vdwg.mxu0
      %5101 = vmatpush.bf16.msra.mxu0 %v3751
      %5102 = vmatpush.bf16.msra.mxu0 %v3749
      %5103 = vmatpush.bf16.msra.mxu0 %v3747
      %5104 = vmatpush.bf16.msra.mxu0 %v3745
      %5105 = vmatpush.bf16.msra.mxu0 %v3743
      %5106 = vmatpush.bf16.msra.mxu0 %v3741
      %5107 = vmatpush.bf16.msra.mxu0 %v3739
      %5108 = vmatpush.bf16.msra.mxu0 %v3737
      %5109 = vmatmul.bf16.gmra.mxu0 %v1392
      %v5110 = vpop.f32.mrf.mxu0
      %v5111 = vadd.f32 %v5083, %v5110
      %v5112 = vpop.f32.mrf.mxu0
      %v5113 = vadd.f32 %v5085, %v5112
      %5114 = vmatmul.bf16.gmra.mxu0 %v1432
      %v5115 = vpop.f32.mrf.mxu0
      %v5116 = vadd.f32 %v5088, %v5115
      %v5117 = vpop.f32.mrf.mxu0
      %v5118 = vadd.f32 %v5090, %v5117
      %5119 = vmatmul.bf16.gmra.mxu0 %v1472
      %v5120 = vpop.f32.mrf.mxu0
      %v5121 = vadd.f32 %v5093, %v5120
      %v5122 = vpop.f32.mrf.mxu0
      %v5123 = vadd.f32 %v5095, %v5122
      %5124 = vmatmul.bf16.gmra.mxu0 %v1512
      %v5125 = vpop.f32.mrf.mxu0
      %v5126 = vadd.f32 %v5098, %v5125
      %v5127 = vpop.f32.mrf.mxu0
      %5128 = vdwg.mxu0
      %5129 = vmatpush.bf16.msra.mxu0 %v3767
      %5130 = vmatpush.bf16.msra.mxu0 %v3765
      %5131 = vmatpush.bf16.msra.mxu0 %v3763
      %5132 = vmatpush.bf16.msra.mxu0 %v3761
      %5133 = vmatpush.bf16.msra.mxu0 %v3759
      %5134 = vmatpush.bf16.msra.mxu0 %v3757
      %5135 = vmatpush.bf16.msra.mxu0 %v3755
      %5136 = vmatpush.bf16.msra.mxu0 %v3753
      %5137 = vmatmul.bf16.gmra.mxu0 %v1393
      %v5138 = vpop.f32.mrf.mxu0
      %v5139 = vadd.f32 %v5111, %v5138
      %v5140 = vpop.f32.mrf.mxu0
      %v5141 = vadd.f32 %v5113, %v5140
      %5142 = vmatmul.bf16.gmra.mxu0 %v1433
      %v5143 = vpop.f32.mrf.mxu0
      %v5144 = vadd.f32 %v5116, %v5143
      %v5145 = vpop.f32.mrf.mxu0
      %v5146 = vadd.f32 %v5118, %v5145
      %5147 = vmatmul.bf16.gmra.mxu0 %v1473
      %v5148 = vpop.f32.mrf.mxu0
      %v5149 = vadd.f32 %v5121, %v5148
      %v5150 = vpop.f32.mrf.mxu0
      %v5151 = vadd.f32 %v5123, %v5150
      %5152 = vmatmul.bf16.gmra.mxu0 %v1513
      %v5153 = vpop.f32.mrf.mxu0
      %v5154 = vadd.f32 %v5126, %v5153
      %v5155 = vpop.f32.mrf.mxu0
      %5156 = vdwg.mxu0
      %5157 = vmatpush.bf16.msra.mxu0 %v3783
      %5158 = vmatpush.bf16.msra.mxu0 %v3781
      %5159 = vmatpush.bf16.msra.mxu0 %v3779
      %5160 = vmatpush.bf16.msra.mxu0 %v3777
      %5161 = vmatpush.bf16.msra.mxu0 %v3775
      %5162 = vmatpush.bf16.msra.mxu0 %v3773
      %5163 = vmatpush.bf16.msra.mxu0 %v3771
      %5164 = vmatpush.bf16.msra.mxu0 %v3769
      %5165 = vmatmul.bf16.gmra.mxu0 %v1394
      %v5166 = vpop.f32.mrf.mxu0
      %v5167 = vadd.f32 %v5139, %v5166
      %v5168 = vpop.f32.mrf.mxu0
      %v5169 = vadd.f32 %v5141, %v5168
      %5170 = vmatmul.bf16.gmra.mxu0 %v1434
      %v5171 = vpop.f32.mrf.mxu0
      %v5172 = vadd.f32 %v5144, %v5171
      %v5173 = vpop.f32.mrf.mxu0
      %v5174 = vadd.f32 %v5146, %v5173
      %5175 = vmatmul.bf16.gmra.mxu0 %v1474
      %v5176 = vpop.f32.mrf.mxu0
      %v5177 = vadd.f32 %v5149, %v5176
      %v5178 = vpop.f32.mrf.mxu0
      %v5179 = vadd.f32 %v5151, %v5178
      %5180 = vmatmul.bf16.gmra.mxu0 %v1514
      %v5181 = vpop.f32.mrf.mxu0
      %v5182 = vadd.f32 %v5154, %v5181
      %v5183 = vpop.f32.mrf.mxu0
      %5184 = vdwg.mxu0
      %5185 = vmatpush.bf16.msra.mxu0 %v3799
      %5186 = vmatpush.bf16.msra.mxu0 %v3797
      %5187 = vmatpush.bf16.msra.mxu0 %v3795
      %5188 = vmatpush.bf16.msra.mxu0 %v3793
      %5189 = vmatpush.bf16.msra.mxu0 %v3791
      %5190 = vmatpush.bf16.msra.mxu0 %v3789
      %5191 = vmatpush.bf16.msra.mxu0 %v3787
      %5192 = vmatpush.bf16.msra.mxu0 %v3785
      %5193 = vmatmul.bf16.gmra.mxu0 %v1395
      %v5194 = vpop.f32.mrf.mxu0
      %v5195 = vadd.f32 %v5167, %v5194
      %v5196 = vpop.f32.mrf.mxu0
      %v5197 = vadd.f32 %v5169, %v5196
      %5198 = vmatmul.bf16.gmra.mxu0 %v1435
      %v5199 = vpop.f32.mrf.mxu0
      %v5200 = vadd.f32 %v5172, %v5199
      %v5201 = vpop.f32.mrf.mxu0
      %v5202 = vadd.f32 %v5174, %v5201
      %5203 = vmatmul.bf16.gmra.mxu0 %v1475
      %v5204 = vpop.f32.mrf.mxu0
      %v5205 = vadd.f32 %v5177, %v5204
      %v5206 = vpop.f32.mrf.mxu0
      %v5207 = vadd.f32 %v5179, %v5206
      %5208 = vmatmul.bf16.gmra.mxu0 %v1515
      %v5209 = vpop.f32.mrf.mxu0
      %v5210 = vadd.f32 %v5182, %v5209
      %v5211 = vpop.f32.mrf.mxu0
      %5212 = vdwg.mxu0
      %5213 = vmatpush.bf16.msra.mxu0 %v3815
      %5214 = vmatpush.bf16.msra.mxu0 %v3813
      %5215 = vmatpush.bf16.msra.mxu0 %v3811
      %5216 = vmatpush.bf16.msra.mxu0 %v3809
      %5217 = vmatpush.bf16.msra.mxu0 %v3807
      %5218 = vmatpush.bf16.msra.mxu0 %v3805
      %5219 = vmatpush.bf16.msra.mxu0 %v3803
      %5220 = vmatpush.bf16.msra.mxu0 %v3801
      %5221 = vmatmul.bf16.gmra.mxu0 %v1396
      %v5222 = vpop.f32.mrf.mxu0
      %v5223 = vadd.f32 %v5195, %v5222
      %v5224 = vpop.f32.mrf.mxu0
      %v5225 = vadd.f32 %v5197, %v5224
      %5226 = vmatmul.bf16.gmra.mxu0 %v1436
      %v5227 = vpop.f32.mrf.mxu0
      %v5228 = vadd.f32 %v5200, %v5227
      %v5229 = vpop.f32.mrf.mxu0
      %v5230 = vadd.f32 %v5202, %v5229
      %5231 = vmatmul.bf16.gmra.mxu0 %v1476
      %v5232 = vpop.f32.mrf.mxu0
      %v5233 = vadd.f32 %v5205, %v5232
      %v5234 = vpop.f32.mrf.mxu0
      %v5235 = vadd.f32 %v5207, %v5234
      %5236 = vmatmul.bf16.gmra.mxu0 %v1516
      %v5237 = vpop.f32.mrf.mxu0
      %v5238 = vadd.f32 %v5210, %v5237
      %v5239 = vpop.f32.mrf.mxu0
      %5240 = vdwg.mxu0
      %5241 = vmatpush.bf16.msra.mxu0 %v3831
      %5242 = vmatpush.bf16.msra.mxu0 %v3829
      %5243 = vmatpush.bf16.msra.mxu0 %v3827
      %5244 = vmatpush.bf16.msra.mxu0 %v3825
      %5245 = vmatpush.bf16.msra.mxu0 %v3823
      %5246 = vmatpush.bf16.msra.mxu0 %v3821
      %5247 = vmatpush.bf16.msra.mxu0 %v3819
      %5248 = vmatpush.bf16.msra.mxu0 %v3817
      %5249 = vmatmul.bf16.gmra.mxu0 %v1397
      %v5250 = vpop.f32.mrf.mxu0
      %v5251 = vadd.f32 %v5223, %v5250
      %v5252 = vpop.f32.mrf.mxu0
      %v5253 = vadd.f32 %v5225, %v5252
      %5254 = vmatmul.bf16.gmra.mxu0 %v1437
      %v5255 = vpop.f32.mrf.mxu0
      %v5256 = vadd.f32 %v5228, %v5255
      %v5257 = vpop.f32.mrf.mxu0
      %v5258 = vadd.f32 %v5230, %v5257
      %5259 = vmatmul.bf16.gmra.mxu0 %v1477
      %v5260 = vpop.f32.mrf.mxu0
      %v5261 = vadd.f32 %v5233, %v5260
      %v5262 = vpop.f32.mrf.mxu0
      %v5263 = vadd.f32 %v5235, %v5262
      %5264 = vmatmul.bf16.gmra.mxu0 %v1517
      %v5265 = vpop.f32.mrf.mxu0
      %v5266 = vadd.f32 %v5238, %v5265
      %v5267 = vpop.f32.mrf.mxu0
      %5268 = vdwg.mxu0
      %5269 = vmatpush.bf16.msra.mxu0 %v3847
      %5270 = vmatpush.bf16.msra.mxu0 %v3845
      %5271 = vmatpush.bf16.msra.mxu0 %v3843
      %5272 = vmatpush.bf16.msra.mxu0 %v3841
      %5273 = vmatpush.bf16.msra.mxu0 %v3839
      %5274 = vmatpush.bf16.msra.mxu0 %v3837
      %5275 = vmatpush.bf16.msra.mxu0 %v3835
      %5276 = vmatpush.bf16.msra.mxu0 %v3833
      %5277 = vmatmul.bf16.gmra.mxu0 %v1398
      %v5278 = vpop.f32.mrf.mxu0
      %v5279 = vadd.f32 %v5251, %v5278
      %v5280 = vpop.f32.mrf.mxu0
      %v5281 = vadd.f32 %v5253, %v5280
      %5282 = vmatmul.bf16.gmra.mxu0 %v1438
      %v5283 = vpop.f32.mrf.mxu0
      %v5284 = vadd.f32 %v5256, %v5283
      %v5285 = vpop.f32.mrf.mxu0
      %v5286 = vadd.f32 %v5258, %v5285
      %5287 = vmatmul.bf16.gmra.mxu0 %v1478
      %v5288 = vpop.f32.mrf.mxu0
      %v5289 = vadd.f32 %v5261, %v5288
      %v5290 = vpop.f32.mrf.mxu0
      %v5291 = vadd.f32 %v5263, %v5290
      %5292 = vmatmul.bf16.gmra.mxu0 %v1518
      %v5293 = vpop.f32.mrf.mxu0
      %v5294 = vadd.f32 %v5266, %v5293
      %v5295 = vpop.f32.mrf.mxu0
      %5296 = vdwg.mxu0
      %5297 = vmatpush.bf16.msra.mxu0 %v3863
      %5298 = vmatpush.bf16.msra.mxu0 %v3861
      %5299 = vmatpush.bf16.msra.mxu0 %v3859
      %5300 = vmatpush.bf16.msra.mxu0 %v3857
      %5301 = vmatpush.bf16.msra.mxu0 %v3855
      %5302 = vmatpush.bf16.msra.mxu0 %v3853
      %5303 = vmatpush.bf16.msra.mxu0 %v3851
      %5304 = vmatpush.bf16.msra.mxu0 %v3849
      %5305 = vmatmul.bf16.gmra.mxu0 %v1399
      %v5306 = vpop.f32.mrf.mxu0
      %v5307 = vadd.f32 %v5279, %v5306
      %v5308 = vpop.f32.mrf.mxu0
      %v5309 = vadd.f32 %v5281, %v5308
      %5310 = vmatmul.bf16.gmra.mxu0 %v1439
      %v5311 = vpop.f32.mrf.mxu0
      %v5312 = vadd.f32 %v5284, %v5311
      %v5313 = vpop.f32.mrf.mxu0
      %v5314 = vadd.f32 %v5286, %v5313
      %5315 = vmatmul.bf16.gmra.mxu0 %v1479
      %v5316 = vpop.f32.mrf.mxu0
      %v5317 = vadd.f32 %v5289, %v5316
      %v5318 = vpop.f32.mrf.mxu0
      %v5319 = vadd.f32 %v5291, %v5318
      %5320 = vmatmul.bf16.gmra.mxu0 %v1519
      %v5321 = vpop.f32.mrf.mxu0
      %v5322 = vadd.f32 %v5294, %v5321
      %v5323 = vpop.f32.mrf.mxu0
      %5324 = vdwg.mxu0
      %5325 = vmatpush.bf16.msra.mxu0 %v3879
      %5326 = vmatpush.bf16.msra.mxu0 %v3877
      %5327 = vmatpush.bf16.msra.mxu0 %v3875
      %5328 = vmatpush.bf16.msra.mxu0 %v3873
      %5329 = vmatpush.bf16.msra.mxu0 %v3871
      %5330 = vmatpush.bf16.msra.mxu0 %v3869
      %5331 = vmatpush.bf16.msra.mxu0 %v3867
      %5332 = vmatpush.bf16.msra.mxu0 %v3865
      %5333 = vmatmul.bf16.gmra.mxu0 %v1400
      %v5334 = vpop.f32.mrf.mxu0
      %v5335 = vadd.f32 %v5307, %v5334
      %v5336 = vpop.f32.mrf.mxu0
      %v5337 = vadd.f32 %v5309, %v5336
      %5338 = vmatmul.bf16.gmra.mxu0 %v1440
      %v5339 = vpop.f32.mrf.mxu0
      %v5340 = vadd.f32 %v5312, %v5339
      %v5341 = vpop.f32.mrf.mxu0
      %v5342 = vadd.f32 %v5314, %v5341
      %5343 = vmatmul.bf16.gmra.mxu0 %v1480
      %v5344 = vpop.f32.mrf.mxu0
      %v5345 = vadd.f32 %v5317, %v5344
      %v5346 = vpop.f32.mrf.mxu0
      %v5347 = vadd.f32 %v5319, %v5346
      %5348 = vmatmul.bf16.gmra.mxu0 %v1520
      %v5349 = vpop.f32.mrf.mxu0
      %v5350 = vadd.f32 %v5322, %v5349
      %v5351 = vpop.f32.mrf.mxu0
      %5352 = vdwg.mxu0
      %5353 = vmatpush.bf16.msra.mxu0 %v3895
      %5354 = vmatpush.bf16.msra.mxu0 %v3893
      %5355 = vmatpush.bf16.msra.mxu0 %v3891
      %5356 = vmatpush.bf16.msra.mxu0 %v3889
      %5357 = vmatpush.bf16.msra.mxu0 %v3887
      %5358 = vmatpush.bf16.msra.mxu0 %v3885
      %5359 = vmatpush.bf16.msra.mxu0 %v3883
      %5360 = vmatpush.bf16.msra.mxu0 %v3881
      %5361 = vmatmul.bf16.gmra.mxu0 %v1401
      %v5362 = vpop.f32.mrf.mxu0
      %v5363 = vadd.f32 %v5335, %v5362
      %v5364 = vpop.f32.mrf.mxu0
      %v5365 = vadd.f32 %v5337, %v5364
      %5366 = vmatmul.bf16.gmra.mxu0 %v1441
      %v5367 = vpop.f32.mrf.mxu0
      %v5368 = vadd.f32 %v5340, %v5367
      %v5369 = vpop.f32.mrf.mxu0
      %v5370 = vadd.f32 %v5342, %v5369
      %5371 = vmatmul.bf16.gmra.mxu0 %v1481
      %v5372 = vpop.f32.mrf.mxu0
      %v5373 = vadd.f32 %v5345, %v5372
      %v5374 = vpop.f32.mrf.mxu0
      %v5375 = vadd.f32 %v5347, %v5374
      %5376 = vmatmul.bf16.gmra.mxu0 %v1521
      %v5377 = vpop.f32.mrf.mxu0
      %v5378 = vadd.f32 %v5350, %v5377
      %v5379 = vpop.f32.mrf.mxu0
      %5380 = vdwg.mxu0
      %5381 = vmatpush.bf16.msra.mxu0 %v3911
      %5382 = vmatpush.bf16.msra.mxu0 %v3909
      %5383 = vmatpush.bf16.msra.mxu0 %v3907
      %5384 = vmatpush.bf16.msra.mxu0 %v3905
      %5385 = vmatpush.bf16.msra.mxu0 %v3903
      %5386 = vmatpush.bf16.msra.mxu0 %v3901
      %5387 = vmatpush.bf16.msra.mxu0 %v3899
      %5388 = vmatpush.bf16.msra.mxu0 %v3897
      %5389 = vmatmul.bf16.gmra.mxu0 %v1402
      %v5390 = vpop.f32.mrf.mxu0
      %v5391 = vadd.f32 %v5363, %v5390
      %v5392 = vpop.f32.mrf.mxu0
      %v5393 = vadd.f32 %v5365, %v5392
      %5394 = vmatmul.bf16.gmra.mxu0 %v1442
      %v5395 = vpop.f32.mrf.mxu0
      %v5396 = vadd.f32 %v5368, %v5395
      %v5397 = vpop.f32.mrf.mxu0
      %v5398 = vadd.f32 %v5370, %v5397
      %5399 = vmatmul.bf16.gmra.mxu0 %v1482
      %v5400 = vpop.f32.mrf.mxu0
      %v5401 = vadd.f32 %v5373, %v5400
      %v5402 = vpop.f32.mrf.mxu0
      %v5403 = vadd.f32 %v5375, %v5402
      %5404 = vmatmul.bf16.gmra.mxu0 %v1522
      %v5405 = vpop.f32.mrf.mxu0
      %v5406 = vadd.f32 %v5378, %v5405
      %v5407 = vpop.f32.mrf.mxu0
      %5408 = vdwg.mxu0
      %5409 = vmatpush.bf16.msra.mxu0 %v3927
      %5410 = vmatpush.bf16.msra.mxu0 %v3925
      %5411 = vmatpush.bf16.msra.mxu0 %v3923
      %5412 = vmatpush.bf16.msra.mxu0 %v3921
      %5413 = vmatpush.bf16.msra.mxu0 %v3919
      %5414 = vmatpush.bf16.msra.mxu0 %v3917
      %5415 = vmatpush.bf16.msra.mxu0 %v3915
      %5416 = vmatpush.bf16.msra.mxu0 %v3913
      %5417 = vmatmul.bf16.gmra.mxu0 %v1403
      %v5418 = vpop.f32.mrf.mxu0
      %v5419 = vadd.f32 %v5391, %v5418
      %v5420 = vpop.f32.mrf.mxu0
      %v5421 = vadd.f32 %v5393, %v5420
      %5422 = vmatmul.bf16.gmra.mxu0 %v1443
      %v5423 = vpop.f32.mrf.mxu0
      %v5424 = vadd.f32 %v5396, %v5423
      %v5425 = vpop.f32.mrf.mxu0
      %v5426 = vadd.f32 %v5398, %v5425
      %5427 = vmatmul.bf16.gmra.mxu0 %v1483
      %v5428 = vpop.f32.mrf.mxu0
      %v5429 = vadd.f32 %v5401, %v5428
      %v5430 = vpop.f32.mrf.mxu0
      %v5431 = vadd.f32 %v5403, %v5430
      %5432 = vmatmul.bf16.gmra.mxu0 %v1523
      %v5433 = vpop.f32.mrf.mxu0
      %v5434 = vadd.f32 %v5406, %v5433
      %v5435 = vpop.f32.mrf.mxu0
      %5436 = vdwg.mxu0
      %5437 = vmatpush.bf16.msra.mxu0 %v3943
      %5438 = vmatpush.bf16.msra.mxu0 %v3941
      %5439 = vmatpush.bf16.msra.mxu0 %v3939
      %5440 = vmatpush.bf16.msra.mxu0 %v3937
      %5441 = vmatpush.bf16.msra.mxu0 %v3935
      %5442 = vmatpush.bf16.msra.mxu0 %v3933
      %5443 = vmatpush.bf16.msra.mxu0 %v3931
      %5444 = vmatpush.bf16.msra.mxu0 %v3929
      %5445 = vmatmul.bf16.gmra.mxu0 %v1404
      %v5446 = vpop.f32.mrf.mxu0
      %v5447 = vadd.f32 %v5419, %v5446
      %v5448 = vpop.f32.mrf.mxu0
      %v5449 = vadd.f32 %v5421, %v5448
      %5450 = vmatmul.bf16.gmra.mxu0 %v1444
      %v5451 = vpop.f32.mrf.mxu0
      %v5452 = vadd.f32 %v5424, %v5451
      %v5453 = vpop.f32.mrf.mxu0
      %v5454 = vadd.f32 %v5426, %v5453
      %5455 = vmatmul.bf16.gmra.mxu0 %v1484
      %v5456 = vpop.f32.mrf.mxu0
      %v5457 = vadd.f32 %v5429, %v5456
      %v5458 = vpop.f32.mrf.mxu0
      %v5459 = vadd.f32 %v5431, %v5458
      %5460 = vmatmul.bf16.gmra.mxu0 %v1524
      %v5461 = vpop.f32.mrf.mxu0
      %v5462 = vadd.f32 %v5434, %v5461
      %v5463 = vpop.f32.mrf.mxu0
      %5464 = vdwg.mxu0
      %5465 = vmatpush.bf16.msra.mxu0 %v3959
      %5466 = vmatpush.bf16.msra.mxu0 %v3957
      %5467 = vmatpush.bf16.msra.mxu0 %v3955
      %5468 = vmatpush.bf16.msra.mxu0 %v3953
      %5469 = vmatpush.bf16.msra.mxu0 %v3951
      %5470 = vmatpush.bf16.msra.mxu0 %v3949
      %5471 = vmatpush.bf16.msra.mxu0 %v3947
      %5472 = vmatpush.bf16.msra.mxu0 %v3945
      %5473 = vmatmul.bf16.gmra.mxu0 %v1405
      %v5474 = vpop.f32.mrf.mxu0
      %v5475 = vadd.f32 %v5447, %v5474
      %v5476 = vpop.f32.mrf.mxu0
      %v5477 = vadd.f32 %v5449, %v5476
      %5478 = vmatmul.bf16.gmra.mxu0 %v1445
      %v5479 = vpop.f32.mrf.mxu0
      %v5480 = vadd.f32 %v5452, %v5479
      %v5481 = vpop.f32.mrf.mxu0
      %v5482 = vadd.f32 %v5454, %v5481
      %5483 = vmatmul.bf16.gmra.mxu0 %v1485
      %v5484 = vpop.f32.mrf.mxu0
      %v5485 = vadd.f32 %v5457, %v5484
      %v5486 = vpop.f32.mrf.mxu0
      %v5487 = vadd.f32 %v5459, %v5486
      %5488 = vmatmul.bf16.gmra.mxu0 %v1525
      %v5489 = vpop.f32.mrf.mxu0
      %v5490 = vadd.f32 %v5462, %v5489
      %v5491 = vpop.f32.mrf.mxu0
      %5492 = vdwg.mxu0
      %5493 = vmatpush.bf16.msra.mxu0 %v3975
      %5494 = vmatpush.bf16.msra.mxu0 %v3973
      %5495 = vmatpush.bf16.msra.mxu0 %v3971
      %5496 = vmatpush.bf16.msra.mxu0 %v3969
      %5497 = vmatpush.bf16.msra.mxu0 %v3967
      %5498 = vmatpush.bf16.msra.mxu0 %v3965
      %5499 = vmatpush.bf16.msra.mxu0 %v3963
      %5500 = vmatpush.bf16.msra.mxu0 %v3961
      %5501 = vmatmul.bf16.gmra.mxu0 %v1406
      %v5502 = vpop.f32.mrf.mxu0
      %v5503 = vadd.f32 %v5475, %v5502
      %v5504 = vpop.f32.mrf.mxu0
      %v5505 = vadd.f32 %v5477, %v5504
      %5506 = vmatmul.bf16.gmra.mxu0 %v1446
      %v5507 = vpop.f32.mrf.mxu0
      %v5508 = vadd.f32 %v5480, %v5507
      %v5509 = vpop.f32.mrf.mxu0
      %v5510 = vadd.f32 %v5482, %v5509
      %5511 = vmatmul.bf16.gmra.mxu0 %v1486
      %v5512 = vpop.f32.mrf.mxu0
      %v5513 = vadd.f32 %v5485, %v5512
      %v5514 = vpop.f32.mrf.mxu0
      %v5515 = vadd.f32 %v5487, %v5514
      %5516 = vmatmul.bf16.gmra.mxu0 %v1526
      %v5517 = vpop.f32.mrf.mxu0
      %v5518 = vadd.f32 %v5490, %v5517
      %v5519 = vpop.f32.mrf.mxu0
      %5520 = vdwg.mxu0
      %5521 = vmatpush.bf16.msra.mxu0 %v3991
      %5522 = vmatpush.bf16.msra.mxu0 %v3989
      %5523 = vmatpush.bf16.msra.mxu0 %v3987
      %5524 = vmatpush.bf16.msra.mxu0 %v3985
      %5525 = vmatpush.bf16.msra.mxu0 %v3983
      %5526 = vmatpush.bf16.msra.mxu0 %v3981
      %5527 = vmatpush.bf16.msra.mxu0 %v3979
      %5528 = vmatpush.bf16.msra.mxu0 %v3977
      %5529 = vmatmul.bf16.gmra.mxu0 %v1407
      %v5530 = vpop.f32.mrf.mxu0
      %v5531 = vadd.f32 %v5503, %v5530
      %v5532 = vpop.f32.mrf.mxu0
      %v5533 = vadd.f32 %v5505, %v5532
      %5534 = vmatmul.bf16.gmra.mxu0 %v1447
      %v5535 = vpop.f32.mrf.mxu0
      %v5536 = vadd.f32 %v5508, %v5535
      %v5537 = vpop.f32.mrf.mxu0
      %v5538 = vadd.f32 %v5510, %v5537
      %5539 = vmatmul.bf16.gmra.mxu0 %v1487
      %v5540 = vpop.f32.mrf.mxu0
      %v5541 = vadd.f32 %v5513, %v5540
      %v5542 = vpop.f32.mrf.mxu0
      %v5543 = vadd.f32 %v5515, %v5542
      %5544 = vmatmul.bf16.gmra.mxu0 %v1527
      %v5545 = vpop.f32.mrf.mxu0
      %v5546 = vadd.f32 %v5518, %v5545
      %v5547 = vpop.f32.mrf.mxu0
      %5548 = vdwg.mxu0
      %5549 = vmatpush.bf16.msra.mxu0 %v4007
      %5550 = vmatpush.bf16.msra.mxu0 %v4005
      %5551 = vmatpush.bf16.msra.mxu0 %v4003
      %5552 = vmatpush.bf16.msra.mxu0 %v4001
      %5553 = vmatpush.bf16.msra.mxu0 %v3999
      %5554 = vmatpush.bf16.msra.mxu0 %v3997
      %5555 = vmatpush.bf16.msra.mxu0 %v3995
      %5556 = vmatpush.bf16.msra.mxu0 %v3993
      %5557 = vmatmul.bf16.gmra.mxu0 %v1408
      %v5558 = vpop.f32.mrf.mxu0
      %v5559 = vadd.f32 %v5531, %v5558
      %v5560 = vpop.f32.mrf.mxu0
      %v5561 = vadd.f32 %v5533, %v5560
      %5562 = vmatmul.bf16.gmra.mxu0 %v1448
      %v5563 = vpop.f32.mrf.mxu0
      %v5564 = vadd.f32 %v5536, %v5563
      %v5565 = vpop.f32.mrf.mxu0
      %v5566 = vadd.f32 %v5538, %v5565
      %5567 = vmatmul.bf16.gmra.mxu0 %v1488
      %v5568 = vpop.f32.mrf.mxu0
      %v5569 = vadd.f32 %v5541, %v5568
      %v5570 = vpop.f32.mrf.mxu0
      %v5571 = vadd.f32 %v5543, %v5570
      %5572 = vmatmul.bf16.gmra.mxu0 %v1528
      %v5573 = vpop.f32.mrf.mxu0
      %v5574 = vadd.f32 %v5546, %v5573
      %v5575 = vpop.f32.mrf.mxu0
      %5576 = vdwg.mxu0
      %5577 = vmatpush.bf16.msra.mxu0 %v4023
      %5578 = vmatpush.bf16.msra.mxu0 %v4021
      %5579 = vmatpush.bf16.msra.mxu0 %v4019
      %5580 = vmatpush.bf16.msra.mxu0 %v4017
      %5581 = vmatpush.bf16.msra.mxu0 %v4015
      %5582 = vmatpush.bf16.msra.mxu0 %v4013
      %5583 = vmatpush.bf16.msra.mxu0 %v4011
      %5584 = vmatpush.bf16.msra.mxu0 %v4009
      %5585 = vmatmul.bf16.gmra.mxu0 %v1409
      %v5586 = vpop.f32.mrf.mxu0
      %v5587 = vadd.f32 %v5559, %v5586
      %v5588 = vpop.f32.mrf.mxu0
      %v5589 = vadd.f32 %v5561, %v5588
      %5590 = vmatmul.bf16.gmra.mxu0 %v1449
      %v5591 = vpop.f32.mrf.mxu0
      %v5592 = vadd.f32 %v5564, %v5591
      %v5593 = vpop.f32.mrf.mxu0
      %v5594 = vadd.f32 %v5566, %v5593
      %5595 = vmatmul.bf16.gmra.mxu0 %v1489
      %v5596 = vpop.f32.mrf.mxu0
      %v5597 = vadd.f32 %v5569, %v5596
      %v5598 = vpop.f32.mrf.mxu0
      %v5599 = vadd.f32 %v5571, %v5598
      %5600 = vmatmul.bf16.gmra.mxu0 %v1529
      %v5601 = vpop.f32.mrf.mxu0
      %v5602 = vadd.f32 %v5574, %v5601
      %v5603 = vpop.f32.mrf.mxu0
      %5604 = vdwg.mxu0
      %5605 = vmatpush.bf16.msra.mxu0 %v4039
      %5606 = vmatpush.bf16.msra.mxu0 %v4037
      %5607 = vmatpush.bf16.msra.mxu0 %v4035
      %5608 = vmatpush.bf16.msra.mxu0 %v4033
      %5609 = vmatpush.bf16.msra.mxu0 %v4031
      %5610 = vmatpush.bf16.msra.mxu0 %v4029
      %5611 = vmatpush.bf16.msra.mxu0 %v4027
      %5612 = vmatpush.bf16.msra.mxu0 %v4025
      %5613 = vmatmul.bf16.gmra.mxu0 %v1410
      %v5614 = vpop.f32.mrf.mxu0
      %v5615 = vadd.f32 %v5587, %v5614
      %v5616 = vpop.f32.mrf.mxu0
      %v5617 = vadd.f32 %v5589, %v5616
      %5618 = vmatmul.bf16.gmra.mxu0 %v1450
      %v5619 = vpop.f32.mrf.mxu0
      %v5620 = vadd.f32 %v5592, %v5619
      %v5621 = vpop.f32.mrf.mxu0
      %v5622 = vadd.f32 %v5594, %v5621
      %5623 = vmatmul.bf16.gmra.mxu0 %v1490
      %v5624 = vpop.f32.mrf.mxu0
      %v5625 = vadd.f32 %v5597, %v5624
      %v5626 = vpop.f32.mrf.mxu0
      %v5627 = vadd.f32 %v5599, %v5626
      %5628 = vmatmul.bf16.gmra.mxu0 %v1530
      %v5629 = vpop.f32.mrf.mxu0
      %v5630 = vadd.f32 %v5602, %v5629
      %v5631 = vpop.f32.mrf.mxu0
      %5632 = vdwg.mxu0
      %5633 = vmatpush.bf16.msra.mxu0 %v4055
      %5634 = vmatpush.bf16.msra.mxu0 %v4053
      %5635 = vmatpush.bf16.msra.mxu0 %v4051
      %5636 = vmatpush.bf16.msra.mxu0 %v4049
      %5637 = vmatpush.bf16.msra.mxu0 %v4047
      %5638 = vmatpush.bf16.msra.mxu0 %v4045
      %5639 = vmatpush.bf16.msra.mxu0 %v4043
      %5640 = vmatpush.bf16.msra.mxu0 %v4041
      %5641 = vmatmul.bf16.gmra.mxu0 %v1411
      %v5642 = vpop.f32.mrf.mxu0
      %v5643 = vadd.f32 %v5615, %v5642
      %v5644 = vpop.f32.mrf.mxu0
      %v5645 = vadd.f32 %v5617, %v5644
      %5646 = vmatmul.bf16.gmra.mxu0 %v1451
      %v5647 = vpop.f32.mrf.mxu0
      %v5648 = vadd.f32 %v5620, %v5647
      %v5649 = vpop.f32.mrf.mxu0
      %v5650 = vadd.f32 %v5622, %v5649
      %5651 = vmatmul.bf16.gmra.mxu0 %v1491
      %v5652 = vpop.f32.mrf.mxu0
      %v5653 = vadd.f32 %v5625, %v5652
      %v5654 = vpop.f32.mrf.mxu0
      %v5655 = vadd.f32 %v5627, %v5654
      %5656 = vmatmul.bf16.gmra.mxu0 %v1531
      %v5657 = vpop.f32.mrf.mxu0
      %v5658 = vadd.f32 %v5630, %v5657
      %v5659 = vpop.f32.mrf.mxu0
      %5660 = vdwg.mxu0
      %5661 = vmatpush.bf16.msra.mxu0 %v4071
      %5662 = vmatpush.bf16.msra.mxu0 %v4069
      %5663 = vmatpush.bf16.msra.mxu0 %v4067
      %5664 = vmatpush.bf16.msra.mxu0 %v4065
      %5665 = vmatpush.bf16.msra.mxu0 %v4063
      %5666 = vmatpush.bf16.msra.mxu0 %v4061
      %5667 = vmatpush.bf16.msra.mxu0 %v4059
      %5668 = vmatpush.bf16.msra.mxu0 %v4057
      %5669 = vmatmul.bf16.gmra.mxu0 %v1412
      %v5670 = vpop.f32.mrf.mxu0
      %v5671 = vadd.f32 %v5643, %v5670
      %v5672 = vpop.f32.mrf.mxu0
      %v5673 = vadd.f32 %v5645, %v5672
      %5674 = vmatmul.bf16.gmra.mxu0 %v1452
      %v5675 = vpop.f32.mrf.mxu0
      %v5676 = vadd.f32 %v5648, %v5675
      %v5677 = vpop.f32.mrf.mxu0
      %v5678 = vadd.f32 %v5650, %v5677
      %5679 = vmatmul.bf16.gmra.mxu0 %v1492
      %v5680 = vpop.f32.mrf.mxu0
      %v5681 = vadd.f32 %v5653, %v5680
      %v5682 = vpop.f32.mrf.mxu0
      %v5683 = vadd.f32 %v5655, %v5682
      %5684 = vmatmul.bf16.gmra.mxu0 %v1532
      %v5685 = vpop.f32.mrf.mxu0
      %v5686 = vadd.f32 %v5658, %v5685
      %v5687 = vpop.f32.mrf.mxu0
      %5688 = vdwg.mxu0
      %5689 = vmatpush.bf16.msra.mxu0 %v4087
      %5690 = vmatpush.bf16.msra.mxu0 %v4085
      %5691 = vmatpush.bf16.msra.mxu0 %v4083
      %5692 = vmatpush.bf16.msra.mxu0 %v4081
      %5693 = vmatpush.bf16.msra.mxu0 %v4079
      %5694 = vmatpush.bf16.msra.mxu0 %v4077
      %5695 = vmatpush.bf16.msra.mxu0 %v4075
      %5696 = vmatpush.bf16.msra.mxu0 %v4073
      %5697 = vmatmul.bf16.gmra.mxu0 %v1413
      %v5698 = vpop.f32.mrf.mxu0
      %v5699 = vadd.f32 %v5671, %v5698
      %v5700 = vpop.f32.mrf.mxu0
      %v5701 = vadd.f32 %v5673, %v5700
      %5702 = vmatmul.bf16.gmra.mxu0 %v1453
      %v5703 = vpop.f32.mrf.mxu0
      %v5704 = vadd.f32 %v5676, %v5703
      %v5705 = vpop.f32.mrf.mxu0
      %v5706 = vadd.f32 %v5678, %v5705
      %5707 = vmatmul.bf16.gmra.mxu0 %v1493
      %v5708 = vpop.f32.mrf.mxu0
      %v5709 = vadd.f32 %v5681, %v5708
      %v5710 = vpop.f32.mrf.mxu0
      %v5711 = vadd.f32 %v5683, %v5710
      %5712 = vmatmul.bf16.gmra.mxu0 %v1533
      %v5713 = vpop.f32.mrf.mxu0
      %v5714 = vadd.f32 %v5686, %v5713
      %v5715 = vpop.f32.mrf.mxu0
      %5716 = vdwg.mxu0
      %5717 = vmatpush.bf16.msra.mxu0 %v4103
      %5718 = vmatpush.bf16.msra.mxu0 %v4101
      %5719 = vmatpush.bf16.msra.mxu0 %v4099
      %5720 = vmatpush.bf16.msra.mxu0 %v4097
      %5721 = vmatpush.bf16.msra.mxu0 %v4095
      %5722 = vmatpush.bf16.msra.mxu0 %v4093
      %5723 = vmatpush.bf16.msra.mxu0 %v4091
      %5724 = vmatpush.bf16.msra.mxu0 %v4089
      %5725 = vmatmul.bf16.gmra.mxu0 %v1414
      %v5726 = vpop.f32.mrf.mxu0
      %v5727 = vadd.f32 %v5699, %v5726
      %v5728 = vpop.f32.mrf.mxu0
      %v5729 = vadd.f32 %v5701, %v5728
      %5730 = vmatmul.bf16.gmra.mxu0 %v1454
      %v5731 = vpop.f32.mrf.mxu0
      %v5732 = vadd.f32 %v5704, %v5731
      %v5733 = vpop.f32.mrf.mxu0
      %v5734 = vadd.f32 %v5706, %v5733
      %5735 = vmatmul.bf16.gmra.mxu0 %v1494
      %v5736 = vpop.f32.mrf.mxu0
      %v5737 = vadd.f32 %v5709, %v5736
      %v5738 = vpop.f32.mrf.mxu0
      %v5739 = vadd.f32 %v5711, %v5738
      %5740 = vmatmul.bf16.gmra.mxu0 %v1534
      %v5741 = vpop.f32.mrf.mxu0
      %v5742 = vadd.f32 %v5714, %v5741
      %v5743 = vpop.f32.mrf.mxu0
      %5744 = vdwg.mxu0
      %5745 = vmatpush.bf16.msra.mxu0 %v4119
      %5746 = vmatpush.bf16.msra.mxu0 %v4117
      %5747 = vmatpush.bf16.msra.mxu0 %v4115
      %5748 = vmatpush.bf16.msra.mxu0 %v4113
      %5749 = vmatpush.bf16.msra.mxu0 %v4111
      %5750 = vmatpush.bf16.msra.mxu0 %v4109
      %5751 = vmatpush.bf16.msra.mxu0 %v4107
      %5752 = vmatpush.bf16.msra.mxu0 %v4105
      %5753 = vmatmul.bf16.gmra.mxu0 %v1415
      %v5754 = vpop.f32.mrf.mxu0
      %v5755 = vadd.f32 %v5727, %v5754
      %v5756 = vpop.f32.mrf.mxu0
      %v5757 = vadd.f32 %v5729, %v5756
      %5758 = vmatmul.bf16.gmra.mxu0 %v1455
      %v5759 = vpop.f32.mrf.mxu0
      %v5760 = vadd.f32 %v5732, %v5759
      %v5761 = vpop.f32.mrf.mxu0
      %v5762 = vadd.f32 %v5734, %v5761
      %5763 = vmatmul.bf16.gmra.mxu0 %v1495
      %v5764 = vpop.f32.mrf.mxu0
      %v5765 = vadd.f32 %v5737, %v5764
      %v5766 = vpop.f32.mrf.mxu0
      %v5767 = vadd.f32 %v5739, %v5766
      %5768 = vmatmul.bf16.gmra.mxu0 %v1535
      %v5769 = vpop.f32.mrf.mxu0
      %v5770 = vadd.f32 %v5742, %v5769
      %v5771 = vpop.f32.mrf.mxu0
      %5772 = vdwg.mxu0
      %5773 = vmatpush.bf16.msra.mxu0 %v4135
      %5774 = vmatpush.bf16.msra.mxu0 %v4133
      %5775 = vmatpush.bf16.msra.mxu0 %v4131
      %5776 = vmatpush.bf16.msra.mxu0 %v4129
      %5777 = vmatpush.bf16.msra.mxu0 %v4127
      %5778 = vmatpush.bf16.msra.mxu0 %v4125
      %5779 = vmatpush.bf16.msra.mxu0 %v4123
      %5780 = vmatpush.bf16.msra.mxu0 %v4121
      %5781 = vmatmul.bf16.gmra.mxu0 %v1416
      %v5782 = vpop.f32.mrf.mxu0
      %v5783 = vadd.f32 %v5755, %v5782
      %v5784 = vpop.f32.mrf.mxu0
      %v5785 = vadd.f32 %v5757, %v5784
      %5786 = vmatmul.bf16.gmra.mxu0 %v1456
      %v5787 = vpop.f32.mrf.mxu0
      %v5788 = vadd.f32 %v5760, %v5787
      %v5789 = vpop.f32.mrf.mxu0
      %v5790 = vadd.f32 %v5762, %v5789
      %5791 = vmatmul.bf16.gmra.mxu0 %v1496
      %v5792 = vpop.f32.mrf.mxu0
      %v5793 = vadd.f32 %v5765, %v5792
      %v5794 = vpop.f32.mrf.mxu0
      %v5795 = vadd.f32 %v5767, %v5794
      %5796 = vmatmul.bf16.gmra.mxu0 %v1536
      %v5797 = vpop.f32.mrf.mxu0
      %v5798 = vadd.f32 %v5770, %v5797
      %v5799 = vpop.f32.mrf.mxu0
      %5800 = vdwg.mxu0
      %5801 = vmatpush.bf16.msra.mxu0 %v4151
      %5802 = vmatpush.bf16.msra.mxu0 %v4149
      %5803 = vmatpush.bf16.msra.mxu0 %v4147
      %5804 = vmatpush.bf16.msra.mxu0 %v4145
      %5805 = vmatpush.bf16.msra.mxu0 %v4143
      %5806 = vmatpush.bf16.msra.mxu0 %v4141
      %5807 = vmatpush.bf16.msra.mxu0 %v4139
      %5808 = vmatpush.bf16.msra.mxu0 %v4137
      %5809 = vmatmul.bf16.gmra.mxu0 %v1417
      %v5810 = vpop.f32.mrf.mxu0
      %v5811 = vadd.f32 %v5783, %v5810
      %v5812 = vpop.f32.mrf.mxu0
      %v5813 = vadd.f32 %v5785, %v5812
      %5814 = vmatmul.bf16.gmra.mxu0 %v1457
      %v5815 = vpop.f32.mrf.mxu0
      %v5816 = vadd.f32 %v5788, %v5815
      %v5817 = vpop.f32.mrf.mxu0
      %v5818 = vadd.f32 %v5790, %v5817
      %5819 = vmatmul.bf16.gmra.mxu0 %v1497
      %v5820 = vpop.f32.mrf.mxu0
      %v5821 = vadd.f32 %v5793, %v5820
      %v5822 = vpop.f32.mrf.mxu0
      %v5823 = vadd.f32 %v5795, %v5822
      %5824 = vmatmul.bf16.gmra.mxu0 %v1537
      %v5825 = vpop.f32.mrf.mxu0
      %v5826 = vadd.f32 %v5798, %v5825
      %v5827 = vpop.f32.mrf.mxu0
      %5828 = vdwg.mxu0
      %5829 = vmatpush.bf16.msra.mxu0 %v4167
      %5830 = vmatpush.bf16.msra.mxu0 %v4165
      %5831 = vmatpush.bf16.msra.mxu0 %v4163
      %5832 = vmatpush.bf16.msra.mxu0 %v4161
      %5833 = vmatpush.bf16.msra.mxu0 %v4159
      %5834 = vmatpush.bf16.msra.mxu0 %v4157
      %5835 = vmatpush.bf16.msra.mxu0 %v4155
      %5836 = vmatpush.bf16.msra.mxu0 %v4153
      %5837 = vmatmul.bf16.gmra.mxu0 %v1418
      %v5838 = vpop.f32.mrf.mxu0
      %v5839 = vadd.f32 %v5811, %v5838
      %v5840 = vpop.f32.mrf.mxu0
      %v5841 = vadd.f32 %v5813, %v5840
      %5842 = vmatmul.bf16.gmra.mxu0 %v1458
      %v5843 = vpop.f32.mrf.mxu0
      %v5844 = vadd.f32 %v5816, %v5843
      %v5845 = vpop.f32.mrf.mxu0
      %v5846 = vadd.f32 %v5818, %v5845
      %5847 = vmatmul.bf16.gmra.mxu0 %v1498
      %v5848 = vpop.f32.mrf.mxu0
      %v5849 = vadd.f32 %v5821, %v5848
      %v5850 = vpop.f32.mrf.mxu0
      %v5851 = vadd.f32 %v5823, %v5850
      %5852 = vmatmul.bf16.gmra.mxu0 %v1538
      %v5853 = vpop.f32.mrf.mxu0
      %v5854 = vadd.f32 %v5826, %v5853
      %v5855 = vpop.f32.mrf.mxu0
      %5856 = vdwg.mxu0
      %5857 = vmatpush.bf16.msra.mxu0 %v4183
      %5858 = vmatpush.bf16.msra.mxu0 %v4181
      %5859 = vmatpush.bf16.msra.mxu0 %v4179
      %5860 = vmatpush.bf16.msra.mxu0 %v4177
      %5861 = vmatpush.bf16.msra.mxu0 %v4175
      %5862 = vmatpush.bf16.msra.mxu0 %v4173
      %5863 = vmatpush.bf16.msra.mxu0 %v4171
      %5864 = vmatpush.bf16.msra.mxu0 %v4169
      %5865 = vmatmul.bf16.gmra.mxu0 %v1419
      %v5866 = vpop.f32.mrf.mxu0
      %v5867 = vadd.f32 %v5839, %v5866
      %v5868 = vpop.f32.mrf.mxu0
      %v5869 = vadd.f32 %v5841, %v5868
      %5870 = vmatmul.bf16.gmra.mxu0 %v1459
      %v5871 = vpop.f32.mrf.mxu0
      %v5872 = vadd.f32 %v5844, %v5871
      %v5873 = vpop.f32.mrf.mxu0
      %v5874 = vadd.f32 %v5846, %v5873
      %5875 = vmatmul.bf16.gmra.mxu0 %v1499
      %v5876 = vpop.f32.mrf.mxu0
      %v5877 = vadd.f32 %v5849, %v5876
      %v5878 = vpop.f32.mrf.mxu0
      %v5879 = vadd.f32 %v5851, %v5878
      %5880 = vmatmul.bf16.gmra.mxu0 %v1539
      %v5881 = vpop.f32.mrf.mxu0
      %v5882 = vadd.f32 %v5854, %v5881
      %v5883 = vpop.f32.mrf.mxu0
      %5884 = vdwg.mxu0
      %5885 = vmatpush.bf16.msra.mxu0 %v4199
      %5886 = vmatpush.bf16.msra.mxu0 %v4197
      %5887 = vmatpush.bf16.msra.mxu0 %v4195
      %5888 = vmatpush.bf16.msra.mxu0 %v4193
      %5889 = vmatpush.bf16.msra.mxu0 %v4191
      %5890 = vmatpush.bf16.msra.mxu0 %v4189
      %5891 = vmatpush.bf16.msra.mxu0 %v4187
      %5892 = vmatpush.bf16.msra.mxu0 %v4185
      %5893 = vmatmul.bf16.gmra.mxu0 %v1420
      %v5894 = vpop.f32.mrf.mxu0
      %v5895 = vadd.f32 %v5867, %v5894
      %v5896 = vpop.f32.mrf.mxu0
      %v5897 = vadd.f32 %v5869, %v5896
      %5898 = vmatmul.bf16.gmra.mxu0 %v1460
      %v5899 = vpop.f32.mrf.mxu0
      %v5900 = vadd.f32 %v5872, %v5899
      %v5901 = vpop.f32.mrf.mxu0
      %v5902 = vadd.f32 %v5874, %v5901
      %5903 = vmatmul.bf16.gmra.mxu0 %v1500
      %v5904 = vpop.f32.mrf.mxu0
      %v5905 = vadd.f32 %v5877, %v5904
      %v5906 = vpop.f32.mrf.mxu0
      %v5907 = vadd.f32 %v5879, %v5906
      %5908 = vmatmul.bf16.gmra.mxu0 %v1540
      %v5909 = vpop.f32.mrf.mxu0
      %v5910 = vadd.f32 %v5882, %v5909
      %v5911 = vpop.f32.mrf.mxu0
      %5912 = vdwg.mxu0
      %5913 = vmatpush.bf16.msra.mxu0 %v4215
      %5914 = vmatpush.bf16.msra.mxu0 %v4213
      %5915 = vmatpush.bf16.msra.mxu0 %v4211
      %5916 = vmatpush.bf16.msra.mxu0 %v4209
      %5917 = vmatpush.bf16.msra.mxu0 %v4207
      %5918 = vmatpush.bf16.msra.mxu0 %v4205
      %5919 = vmatpush.bf16.msra.mxu0 %v4203
      %5920 = vmatpush.bf16.msra.mxu0 %v4201
      %5921 = vmatmul.bf16.gmra.mxu0 %v1421
      %v5922 = vpop.f32.mrf.mxu0
      %v5923 = vadd.f32 %v5895, %v5922
      %v5924 = vpop.f32.mrf.mxu0
      %v5925 = vadd.f32 %v5897, %v5924
      %5926 = vmatmul.bf16.gmra.mxu0 %v1461
      %v5927 = vpop.f32.mrf.mxu0
      %v5928 = vadd.f32 %v5900, %v5927
      %v5929 = vpop.f32.mrf.mxu0
      %v5930 = vadd.f32 %v5902, %v5929
      %5931 = vmatmul.bf16.gmra.mxu0 %v1501
      %v5932 = vpop.f32.mrf.mxu0
      %v5933 = vadd.f32 %v5905, %v5932
      %v5934 = vpop.f32.mrf.mxu0
      %v5935 = vadd.f32 %v5907, %v5934
      %5936 = vmatmul.bf16.gmra.mxu0 %v1541
      %v5937 = vpop.f32.mrf.mxu0
      %v5938 = vadd.f32 %v5910, %v5937
      %v5939 = vpop.f32.mrf.mxu0
      %5940 = vdwg.mxu0
      %5941 = vmatpush.bf16.msra.mxu0 %v4231
      %5942 = vmatpush.bf16.msra.mxu0 %v4229
      %5943 = vmatpush.bf16.msra.mxu0 %v4227
      %5944 = vmatpush.bf16.msra.mxu0 %v4225
      %5945 = vmatpush.bf16.msra.mxu0 %v4223
      %5946 = vmatpush.bf16.msra.mxu0 %v4221
      %5947 = vmatpush.bf16.msra.mxu0 %v4219
      %5948 = vmatpush.bf16.msra.mxu0 %v4217
      %5949 = vmatmul.bf16.gmra.mxu0 %v1422
      %v5950 = vpop.f32.mrf.mxu0
      %v5951 = vadd.f32 %v5923, %v5950
      %v5952 = vpop.f32.mrf.mxu0
      %v5953 = vadd.f32 %v5925, %v5952
      %5954 = vmatmul.bf16.gmra.mxu0 %v1462
      %v5955 = vpop.f32.mrf.mxu0
      %v5956 = vadd.f32 %v5928, %v5955
      %v5957 = vpop.f32.mrf.mxu0
      %v5958 = vadd.f32 %v5930, %v5957
      %5959 = vmatmul.bf16.gmra.mxu0 %v1502
      %v5960 = vpop.f32.mrf.mxu0
      %v5961 = vadd.f32 %v5933, %v5960
      %v5962 = vpop.f32.mrf.mxu0
      %v5963 = vadd.f32 %v5935, %v5962
      %5964 = vmatmul.bf16.gmra.mxu0 %v1542
      %v5965 = vpop.f32.mrf.mxu0
      %v5966 = vadd.f32 %v5938, %v5965
      %v5967 = vpop.f32.mrf.mxu0
      %5968 = vdwg.mxu0
      %5969 = vmatpush.bf16.msra.mxu0 %v4247
      %5970 = vmatpush.bf16.msra.mxu0 %v4245
      %5971 = vmatpush.bf16.msra.mxu0 %v4243
      %5972 = vmatpush.bf16.msra.mxu0 %v4241
      %5973 = vmatpush.bf16.msra.mxu0 %v4239
      %5974 = vmatpush.bf16.msra.mxu0 %v4237
      %5975 = vmatpush.bf16.msra.mxu0 %v4235
      %5976 = vmatpush.bf16.msra.mxu0 %v4233
      %5977 = vmatmul.bf16.gmra.mxu0 %v1423
      %v5978 = vpop.f32.mrf.mxu0
      %v5979 = vadd.f32 %v5951, %v5978
      %v5980 = vpop.f32.mrf.mxu0
      %v5981 = vadd.f32 %v5953, %v5980
      %5982 = vmatmul.bf16.gmra.mxu0 %v1463
      %v5983 = vpop.f32.mrf.mxu0
      %v5984 = vadd.f32 %v5956, %v5983
      %v5985 = vpop.f32.mrf.mxu0
      %v5986 = vadd.f32 %v5958, %v5985
      %5987 = vmatmul.bf16.gmra.mxu0 %v1503
      %v5988 = vpop.f32.mrf.mxu0
      %v5989 = vadd.f32 %v5961, %v5988
      %v5990 = vpop.f32.mrf.mxu0
      %v5991 = vadd.f32 %v5963, %v5990
      %5992 = vmatmul.bf16.gmra.mxu0 %v1543
      %v5993 = vpop.f32.mrf.mxu0
      %v5994 = vadd.f32 %v5966, %v5993
      %v5995 = vpop.f32.mrf.mxu0
      %5996 = vdwg.mxu0
      %5997 = vmatpush.bf16.msra.mxu0 %v4263
      %5998 = vmatpush.bf16.msra.mxu0 %v4261
      %5999 = vmatpush.bf16.msra.mxu0 %v4259
      %6000 = vmatpush.bf16.msra.mxu0 %v4257
      %6001 = vmatpush.bf16.msra.mxu0 %v4255
      %6002 = vmatpush.bf16.msra.mxu0 %v4253
      %6003 = vmatpush.bf16.msra.mxu0 %v4251
      %6004 = vmatpush.bf16.msra.mxu0 %v4249
      %6005 = vmatmul.bf16.gmra.mxu0 %v1424
      %v6006 = vpop.f32.mrf.mxu0
      %v6007 = vadd.f32 %v5979, %v6006
      %v6008 = vpop.f32.mrf.mxu0
      %v6009 = vadd.f32 %v5981, %v6008
      %6010 = vmatmul.bf16.gmra.mxu0 %v1464
      %v6011 = vpop.f32.mrf.mxu0
      %v6012 = vadd.f32 %v5984, %v6011
      %v6013 = vpop.f32.mrf.mxu0
      %v6014 = vadd.f32 %v5986, %v6013
      %6015 = vmatmul.bf16.gmra.mxu0 %v1504
      %v6016 = vpop.f32.mrf.mxu0
      %v6017 = vadd.f32 %v5989, %v6016
      %v6018 = vpop.f32.mrf.mxu0
      %v6019 = vadd.f32 %v5991, %v6018
      %6020 = vmatmul.bf16.gmra.mxu0 %v1544
      %v6021 = vpop.f32.mrf.mxu0
      %v6022 = vadd.f32 %v5994, %v6021
      %v6023 = vpop.f32.mrf.mxu0
      %6024 = vdwg.mxu0
      %6025 = vmatpush.bf16.msra.mxu0 %v3640
      %6026 = vmatpush.bf16.msra.mxu0 %v3638
      %6027 = vmatpush.bf16.msra.mxu0 %v3636
      %6028 = vmatpush.bf16.msra.mxu0 %v3634
      %6029 = vmatpush.bf16.msra.mxu0 %v3632
      %6030 = vmatpush.bf16.msra.mxu0 %v3630
      %6031 = vmatpush.bf16.msra.mxu0 %v3628
      %6032 = vmatpush.bf16.msra.mxu0 %v3626
      %6033 = vmatmul.bf16.gmra.mxu0 %v1385
      %v6034 = vpop.f32.mrf.mxu0
      %v6035 = vadd.f32 %v962, %v6034
      %v6036 = vpop.f32.mrf.mxu0
      %v6037 = vadd.f32 %v962, %v6036
      %6038 = vmatmul.bf16.gmra.mxu0 %v1425
      %v6039 = vpop.f32.mrf.mxu0
      %v6040 = vadd.f32 %v962, %v6039
      %v6041 = vpop.f32.mrf.mxu0
      %v6042 = vadd.f32 %v962, %v6041
      %6043 = vmatmul.bf16.gmra.mxu0 %v1465
      %v6044 = vpop.f32.mrf.mxu0
      %v6045 = vadd.f32 %v962, %v6044
      %v6046 = vpop.f32.mrf.mxu0
      %v6047 = vadd.f32 %v962, %v6046
      %6048 = vmatmul.bf16.gmra.mxu0 %v1505
      %v6049 = vpop.f32.mrf.mxu0
      %v6050 = vadd.f32 %v962, %v6049
      %v6051 = vpop.f32.mrf.mxu0
      %6052 = vdwg.mxu0
      %6053 = vmatpush.bf16.msra.mxu0 %v3656
      %6054 = vmatpush.bf16.msra.mxu0 %v3654
      %6055 = vmatpush.bf16.msra.mxu0 %v3652
      %6056 = vmatpush.bf16.msra.mxu0 %v3650
      %6057 = vmatpush.bf16.msra.mxu0 %v3648
      %6058 = vmatpush.bf16.msra.mxu0 %v3646
      %6059 = vmatpush.bf16.msra.mxu0 %v3644
      %6060 = vmatpush.bf16.msra.mxu0 %v3642
      %6061 = vmatmul.bf16.gmra.mxu0 %v1386
      %v6062 = vpop.f32.mrf.mxu0
      %v6063 = vadd.f32 %v6035, %v6062
      %v6064 = vpop.f32.mrf.mxu0
      %v6065 = vadd.f32 %v6037, %v6064
      %6066 = vmatmul.bf16.gmra.mxu0 %v1426
      %v6067 = vpop.f32.mrf.mxu0
      %v6068 = vadd.f32 %v6040, %v6067
      %v6069 = vpop.f32.mrf.mxu0
      %v6070 = vadd.f32 %v6042, %v6069
      %6071 = vmatmul.bf16.gmra.mxu0 %v1466
      %v6072 = vpop.f32.mrf.mxu0
      %v6073 = vadd.f32 %v6045, %v6072
      %v6074 = vpop.f32.mrf.mxu0
      %v6075 = vadd.f32 %v6047, %v6074
      %6076 = vmatmul.bf16.gmra.mxu0 %v1506
      %v6077 = vpop.f32.mrf.mxu0
      %v6078 = vadd.f32 %v6050, %v6077
      %v6079 = vpop.f32.mrf.mxu0
      %6080 = vdwg.mxu0
      %6081 = vmatpush.bf16.msra.mxu0 %v3672
      %6082 = vmatpush.bf16.msra.mxu0 %v3670
      %6083 = vmatpush.bf16.msra.mxu0 %v3668
      %6084 = vmatpush.bf16.msra.mxu0 %v3666
      %6085 = vmatpush.bf16.msra.mxu0 %v3664
      %6086 = vmatpush.bf16.msra.mxu0 %v3662
      %6087 = vmatpush.bf16.msra.mxu0 %v3660
      %6088 = vmatpush.bf16.msra.mxu0 %v3658
      %6089 = vmatmul.bf16.gmra.mxu0 %v1387
      %v6090 = vpop.f32.mrf.mxu0
      %v6091 = vadd.f32 %v6063, %v6090
      %v6092 = vpop.f32.mrf.mxu0
      %v6093 = vadd.f32 %v6065, %v6092
      %6094 = vmatmul.bf16.gmra.mxu0 %v1427
      %v6095 = vpop.f32.mrf.mxu0
      %v6096 = vadd.f32 %v6068, %v6095
      %v6097 = vpop.f32.mrf.mxu0
      %v6098 = vadd.f32 %v6070, %v6097
      %6099 = vmatmul.bf16.gmra.mxu0 %v1467
      %v6100 = vpop.f32.mrf.mxu0
      %v6101 = vadd.f32 %v6073, %v6100
      %v6102 = vpop.f32.mrf.mxu0
      %v6103 = vadd.f32 %v6075, %v6102
      %6104 = vmatmul.bf16.gmra.mxu0 %v1507
      %v6105 = vpop.f32.mrf.mxu0
      %v6106 = vadd.f32 %v6078, %v6105
      %v6107 = vpop.f32.mrf.mxu0
      %6108 = vdwg.mxu0
      %6109 = vmatpush.bf16.msra.mxu0 %v3688
      %6110 = vmatpush.bf16.msra.mxu0 %v3686
      %6111 = vmatpush.bf16.msra.mxu0 %v3684
      %6112 = vmatpush.bf16.msra.mxu0 %v3682
      %6113 = vmatpush.bf16.msra.mxu0 %v3680
      %6114 = vmatpush.bf16.msra.mxu0 %v3678
      %6115 = vmatpush.bf16.msra.mxu0 %v3676
      %6116 = vmatpush.bf16.msra.mxu0 %v3674
      %6117 = vmatmul.bf16.gmra.mxu0 %v1388
      %v6118 = vpop.f32.mrf.mxu0
      %v6119 = vadd.f32 %v6091, %v6118
      %v6120 = vpop.f32.mrf.mxu0
      %v6121 = vadd.f32 %v6093, %v6120
      %6122 = vmatmul.bf16.gmra.mxu0 %v1428
      %v6123 = vpop.f32.mrf.mxu0
      %v6124 = vadd.f32 %v6096, %v6123
      %v6125 = vpop.f32.mrf.mxu0
      %v6126 = vadd.f32 %v6098, %v6125
      %6127 = vmatmul.bf16.gmra.mxu0 %v1468
      %v6128 = vpop.f32.mrf.mxu0
      %v6129 = vadd.f32 %v6101, %v6128
      %v6130 = vpop.f32.mrf.mxu0
      %v6131 = vadd.f32 %v6103, %v6130
      %6132 = vmatmul.bf16.gmra.mxu0 %v1508
      %v6133 = vpop.f32.mrf.mxu0
      %v6134 = vadd.f32 %v6106, %v6133
      %v6135 = vpop.f32.mrf.mxu0
      %6136 = vdwg.mxu0
      %6137 = vmatpush.bf16.msra.mxu0 %v3704
      %6138 = vmatpush.bf16.msra.mxu0 %v3702
      %6139 = vmatpush.bf16.msra.mxu0 %v3700
      %6140 = vmatpush.bf16.msra.mxu0 %v3698
      %6141 = vmatpush.bf16.msra.mxu0 %v3696
      %6142 = vmatpush.bf16.msra.mxu0 %v3694
      %6143 = vmatpush.bf16.msra.mxu0 %v3692
      %6144 = vmatpush.bf16.msra.mxu0 %v3690
      %6145 = vmatmul.bf16.gmra.mxu0 %v1389
      %v6146 = vpop.f32.mrf.mxu0
      %v6147 = vadd.f32 %v6119, %v6146
      %v6148 = vpop.f32.mrf.mxu0
      %v6149 = vadd.f32 %v6121, %v6148
      %6150 = vmatmul.bf16.gmra.mxu0 %v1429
      %v6151 = vpop.f32.mrf.mxu0
      %v6152 = vadd.f32 %v6124, %v6151
      %v6153 = vpop.f32.mrf.mxu0
      %v6154 = vadd.f32 %v6126, %v6153
      %6155 = vmatmul.bf16.gmra.mxu0 %v1469
      %v6156 = vpop.f32.mrf.mxu0
      %v6157 = vadd.f32 %v6129, %v6156
      %v6158 = vpop.f32.mrf.mxu0
      %v6159 = vadd.f32 %v6131, %v6158
      %6160 = vmatmul.bf16.gmra.mxu0 %v1509
      %v6161 = vpop.f32.mrf.mxu0
      %v6162 = vadd.f32 %v6134, %v6161
      %v6163 = vpop.f32.mrf.mxu0
      %6164 = vdwg.mxu0
      %6165 = vmatpush.bf16.msra.mxu0 %v3720
      %6166 = vmatpush.bf16.msra.mxu0 %v3718
      %6167 = vmatpush.bf16.msra.mxu0 %v3716
      %6168 = vmatpush.bf16.msra.mxu0 %v3714
      %6169 = vmatpush.bf16.msra.mxu0 %v3712
      %6170 = vmatpush.bf16.msra.mxu0 %v3710
      %6171 = vmatpush.bf16.msra.mxu0 %v3708
      %6172 = vmatpush.bf16.msra.mxu0 %v3706
      %6173 = vmatmul.bf16.gmra.mxu0 %v1390
      %v6174 = vpop.f32.mrf.mxu0
      %v6175 = vadd.f32 %v6147, %v6174
      %v6176 = vpop.f32.mrf.mxu0
      %v6177 = vadd.f32 %v6149, %v6176
      %6178 = vmatmul.bf16.gmra.mxu0 %v1430
      %v6179 = vpop.f32.mrf.mxu0
      %v6180 = vadd.f32 %v6152, %v6179
      %v6181 = vpop.f32.mrf.mxu0
      %v6182 = vadd.f32 %v6154, %v6181
      %6183 = vmatmul.bf16.gmra.mxu0 %v1470
      %v6184 = vpop.f32.mrf.mxu0
      %v6185 = vadd.f32 %v6157, %v6184
      %v6186 = vpop.f32.mrf.mxu0
      %v6187 = vadd.f32 %v6159, %v6186
      %6188 = vmatmul.bf16.gmra.mxu0 %v1510
      %v6189 = vpop.f32.mrf.mxu0
      %v6190 = vadd.f32 %v6162, %v6189
      %v6191 = vpop.f32.mrf.mxu0
      %6192 = vdwg.mxu0
      %6193 = vmatpush.bf16.msra.mxu0 %v3736
      %6194 = vmatpush.bf16.msra.mxu0 %v3734
      %6195 = vmatpush.bf16.msra.mxu0 %v3732
      %6196 = vmatpush.bf16.msra.mxu0 %v3730
      %6197 = vmatpush.bf16.msra.mxu0 %v3728
      %6198 = vmatpush.bf16.msra.mxu0 %v3726
      %6199 = vmatpush.bf16.msra.mxu0 %v3724
      %6200 = vmatpush.bf16.msra.mxu0 %v3722
      %6201 = vmatmul.bf16.gmra.mxu0 %v1391
      %v6202 = vpop.f32.mrf.mxu0
      %v6203 = vadd.f32 %v6175, %v6202
      %v6204 = vpop.f32.mrf.mxu0
      %v6205 = vadd.f32 %v6177, %v6204
      %6206 = vmatmul.bf16.gmra.mxu0 %v1431
      %v6207 = vpop.f32.mrf.mxu0
      %v6208 = vadd.f32 %v6180, %v6207
      %v6209 = vpop.f32.mrf.mxu0
      %v6210 = vadd.f32 %v6182, %v6209
      %6211 = vmatmul.bf16.gmra.mxu0 %v1471
      %v6212 = vpop.f32.mrf.mxu0
      %v6213 = vadd.f32 %v6185, %v6212
      %v6214 = vpop.f32.mrf.mxu0
      %v6215 = vadd.f32 %v6187, %v6214
      %6216 = vmatmul.bf16.gmra.mxu0 %v1511
      %v6217 = vpop.f32.mrf.mxu0
      %v6218 = vadd.f32 %v6190, %v6217
      %v6219 = vpop.f32.mrf.mxu0
      %6220 = vdwg.mxu0
      %6221 = vmatpush.bf16.msra.mxu0 %v3752
      %6222 = vmatpush.bf16.msra.mxu0 %v3750
      %6223 = vmatpush.bf16.msra.mxu0 %v3748
      %6224 = vmatpush.bf16.msra.mxu0 %v3746
      %6225 = vmatpush.bf16.msra.mxu0 %v3744
      %6226 = vmatpush.bf16.msra.mxu0 %v3742
      %6227 = vmatpush.bf16.msra.mxu0 %v3740
      %6228 = vmatpush.bf16.msra.mxu0 %v3738
      %6229 = vmatmul.bf16.gmra.mxu0 %v1392
      %v6230 = vpop.f32.mrf.mxu0
      %v6231 = vadd.f32 %v6203, %v6230
      %v6232 = vpop.f32.mrf.mxu0
      %v6233 = vadd.f32 %v6205, %v6232
      %6234 = vmatmul.bf16.gmra.mxu0 %v1432
      %v6235 = vpop.f32.mrf.mxu0
      %v6236 = vadd.f32 %v6208, %v6235
      %v6237 = vpop.f32.mrf.mxu0
      %v6238 = vadd.f32 %v6210, %v6237
      %6239 = vmatmul.bf16.gmra.mxu0 %v1472
      %v6240 = vpop.f32.mrf.mxu0
      %v6241 = vadd.f32 %v6213, %v6240
      %v6242 = vpop.f32.mrf.mxu0
      %v6243 = vadd.f32 %v6215, %v6242
      %6244 = vmatmul.bf16.gmra.mxu0 %v1512
      %v6245 = vpop.f32.mrf.mxu0
      %v6246 = vadd.f32 %v6218, %v6245
      %v6247 = vpop.f32.mrf.mxu0
      %6248 = vdwg.mxu0
      %6249 = vmatpush.bf16.msra.mxu0 %v3768
      %6250 = vmatpush.bf16.msra.mxu0 %v3766
      %6251 = vmatpush.bf16.msra.mxu0 %v3764
      %6252 = vmatpush.bf16.msra.mxu0 %v3762
      %6253 = vmatpush.bf16.msra.mxu0 %v3760
      %6254 = vmatpush.bf16.msra.mxu0 %v3758
      %6255 = vmatpush.bf16.msra.mxu0 %v3756
      %6256 = vmatpush.bf16.msra.mxu0 %v3754
      %6257 = vmatmul.bf16.gmra.mxu0 %v1393
      %v6258 = vpop.f32.mrf.mxu0
      %v6259 = vadd.f32 %v6231, %v6258
      %v6260 = vpop.f32.mrf.mxu0
      %v6261 = vadd.f32 %v6233, %v6260
      %6262 = vmatmul.bf16.gmra.mxu0 %v1433
      %v6263 = vpop.f32.mrf.mxu0
      %v6264 = vadd.f32 %v6236, %v6263
      %v6265 = vpop.f32.mrf.mxu0
      %v6266 = vadd.f32 %v6238, %v6265
      %6267 = vmatmul.bf16.gmra.mxu0 %v1473
      %v6268 = vpop.f32.mrf.mxu0
      %v6269 = vadd.f32 %v6241, %v6268
      %v6270 = vpop.f32.mrf.mxu0
      %v6271 = vadd.f32 %v6243, %v6270
      %6272 = vmatmul.bf16.gmra.mxu0 %v1513
      %v6273 = vpop.f32.mrf.mxu0
      %v6274 = vadd.f32 %v6246, %v6273
      %v6275 = vpop.f32.mrf.mxu0
      %6276 = vdwg.mxu0
      %6277 = vmatpush.bf16.msra.mxu0 %v3784
      %6278 = vmatpush.bf16.msra.mxu0 %v3782
      %6279 = vmatpush.bf16.msra.mxu0 %v3780
      %6280 = vmatpush.bf16.msra.mxu0 %v3778
      %6281 = vmatpush.bf16.msra.mxu0 %v3776
      %6282 = vmatpush.bf16.msra.mxu0 %v3774
      %6283 = vmatpush.bf16.msra.mxu0 %v3772
      %6284 = vmatpush.bf16.msra.mxu0 %v3770
      %6285 = vmatmul.bf16.gmra.mxu0 %v1394
      %v6286 = vpop.f32.mrf.mxu0
      %v6287 = vadd.f32 %v6259, %v6286
      %v6288 = vpop.f32.mrf.mxu0
      %v6289 = vadd.f32 %v6261, %v6288
      %6290 = vmatmul.bf16.gmra.mxu0 %v1434
      %v6291 = vpop.f32.mrf.mxu0
      %v6292 = vadd.f32 %v6264, %v6291
      %v6293 = vpop.f32.mrf.mxu0
      %v6294 = vadd.f32 %v6266, %v6293
      %6295 = vmatmul.bf16.gmra.mxu0 %v1474
      %v6296 = vpop.f32.mrf.mxu0
      %v6297 = vadd.f32 %v6269, %v6296
      %v6298 = vpop.f32.mrf.mxu0
      %v6299 = vadd.f32 %v6271, %v6298
      %6300 = vmatmul.bf16.gmra.mxu0 %v1514
      %v6301 = vpop.f32.mrf.mxu0
      %v6302 = vadd.f32 %v6274, %v6301
      %v6303 = vpop.f32.mrf.mxu0
      %6304 = vdwg.mxu0
      %6305 = vmatpush.bf16.msra.mxu0 %v3800
      %6306 = vmatpush.bf16.msra.mxu0 %v3798
      %6307 = vmatpush.bf16.msra.mxu0 %v3796
      %6308 = vmatpush.bf16.msra.mxu0 %v3794
      %6309 = vmatpush.bf16.msra.mxu0 %v3792
      %6310 = vmatpush.bf16.msra.mxu0 %v3790
      %6311 = vmatpush.bf16.msra.mxu0 %v3788
      %6312 = vmatpush.bf16.msra.mxu0 %v3786
      %6313 = vmatmul.bf16.gmra.mxu0 %v1395
      %v6314 = vpop.f32.mrf.mxu0
      %v6315 = vadd.f32 %v6287, %v6314
      %v6316 = vpop.f32.mrf.mxu0
      %v6317 = vadd.f32 %v6289, %v6316
      %6318 = vmatmul.bf16.gmra.mxu0 %v1435
      %v6319 = vpop.f32.mrf.mxu0
      %v6320 = vadd.f32 %v6292, %v6319
      %v6321 = vpop.f32.mrf.mxu0
      %v6322 = vadd.f32 %v6294, %v6321
      %6323 = vmatmul.bf16.gmra.mxu0 %v1475
      %v6324 = vpop.f32.mrf.mxu0
      %v6325 = vadd.f32 %v6297, %v6324
      %v6326 = vpop.f32.mrf.mxu0
      %v6327 = vadd.f32 %v6299, %v6326
      %6328 = vmatmul.bf16.gmra.mxu0 %v1515
      %v6329 = vpop.f32.mrf.mxu0
      %v6330 = vadd.f32 %v6302, %v6329
      %v6331 = vpop.f32.mrf.mxu0
      %6332 = vdwg.mxu0
      %6333 = vmatpush.bf16.msra.mxu0 %v3816
      %6334 = vmatpush.bf16.msra.mxu0 %v3814
      %6335 = vmatpush.bf16.msra.mxu0 %v3812
      %6336 = vmatpush.bf16.msra.mxu0 %v3810
      %6337 = vmatpush.bf16.msra.mxu0 %v3808
      %6338 = vmatpush.bf16.msra.mxu0 %v3806
      %6339 = vmatpush.bf16.msra.mxu0 %v3804
      %6340 = vmatpush.bf16.msra.mxu0 %v3802
      %6341 = vmatmul.bf16.gmra.mxu0 %v1396
      %v6342 = vpop.f32.mrf.mxu0
      %v6343 = vadd.f32 %v6315, %v6342
      %v6344 = vpop.f32.mrf.mxu0
      %v6345 = vadd.f32 %v6317, %v6344
      %6346 = vmatmul.bf16.gmra.mxu0 %v1436
      %v6347 = vpop.f32.mrf.mxu0
      %v6348 = vadd.f32 %v6320, %v6347
      %v6349 = vpop.f32.mrf.mxu0
      %v6350 = vadd.f32 %v6322, %v6349
      %6351 = vmatmul.bf16.gmra.mxu0 %v1476
      %v6352 = vpop.f32.mrf.mxu0
      %v6353 = vadd.f32 %v6325, %v6352
      %v6354 = vpop.f32.mrf.mxu0
      %v6355 = vadd.f32 %v6327, %v6354
      %6356 = vmatmul.bf16.gmra.mxu0 %v1516
      %v6357 = vpop.f32.mrf.mxu0
      %v6358 = vadd.f32 %v6330, %v6357
      %v6359 = vpop.f32.mrf.mxu0
      %6360 = vdwg.mxu0
      %6361 = vmatpush.bf16.msra.mxu0 %v3832
      %6362 = vmatpush.bf16.msra.mxu0 %v3830
      %6363 = vmatpush.bf16.msra.mxu0 %v3828
      %6364 = vmatpush.bf16.msra.mxu0 %v3826
      %6365 = vmatpush.bf16.msra.mxu0 %v3824
      %6366 = vmatpush.bf16.msra.mxu0 %v3822
      %6367 = vmatpush.bf16.msra.mxu0 %v3820
      %6368 = vmatpush.bf16.msra.mxu0 %v3818
      %6369 = vmatmul.bf16.gmra.mxu0 %v1397
      %v6370 = vpop.f32.mrf.mxu0
      %v6371 = vadd.f32 %v6343, %v6370
      %v6372 = vpop.f32.mrf.mxu0
      %v6373 = vadd.f32 %v6345, %v6372
      %6374 = vmatmul.bf16.gmra.mxu0 %v1437
      %v6375 = vpop.f32.mrf.mxu0
      %v6376 = vadd.f32 %v6348, %v6375
      %v6377 = vpop.f32.mrf.mxu0
      %v6378 = vadd.f32 %v6350, %v6377
      %6379 = vmatmul.bf16.gmra.mxu0 %v1477
      %v6380 = vpop.f32.mrf.mxu0
      %v6381 = vadd.f32 %v6353, %v6380
      %v6382 = vpop.f32.mrf.mxu0
      %v6383 = vadd.f32 %v6355, %v6382
      %6384 = vmatmul.bf16.gmra.mxu0 %v1517
      %v6385 = vpop.f32.mrf.mxu0
      %v6386 = vadd.f32 %v6358, %v6385
      %v6387 = vpop.f32.mrf.mxu0
      %6388 = vdwg.mxu0
      %6389 = vmatpush.bf16.msra.mxu0 %v3848
      %6390 = vmatpush.bf16.msra.mxu0 %v3846
      %6391 = vmatpush.bf16.msra.mxu0 %v3844
      %6392 = vmatpush.bf16.msra.mxu0 %v3842
      %6393 = vmatpush.bf16.msra.mxu0 %v3840
      %6394 = vmatpush.bf16.msra.mxu0 %v3838
      %6395 = vmatpush.bf16.msra.mxu0 %v3836
      %6396 = vmatpush.bf16.msra.mxu0 %v3834
      %6397 = vmatmul.bf16.gmra.mxu0 %v1398
      %v6398 = vpop.f32.mrf.mxu0
      %v6399 = vadd.f32 %v6371, %v6398
      %v6400 = vpop.f32.mrf.mxu0
      %v6401 = vadd.f32 %v6373, %v6400
      %6402 = vmatmul.bf16.gmra.mxu0 %v1438
      %v6403 = vpop.f32.mrf.mxu0
      %v6404 = vadd.f32 %v6376, %v6403
      %v6405 = vpop.f32.mrf.mxu0
      %v6406 = vadd.f32 %v6378, %v6405
      %6407 = vmatmul.bf16.gmra.mxu0 %v1478
      %v6408 = vpop.f32.mrf.mxu0
      %v6409 = vadd.f32 %v6381, %v6408
      %v6410 = vpop.f32.mrf.mxu0
      %v6411 = vadd.f32 %v6383, %v6410
      %6412 = vmatmul.bf16.gmra.mxu0 %v1518
      %v6413 = vpop.f32.mrf.mxu0
      %v6414 = vadd.f32 %v6386, %v6413
      %v6415 = vpop.f32.mrf.mxu0
      %6416 = vdwg.mxu0
      %6417 = vmatpush.bf16.msra.mxu0 %v3864
      %6418 = vmatpush.bf16.msra.mxu0 %v3862
      %6419 = vmatpush.bf16.msra.mxu0 %v3860
      %6420 = vmatpush.bf16.msra.mxu0 %v3858
      %6421 = vmatpush.bf16.msra.mxu0 %v3856
      %6422 = vmatpush.bf16.msra.mxu0 %v3854
      %6423 = vmatpush.bf16.msra.mxu0 %v3852
      %6424 = vmatpush.bf16.msra.mxu0 %v3850
      %6425 = vmatmul.bf16.gmra.mxu0 %v1399
      %v6426 = vpop.f32.mrf.mxu0
      %v6427 = vadd.f32 %v6399, %v6426
      %v6428 = vpop.f32.mrf.mxu0
      %v6429 = vadd.f32 %v6401, %v6428
      %6430 = vmatmul.bf16.gmra.mxu0 %v1439
      %v6431 = vpop.f32.mrf.mxu0
      %v6432 = vadd.f32 %v6404, %v6431
      %v6433 = vpop.f32.mrf.mxu0
      %v6434 = vadd.f32 %v6406, %v6433
      %6435 = vmatmul.bf16.gmra.mxu0 %v1479
      %v6436 = vpop.f32.mrf.mxu0
      %v6437 = vadd.f32 %v6409, %v6436
      %v6438 = vpop.f32.mrf.mxu0
      %v6439 = vadd.f32 %v6411, %v6438
      %6440 = vmatmul.bf16.gmra.mxu0 %v1519
      %v6441 = vpop.f32.mrf.mxu0
      %v6442 = vadd.f32 %v6414, %v6441
      %v6443 = vpop.f32.mrf.mxu0
      %6444 = vdwg.mxu0
      %6445 = vmatpush.bf16.msra.mxu0 %v3880
      %6446 = vmatpush.bf16.msra.mxu0 %v3878
      %6447 = vmatpush.bf16.msra.mxu0 %v3876
      %6448 = vmatpush.bf16.msra.mxu0 %v3874
      %6449 = vmatpush.bf16.msra.mxu0 %v3872
      %6450 = vmatpush.bf16.msra.mxu0 %v3870
      %6451 = vmatpush.bf16.msra.mxu0 %v3868
      %6452 = vmatpush.bf16.msra.mxu0 %v3866
      %6453 = vmatmul.bf16.gmra.mxu0 %v1400
      %v6454 = vpop.f32.mrf.mxu0
      %v6455 = vadd.f32 %v6427, %v6454
      %v6456 = vpop.f32.mrf.mxu0
      %v6457 = vadd.f32 %v6429, %v6456
      %6458 = vmatmul.bf16.gmra.mxu0 %v1440
      %v6459 = vpop.f32.mrf.mxu0
      %v6460 = vadd.f32 %v6432, %v6459
      %v6461 = vpop.f32.mrf.mxu0
      %v6462 = vadd.f32 %v6434, %v6461
      %6463 = vmatmul.bf16.gmra.mxu0 %v1480
      %v6464 = vpop.f32.mrf.mxu0
      %v6465 = vadd.f32 %v6437, %v6464
      %v6466 = vpop.f32.mrf.mxu0
      %v6467 = vadd.f32 %v6439, %v6466
      %6468 = vmatmul.bf16.gmra.mxu0 %v1520
      %v6469 = vpop.f32.mrf.mxu0
      %v6470 = vadd.f32 %v6442, %v6469
      %v6471 = vpop.f32.mrf.mxu0
      %6472 = vdwg.mxu0
      %6473 = vmatpush.bf16.msra.mxu0 %v3896
      %6474 = vmatpush.bf16.msra.mxu0 %v3894
      %6475 = vmatpush.bf16.msra.mxu0 %v3892
      %6476 = vmatpush.bf16.msra.mxu0 %v3890
      %6477 = vmatpush.bf16.msra.mxu0 %v3888
      %6478 = vmatpush.bf16.msra.mxu0 %v3886
      %6479 = vmatpush.bf16.msra.mxu0 %v3884
      %6480 = vmatpush.bf16.msra.mxu0 %v3882
      %6481 = vmatmul.bf16.gmra.mxu0 %v1401
      %v6482 = vpop.f32.mrf.mxu0
      %v6483 = vadd.f32 %v6455, %v6482
      %v6484 = vpop.f32.mrf.mxu0
      %v6485 = vadd.f32 %v6457, %v6484
      %6486 = vmatmul.bf16.gmra.mxu0 %v1441
      %v6487 = vpop.f32.mrf.mxu0
      %v6488 = vadd.f32 %v6460, %v6487
      %v6489 = vpop.f32.mrf.mxu0
      %v6490 = vadd.f32 %v6462, %v6489
      %6491 = vmatmul.bf16.gmra.mxu0 %v1481
      %v6492 = vpop.f32.mrf.mxu0
      %v6493 = vadd.f32 %v6465, %v6492
      %v6494 = vpop.f32.mrf.mxu0
      %v6495 = vadd.f32 %v6467, %v6494
      %6496 = vmatmul.bf16.gmra.mxu0 %v1521
      %v6497 = vpop.f32.mrf.mxu0
      %v6498 = vadd.f32 %v6470, %v6497
      %v6499 = vpop.f32.mrf.mxu0
      %6500 = vdwg.mxu0
      %6501 = vmatpush.bf16.msra.mxu0 %v3912
      %6502 = vmatpush.bf16.msra.mxu0 %v3910
      %6503 = vmatpush.bf16.msra.mxu0 %v3908
      %6504 = vmatpush.bf16.msra.mxu0 %v3906
      %6505 = vmatpush.bf16.msra.mxu0 %v3904
      %6506 = vmatpush.bf16.msra.mxu0 %v3902
      %6507 = vmatpush.bf16.msra.mxu0 %v3900
      %6508 = vmatpush.bf16.msra.mxu0 %v3898
      %6509 = vmatmul.bf16.gmra.mxu0 %v1402
      %v6510 = vpop.f32.mrf.mxu0
      %v6511 = vadd.f32 %v6483, %v6510
      %v6512 = vpop.f32.mrf.mxu0
      %v6513 = vadd.f32 %v6485, %v6512
      %6514 = vmatmul.bf16.gmra.mxu0 %v1442
      %v6515 = vpop.f32.mrf.mxu0
      %v6516 = vadd.f32 %v6488, %v6515
      %v6517 = vpop.f32.mrf.mxu0
      %v6518 = vadd.f32 %v6490, %v6517
      %6519 = vmatmul.bf16.gmra.mxu0 %v1482
      %v6520 = vpop.f32.mrf.mxu0
      %v6521 = vadd.f32 %v6493, %v6520
      %v6522 = vpop.f32.mrf.mxu0
      %v6523 = vadd.f32 %v6495, %v6522
      %6524 = vmatmul.bf16.gmra.mxu0 %v1522
      %v6525 = vpop.f32.mrf.mxu0
      %v6526 = vadd.f32 %v6498, %v6525
      %v6527 = vpop.f32.mrf.mxu0
      %6528 = vdwg.mxu0
      %6529 = vmatpush.bf16.msra.mxu0 %v3928
      %6530 = vmatpush.bf16.msra.mxu0 %v3926
      %6531 = vmatpush.bf16.msra.mxu0 %v3924
      %6532 = vmatpush.bf16.msra.mxu0 %v3922
      %6533 = vmatpush.bf16.msra.mxu0 %v3920
      %6534 = vmatpush.bf16.msra.mxu0 %v3918
      %6535 = vmatpush.bf16.msra.mxu0 %v3916
      %6536 = vmatpush.bf16.msra.mxu0 %v3914
      %6537 = vmatmul.bf16.gmra.mxu0 %v1403
      %v6538 = vpop.f32.mrf.mxu0
      %v6539 = vadd.f32 %v6511, %v6538
      %v6540 = vpop.f32.mrf.mxu0
      %v6541 = vadd.f32 %v6513, %v6540
      %6542 = vmatmul.bf16.gmra.mxu0 %v1443
      %v6543 = vpop.f32.mrf.mxu0
      %v6544 = vadd.f32 %v6516, %v6543
      %v6545 = vpop.f32.mrf.mxu0
      %v6546 = vadd.f32 %v6518, %v6545
      %6547 = vmatmul.bf16.gmra.mxu0 %v1483
      %v6548 = vpop.f32.mrf.mxu0
      %v6549 = vadd.f32 %v6521, %v6548
      %v6550 = vpop.f32.mrf.mxu0
      %v6551 = vadd.f32 %v6523, %v6550
      %6552 = vmatmul.bf16.gmra.mxu0 %v1523
      %v6553 = vpop.f32.mrf.mxu0
      %v6554 = vadd.f32 %v6526, %v6553
      %v6555 = vpop.f32.mrf.mxu0
      %6556 = vdwg.mxu0
      %6557 = vmatpush.bf16.msra.mxu0 %v3944
      %6558 = vmatpush.bf16.msra.mxu0 %v3942
      %6559 = vmatpush.bf16.msra.mxu0 %v3940
      %6560 = vmatpush.bf16.msra.mxu0 %v3938
      %6561 = vmatpush.bf16.msra.mxu0 %v3936
      %6562 = vmatpush.bf16.msra.mxu0 %v3934
      %6563 = vmatpush.bf16.msra.mxu0 %v3932
      %6564 = vmatpush.bf16.msra.mxu0 %v3930
      %6565 = vmatmul.bf16.gmra.mxu0 %v1404
      %v6566 = vpop.f32.mrf.mxu0
      %v6567 = vadd.f32 %v6539, %v6566
      %v6568 = vpop.f32.mrf.mxu0
      %v6569 = vadd.f32 %v6541, %v6568
      %6570 = vmatmul.bf16.gmra.mxu0 %v1444
      %v6571 = vpop.f32.mrf.mxu0
      %v6572 = vadd.f32 %v6544, %v6571
      %v6573 = vpop.f32.mrf.mxu0
      %v6574 = vadd.f32 %v6546, %v6573
      %6575 = vmatmul.bf16.gmra.mxu0 %v1484
      %v6576 = vpop.f32.mrf.mxu0
      %v6577 = vadd.f32 %v6549, %v6576
      %v6578 = vpop.f32.mrf.mxu0
      %v6579 = vadd.f32 %v6551, %v6578
      %6580 = vmatmul.bf16.gmra.mxu0 %v1524
      %v6581 = vpop.f32.mrf.mxu0
      %v6582 = vadd.f32 %v6554, %v6581
      %v6583 = vpop.f32.mrf.mxu0
      %6584 = vdwg.mxu0
      %6585 = vmatpush.bf16.msra.mxu0 %v3960
      %6586 = vmatpush.bf16.msra.mxu0 %v3958
      %6587 = vmatpush.bf16.msra.mxu0 %v3956
      %6588 = vmatpush.bf16.msra.mxu0 %v3954
      %6589 = vmatpush.bf16.msra.mxu0 %v3952
      %6590 = vmatpush.bf16.msra.mxu0 %v3950
      %6591 = vmatpush.bf16.msra.mxu0 %v3948
      %6592 = vmatpush.bf16.msra.mxu0 %v3946
      %6593 = vmatmul.bf16.gmra.mxu0 %v1405
      %v6594 = vpop.f32.mrf.mxu0
      %v6595 = vadd.f32 %v6567, %v6594
      %v6596 = vpop.f32.mrf.mxu0
      %v6597 = vadd.f32 %v6569, %v6596
      %6598 = vmatmul.bf16.gmra.mxu0 %v1445
      %v6599 = vpop.f32.mrf.mxu0
      %v6600 = vadd.f32 %v6572, %v6599
      %v6601 = vpop.f32.mrf.mxu0
      %v6602 = vadd.f32 %v6574, %v6601
      %6603 = vmatmul.bf16.gmra.mxu0 %v1485
      %v6604 = vpop.f32.mrf.mxu0
      %v6605 = vadd.f32 %v6577, %v6604
      %v6606 = vpop.f32.mrf.mxu0
      %v6607 = vadd.f32 %v6579, %v6606
      %6608 = vmatmul.bf16.gmra.mxu0 %v1525
      %v6609 = vpop.f32.mrf.mxu0
      %v6610 = vadd.f32 %v6582, %v6609
      %v6611 = vpop.f32.mrf.mxu0
      %6612 = vdwg.mxu0
      %6613 = vmatpush.bf16.msra.mxu0 %v3976
      %6614 = vmatpush.bf16.msra.mxu0 %v3974
      %6615 = vmatpush.bf16.msra.mxu0 %v3972
      %6616 = vmatpush.bf16.msra.mxu0 %v3970
      %6617 = vmatpush.bf16.msra.mxu0 %v3968
      %6618 = vmatpush.bf16.msra.mxu0 %v3966
      %6619 = vmatpush.bf16.msra.mxu0 %v3964
      %6620 = vmatpush.bf16.msra.mxu0 %v3962
      %6621 = vmatmul.bf16.gmra.mxu0 %v1406
      %v6622 = vpop.f32.mrf.mxu0
      %v6623 = vadd.f32 %v6595, %v6622
      %v6624 = vpop.f32.mrf.mxu0
      %v6625 = vadd.f32 %v6597, %v6624
      %6626 = vmatmul.bf16.gmra.mxu0 %v1446
      %v6627 = vpop.f32.mrf.mxu0
      %v6628 = vadd.f32 %v6600, %v6627
      %v6629 = vpop.f32.mrf.mxu0
      %v6630 = vadd.f32 %v6602, %v6629
      %6631 = vmatmul.bf16.gmra.mxu0 %v1486
      %v6632 = vpop.f32.mrf.mxu0
      %v6633 = vadd.f32 %v6605, %v6632
      %v6634 = vpop.f32.mrf.mxu0
      %v6635 = vadd.f32 %v6607, %v6634
      %6636 = vmatmul.bf16.gmra.mxu0 %v1526
      %v6637 = vpop.f32.mrf.mxu0
      %v6638 = vadd.f32 %v6610, %v6637
      %v6639 = vpop.f32.mrf.mxu0
      %6640 = vdwg.mxu0
      %6641 = vmatpush.bf16.msra.mxu0 %v3992
      %6642 = vmatpush.bf16.msra.mxu0 %v3990
      %6643 = vmatpush.bf16.msra.mxu0 %v3988
      %6644 = vmatpush.bf16.msra.mxu0 %v3986
      %6645 = vmatpush.bf16.msra.mxu0 %v3984
      %6646 = vmatpush.bf16.msra.mxu0 %v3982
      %6647 = vmatpush.bf16.msra.mxu0 %v3980
      %6648 = vmatpush.bf16.msra.mxu0 %v3978
      %6649 = vmatmul.bf16.gmra.mxu0 %v1407
      %v6650 = vpop.f32.mrf.mxu0
      %v6651 = vadd.f32 %v6623, %v6650
      %v6652 = vpop.f32.mrf.mxu0
      %v6653 = vadd.f32 %v6625, %v6652
      %6654 = vmatmul.bf16.gmra.mxu0 %v1447
      %v6655 = vpop.f32.mrf.mxu0
      %v6656 = vadd.f32 %v6628, %v6655
      %v6657 = vpop.f32.mrf.mxu0
      %v6658 = vadd.f32 %v6630, %v6657
      %6659 = vmatmul.bf16.gmra.mxu0 %v1487
      %v6660 = vpop.f32.mrf.mxu0
      %v6661 = vadd.f32 %v6633, %v6660
      %v6662 = vpop.f32.mrf.mxu0
      %v6663 = vadd.f32 %v6635, %v6662
      %6664 = vmatmul.bf16.gmra.mxu0 %v1527
      %v6665 = vpop.f32.mrf.mxu0
      %v6666 = vadd.f32 %v6638, %v6665
      %v6667 = vpop.f32.mrf.mxu0
      %6668 = vdwg.mxu0
      %6669 = vmatpush.bf16.msra.mxu0 %v4008
      %6670 = vmatpush.bf16.msra.mxu0 %v4006
      %6671 = vmatpush.bf16.msra.mxu0 %v4004
      %6672 = vmatpush.bf16.msra.mxu0 %v4002
      %6673 = vmatpush.bf16.msra.mxu0 %v4000
      %6674 = vmatpush.bf16.msra.mxu0 %v3998
      %6675 = vmatpush.bf16.msra.mxu0 %v3996
      %6676 = vmatpush.bf16.msra.mxu0 %v3994
      %6677 = vmatmul.bf16.gmra.mxu0 %v1408
      %v6678 = vpop.f32.mrf.mxu0
      %v6679 = vadd.f32 %v6651, %v6678
      %v6680 = vpop.f32.mrf.mxu0
      %v6681 = vadd.f32 %v6653, %v6680
      %6682 = vmatmul.bf16.gmra.mxu0 %v1448
      %v6683 = vpop.f32.mrf.mxu0
      %v6684 = vadd.f32 %v6656, %v6683
      %v6685 = vpop.f32.mrf.mxu0
      %v6686 = vadd.f32 %v6658, %v6685
      %6687 = vmatmul.bf16.gmra.mxu0 %v1488
      %v6688 = vpop.f32.mrf.mxu0
      %v6689 = vadd.f32 %v6661, %v6688
      %v6690 = vpop.f32.mrf.mxu0
      %v6691 = vadd.f32 %v6663, %v6690
      %6692 = vmatmul.bf16.gmra.mxu0 %v1528
      %v6693 = vpop.f32.mrf.mxu0
      %v6694 = vadd.f32 %v6666, %v6693
      %v6695 = vpop.f32.mrf.mxu0
      %6696 = vdwg.mxu0
      %6697 = vmatpush.bf16.msra.mxu0 %v4024
      %6698 = vmatpush.bf16.msra.mxu0 %v4022
      %6699 = vmatpush.bf16.msra.mxu0 %v4020
      %6700 = vmatpush.bf16.msra.mxu0 %v4018
      %6701 = vmatpush.bf16.msra.mxu0 %v4016
      %6702 = vmatpush.bf16.msra.mxu0 %v4014
      %6703 = vmatpush.bf16.msra.mxu0 %v4012
      %6704 = vmatpush.bf16.msra.mxu0 %v4010
      %6705 = vmatmul.bf16.gmra.mxu0 %v1409
      %v6706 = vpop.f32.mrf.mxu0
      %v6707 = vadd.f32 %v6679, %v6706
      %v6708 = vpop.f32.mrf.mxu0
      %v6709 = vadd.f32 %v6681, %v6708
      %6710 = vmatmul.bf16.gmra.mxu0 %v1449
      %v6711 = vpop.f32.mrf.mxu0
      %v6712 = vadd.f32 %v6684, %v6711
      %v6713 = vpop.f32.mrf.mxu0
      %v6714 = vadd.f32 %v6686, %v6713
      %6715 = vmatmul.bf16.gmra.mxu0 %v1489
      %v6716 = vpop.f32.mrf.mxu0
      %v6717 = vadd.f32 %v6689, %v6716
      %v6718 = vpop.f32.mrf.mxu0
      %v6719 = vadd.f32 %v6691, %v6718
      %6720 = vmatmul.bf16.gmra.mxu0 %v1529
      %v6721 = vpop.f32.mrf.mxu0
      %v6722 = vadd.f32 %v6694, %v6721
      %v6723 = vpop.f32.mrf.mxu0
      %6724 = vdwg.mxu0
      %6725 = vmatpush.bf16.msra.mxu0 %v4040
      %6726 = vmatpush.bf16.msra.mxu0 %v4038
      %6727 = vmatpush.bf16.msra.mxu0 %v4036
      %6728 = vmatpush.bf16.msra.mxu0 %v4034
      %6729 = vmatpush.bf16.msra.mxu0 %v4032
      %6730 = vmatpush.bf16.msra.mxu0 %v4030
      %6731 = vmatpush.bf16.msra.mxu0 %v4028
      %6732 = vmatpush.bf16.msra.mxu0 %v4026
      %6733 = vmatmul.bf16.gmra.mxu0 %v1410
      %v6734 = vpop.f32.mrf.mxu0
      %v6735 = vadd.f32 %v6707, %v6734
      %v6736 = vpop.f32.mrf.mxu0
      %v6737 = vadd.f32 %v6709, %v6736
      %6738 = vmatmul.bf16.gmra.mxu0 %v1450
      %v6739 = vpop.f32.mrf.mxu0
      %v6740 = vadd.f32 %v6712, %v6739
      %v6741 = vpop.f32.mrf.mxu0
      %v6742 = vadd.f32 %v6714, %v6741
      %6743 = vmatmul.bf16.gmra.mxu0 %v1490
      %v6744 = vpop.f32.mrf.mxu0
      %v6745 = vadd.f32 %v6717, %v6744
      %v6746 = vpop.f32.mrf.mxu0
      %v6747 = vadd.f32 %v6719, %v6746
      %6748 = vmatmul.bf16.gmra.mxu0 %v1530
      %v6749 = vpop.f32.mrf.mxu0
      %v6750 = vadd.f32 %v6722, %v6749
      %v6751 = vpop.f32.mrf.mxu0
      %6752 = vdwg.mxu0
      %6753 = vmatpush.bf16.msra.mxu0 %v4056
      %6754 = vmatpush.bf16.msra.mxu0 %v4054
      %6755 = vmatpush.bf16.msra.mxu0 %v4052
      %6756 = vmatpush.bf16.msra.mxu0 %v4050
      %6757 = vmatpush.bf16.msra.mxu0 %v4048
      %6758 = vmatpush.bf16.msra.mxu0 %v4046
      %6759 = vmatpush.bf16.msra.mxu0 %v4044
      %6760 = vmatpush.bf16.msra.mxu0 %v4042
      %6761 = vmatmul.bf16.gmra.mxu0 %v1411
      %v6762 = vpop.f32.mrf.mxu0
      %v6763 = vadd.f32 %v6735, %v6762
      %v6764 = vpop.f32.mrf.mxu0
      %v6765 = vadd.f32 %v6737, %v6764
      %6766 = vmatmul.bf16.gmra.mxu0 %v1451
      %v6767 = vpop.f32.mrf.mxu0
      %v6768 = vadd.f32 %v6740, %v6767
      %v6769 = vpop.f32.mrf.mxu0
      %v6770 = vadd.f32 %v6742, %v6769
      %6771 = vmatmul.bf16.gmra.mxu0 %v1491
      %v6772 = vpop.f32.mrf.mxu0
      %v6773 = vadd.f32 %v6745, %v6772
      %v6774 = vpop.f32.mrf.mxu0
      %v6775 = vadd.f32 %v6747, %v6774
      %6776 = vmatmul.bf16.gmra.mxu0 %v1531
      %v6777 = vpop.f32.mrf.mxu0
      %v6778 = vadd.f32 %v6750, %v6777
      %v6779 = vpop.f32.mrf.mxu0
      %6780 = vdwg.mxu0
      %6781 = vmatpush.bf16.msra.mxu0 %v4072
      %6782 = vmatpush.bf16.msra.mxu0 %v4070
      %6783 = vmatpush.bf16.msra.mxu0 %v4068
      %6784 = vmatpush.bf16.msra.mxu0 %v4066
      %6785 = vmatpush.bf16.msra.mxu0 %v4064
      %6786 = vmatpush.bf16.msra.mxu0 %v4062
      %6787 = vmatpush.bf16.msra.mxu0 %v4060
      %6788 = vmatpush.bf16.msra.mxu0 %v4058
      %6789 = vmatmul.bf16.gmra.mxu0 %v1412
      %v6790 = vpop.f32.mrf.mxu0
      %v6791 = vadd.f32 %v6763, %v6790
      %v6792 = vpop.f32.mrf.mxu0
      %v6793 = vadd.f32 %v6765, %v6792
      %6794 = vmatmul.bf16.gmra.mxu0 %v1452
      %v6795 = vpop.f32.mrf.mxu0
      %v6796 = vadd.f32 %v6768, %v6795
      %v6797 = vpop.f32.mrf.mxu0
      %v6798 = vadd.f32 %v6770, %v6797
      %6799 = vmatmul.bf16.gmra.mxu0 %v1492
      %v6800 = vpop.f32.mrf.mxu0
      %v6801 = vadd.f32 %v6773, %v6800
      %v6802 = vpop.f32.mrf.mxu0
      %v6803 = vadd.f32 %v6775, %v6802
      %6804 = vmatmul.bf16.gmra.mxu0 %v1532
      %v6805 = vpop.f32.mrf.mxu0
      %v6806 = vadd.f32 %v6778, %v6805
      %v6807 = vpop.f32.mrf.mxu0
      %6808 = vdwg.mxu0
      %6809 = vmatpush.bf16.msra.mxu0 %v4088
      %6810 = vmatpush.bf16.msra.mxu0 %v4086
      %6811 = vmatpush.bf16.msra.mxu0 %v4084
      %6812 = vmatpush.bf16.msra.mxu0 %v4082
      %6813 = vmatpush.bf16.msra.mxu0 %v4080
      %6814 = vmatpush.bf16.msra.mxu0 %v4078
      %6815 = vmatpush.bf16.msra.mxu0 %v4076
      %6816 = vmatpush.bf16.msra.mxu0 %v4074
      %6817 = vmatmul.bf16.gmra.mxu0 %v1413
      %v6818 = vpop.f32.mrf.mxu0
      %v6819 = vadd.f32 %v6791, %v6818
      %v6820 = vpop.f32.mrf.mxu0
      %v6821 = vadd.f32 %v6793, %v6820
      %6822 = vmatmul.bf16.gmra.mxu0 %v1453
      %v6823 = vpop.f32.mrf.mxu0
      %v6824 = vadd.f32 %v6796, %v6823
      %v6825 = vpop.f32.mrf.mxu0
      %v6826 = vadd.f32 %v6798, %v6825
      %6827 = vmatmul.bf16.gmra.mxu0 %v1493
      %v6828 = vpop.f32.mrf.mxu0
      %v6829 = vadd.f32 %v6801, %v6828
      %v6830 = vpop.f32.mrf.mxu0
      %v6831 = vadd.f32 %v6803, %v6830
      %6832 = vmatmul.bf16.gmra.mxu0 %v1533
      %v6833 = vpop.f32.mrf.mxu0
      %v6834 = vadd.f32 %v6806, %v6833
      %v6835 = vpop.f32.mrf.mxu0
      %6836 = vdwg.mxu0
      %6837 = vmatpush.bf16.msra.mxu0 %v4104
      %6838 = vmatpush.bf16.msra.mxu0 %v4102
      %6839 = vmatpush.bf16.msra.mxu0 %v4100
      %6840 = vmatpush.bf16.msra.mxu0 %v4098
      %6841 = vmatpush.bf16.msra.mxu0 %v4096
      %6842 = vmatpush.bf16.msra.mxu0 %v4094
      %6843 = vmatpush.bf16.msra.mxu0 %v4092
      %6844 = vmatpush.bf16.msra.mxu0 %v4090
      %6845 = vmatmul.bf16.gmra.mxu0 %v1414
      %v6846 = vpop.f32.mrf.mxu0
      %v6847 = vadd.f32 %v6819, %v6846
      %v6848 = vpop.f32.mrf.mxu0
      %v6849 = vadd.f32 %v6821, %v6848
      %6850 = vmatmul.bf16.gmra.mxu0 %v1454
      %v6851 = vpop.f32.mrf.mxu0
      %v6852 = vadd.f32 %v6824, %v6851
      %v6853 = vpop.f32.mrf.mxu0
      %v6854 = vadd.f32 %v6826, %v6853
      %6855 = vmatmul.bf16.gmra.mxu0 %v1494
      %v6856 = vpop.f32.mrf.mxu0
      %v6857 = vadd.f32 %v6829, %v6856
      %v6858 = vpop.f32.mrf.mxu0
      %v6859 = vadd.f32 %v6831, %v6858
      %6860 = vmatmul.bf16.gmra.mxu0 %v1534
      %v6861 = vpop.f32.mrf.mxu0
      %v6862 = vadd.f32 %v6834, %v6861
      %v6863 = vpop.f32.mrf.mxu0
      %6864 = vdwg.mxu0
      %6865 = vmatpush.bf16.msra.mxu0 %v4120
      %6866 = vmatpush.bf16.msra.mxu0 %v4118
      %6867 = vmatpush.bf16.msra.mxu0 %v4116
      %6868 = vmatpush.bf16.msra.mxu0 %v4114
      %6869 = vmatpush.bf16.msra.mxu0 %v4112
      %6870 = vmatpush.bf16.msra.mxu0 %v4110
      %6871 = vmatpush.bf16.msra.mxu0 %v4108
      %6872 = vmatpush.bf16.msra.mxu0 %v4106
      %6873 = vmatmul.bf16.gmra.mxu0 %v1415
      %v6874 = vpop.f32.mrf.mxu0
      %v6875 = vadd.f32 %v6847, %v6874
      %v6876 = vpop.f32.mrf.mxu0
      %v6877 = vadd.f32 %v6849, %v6876
      %6878 = vmatmul.bf16.gmra.mxu0 %v1455
      %v6879 = vpop.f32.mrf.mxu0
      %v6880 = vadd.f32 %v6852, %v6879
      %v6881 = vpop.f32.mrf.mxu0
      %v6882 = vadd.f32 %v6854, %v6881
      %6883 = vmatmul.bf16.gmra.mxu0 %v1495
      %v6884 = vpop.f32.mrf.mxu0
      %v6885 = vadd.f32 %v6857, %v6884
      %v6886 = vpop.f32.mrf.mxu0
      %v6887 = vadd.f32 %v6859, %v6886
      %6888 = vmatmul.bf16.gmra.mxu0 %v1535
      %v6889 = vpop.f32.mrf.mxu0
      %v6890 = vadd.f32 %v6862, %v6889
      %v6891 = vpop.f32.mrf.mxu0
      %6892 = vdwg.mxu0
      %6893 = vmatpush.bf16.msra.mxu0 %v4136
      %6894 = vmatpush.bf16.msra.mxu0 %v4134
      %6895 = vmatpush.bf16.msra.mxu0 %v4132
      %6896 = vmatpush.bf16.msra.mxu0 %v4130
      %6897 = vmatpush.bf16.msra.mxu0 %v4128
      %6898 = vmatpush.bf16.msra.mxu0 %v4126
      %6899 = vmatpush.bf16.msra.mxu0 %v4124
      %6900 = vmatpush.bf16.msra.mxu0 %v4122
      %6901 = vmatmul.bf16.gmra.mxu0 %v1416
      %v6902 = vpop.f32.mrf.mxu0
      %v6903 = vadd.f32 %v6875, %v6902
      %v6904 = vpop.f32.mrf.mxu0
      %v6905 = vadd.f32 %v6877, %v6904
      %6906 = vmatmul.bf16.gmra.mxu0 %v1456
      %v6907 = vpop.f32.mrf.mxu0
      %v6908 = vadd.f32 %v6880, %v6907
      %v6909 = vpop.f32.mrf.mxu0
      %v6910 = vadd.f32 %v6882, %v6909
      %6911 = vmatmul.bf16.gmra.mxu0 %v1496
      %v6912 = vpop.f32.mrf.mxu0
      %v6913 = vadd.f32 %v6885, %v6912
      %v6914 = vpop.f32.mrf.mxu0
      %v6915 = vadd.f32 %v6887, %v6914
      %6916 = vmatmul.bf16.gmra.mxu0 %v1536
      %v6917 = vpop.f32.mrf.mxu0
      %v6918 = vadd.f32 %v6890, %v6917
      %v6919 = vpop.f32.mrf.mxu0
      %6920 = vdwg.mxu0
      %6921 = vmatpush.bf16.msra.mxu0 %v4152
      %6922 = vmatpush.bf16.msra.mxu0 %v4150
      %6923 = vmatpush.bf16.msra.mxu0 %v4148
      %6924 = vmatpush.bf16.msra.mxu0 %v4146
      %6925 = vmatpush.bf16.msra.mxu0 %v4144
      %6926 = vmatpush.bf16.msra.mxu0 %v4142
      %6927 = vmatpush.bf16.msra.mxu0 %v4140
      %6928 = vmatpush.bf16.msra.mxu0 %v4138
      %6929 = vmatmul.bf16.gmra.mxu0 %v1417
      %v6930 = vpop.f32.mrf.mxu0
      %v6931 = vadd.f32 %v6903, %v6930
      %v6932 = vpop.f32.mrf.mxu0
      %v6933 = vadd.f32 %v6905, %v6932
      %6934 = vmatmul.bf16.gmra.mxu0 %v1457
      %v6935 = vpop.f32.mrf.mxu0
      %v6936 = vadd.f32 %v6908, %v6935
      %v6937 = vpop.f32.mrf.mxu0
      %v6938 = vadd.f32 %v6910, %v6937
      %6939 = vmatmul.bf16.gmra.mxu0 %v1497
      %v6940 = vpop.f32.mrf.mxu0
      %v6941 = vadd.f32 %v6913, %v6940
      %v6942 = vpop.f32.mrf.mxu0
      %v6943 = vadd.f32 %v6915, %v6942
      %6944 = vmatmul.bf16.gmra.mxu0 %v1537
      %v6945 = vpop.f32.mrf.mxu0
      %v6946 = vadd.f32 %v6918, %v6945
      %v6947 = vpop.f32.mrf.mxu0
      %6948 = vdwg.mxu0
      %6949 = vmatpush.bf16.msra.mxu0 %v4168
      %6950 = vmatpush.bf16.msra.mxu0 %v4166
      %6951 = vmatpush.bf16.msra.mxu0 %v4164
      %6952 = vmatpush.bf16.msra.mxu0 %v4162
      %6953 = vmatpush.bf16.msra.mxu0 %v4160
      %6954 = vmatpush.bf16.msra.mxu0 %v4158
      %6955 = vmatpush.bf16.msra.mxu0 %v4156
      %6956 = vmatpush.bf16.msra.mxu0 %v4154
      %6957 = vmatmul.bf16.gmra.mxu0 %v1418
      %v6958 = vpop.f32.mrf.mxu0
      %v6959 = vadd.f32 %v6931, %v6958
      %v6960 = vpop.f32.mrf.mxu0
      %v6961 = vadd.f32 %v6933, %v6960
      %6962 = vmatmul.bf16.gmra.mxu0 %v1458
      %v6963 = vpop.f32.mrf.mxu0
      %v6964 = vadd.f32 %v6936, %v6963
      %v6965 = vpop.f32.mrf.mxu0
      %v6966 = vadd.f32 %v6938, %v6965
      %6967 = vmatmul.bf16.gmra.mxu0 %v1498
      %v6968 = vpop.f32.mrf.mxu0
      %v6969 = vadd.f32 %v6941, %v6968
      %v6970 = vpop.f32.mrf.mxu0
      %v6971 = vadd.f32 %v6943, %v6970
      %6972 = vmatmul.bf16.gmra.mxu0 %v1538
      %v6973 = vpop.f32.mrf.mxu0
      %v6974 = vadd.f32 %v6946, %v6973
      %v6975 = vpop.f32.mrf.mxu0
      %6976 = vdwg.mxu0
      %6977 = vmatpush.bf16.msra.mxu0 %v4184
      %6978 = vmatpush.bf16.msra.mxu0 %v4182
      %6979 = vmatpush.bf16.msra.mxu0 %v4180
      %6980 = vmatpush.bf16.msra.mxu0 %v4178
      %6981 = vmatpush.bf16.msra.mxu0 %v4176
      %6982 = vmatpush.bf16.msra.mxu0 %v4174
      %6983 = vmatpush.bf16.msra.mxu0 %v4172
      %6984 = vmatpush.bf16.msra.mxu0 %v4170
      %6985 = vmatmul.bf16.gmra.mxu0 %v1419
      %v6986 = vpop.f32.mrf.mxu0
      %v6987 = vadd.f32 %v6959, %v6986
      %v6988 = vpop.f32.mrf.mxu0
      %v6989 = vadd.f32 %v6961, %v6988
      %6990 = vmatmul.bf16.gmra.mxu0 %v1459
      %v6991 = vpop.f32.mrf.mxu0
      %v6992 = vadd.f32 %v6964, %v6991
      %v6993 = vpop.f32.mrf.mxu0
      %v6994 = vadd.f32 %v6966, %v6993
      %6995 = vmatmul.bf16.gmra.mxu0 %v1499
      %v6996 = vpop.f32.mrf.mxu0
      %v6997 = vadd.f32 %v6969, %v6996
      %v6998 = vpop.f32.mrf.mxu0
      %v6999 = vadd.f32 %v6971, %v6998
      %7000 = vmatmul.bf16.gmra.mxu0 %v1539
      %v7001 = vpop.f32.mrf.mxu0
      %v7002 = vadd.f32 %v6974, %v7001
      %v7003 = vpop.f32.mrf.mxu0
      %7004 = vdwg.mxu0
      %7005 = vmatpush.bf16.msra.mxu0 %v4200
      %7006 = vmatpush.bf16.msra.mxu0 %v4198
      %7007 = vmatpush.bf16.msra.mxu0 %v4196
      %7008 = vmatpush.bf16.msra.mxu0 %v4194
      %7009 = vmatpush.bf16.msra.mxu0 %v4192
      %7010 = vmatpush.bf16.msra.mxu0 %v4190
      %7011 = vmatpush.bf16.msra.mxu0 %v4188
      %7012 = vmatpush.bf16.msra.mxu0 %v4186
      %7013 = vmatmul.bf16.gmra.mxu0 %v1420
      %v7014 = vpop.f32.mrf.mxu0
      %v7015 = vadd.f32 %v6987, %v7014
      %v7016 = vpop.f32.mrf.mxu0
      %v7017 = vadd.f32 %v6989, %v7016
      %7018 = vmatmul.bf16.gmra.mxu0 %v1460
      %v7019 = vpop.f32.mrf.mxu0
      %v7020 = vadd.f32 %v6992, %v7019
      %v7021 = vpop.f32.mrf.mxu0
      %v7022 = vadd.f32 %v6994, %v7021
      %7023 = vmatmul.bf16.gmra.mxu0 %v1500
      %v7024 = vpop.f32.mrf.mxu0
      %v7025 = vadd.f32 %v6997, %v7024
      %v7026 = vpop.f32.mrf.mxu0
      %v7027 = vadd.f32 %v6999, %v7026
      %7028 = vmatmul.bf16.gmra.mxu0 %v1540
      %v7029 = vpop.f32.mrf.mxu0
      %v7030 = vadd.f32 %v7002, %v7029
      %v7031 = vpop.f32.mrf.mxu0
      %7032 = vdwg.mxu0
      %7033 = vmatpush.bf16.msra.mxu0 %v4216
      %7034 = vmatpush.bf16.msra.mxu0 %v4214
      %7035 = vmatpush.bf16.msra.mxu0 %v4212
      %7036 = vmatpush.bf16.msra.mxu0 %v4210
      %7037 = vmatpush.bf16.msra.mxu0 %v4208
      %7038 = vmatpush.bf16.msra.mxu0 %v4206
      %7039 = vmatpush.bf16.msra.mxu0 %v4204
      %7040 = vmatpush.bf16.msra.mxu0 %v4202
      %7041 = vmatmul.bf16.gmra.mxu0 %v1421
      %v7042 = vpop.f32.mrf.mxu0
      %v7043 = vadd.f32 %v7015, %v7042
      %v7044 = vpop.f32.mrf.mxu0
      %v7045 = vadd.f32 %v7017, %v7044
      %7046 = vmatmul.bf16.gmra.mxu0 %v1461
      %v7047 = vpop.f32.mrf.mxu0
      %v7048 = vadd.f32 %v7020, %v7047
      %v7049 = vpop.f32.mrf.mxu0
      %v7050 = vadd.f32 %v7022, %v7049
      %7051 = vmatmul.bf16.gmra.mxu0 %v1501
      %v7052 = vpop.f32.mrf.mxu0
      %v7053 = vadd.f32 %v7025, %v7052
      %v7054 = vpop.f32.mrf.mxu0
      %v7055 = vadd.f32 %v7027, %v7054
      %7056 = vmatmul.bf16.gmra.mxu0 %v1541
      %v7057 = vpop.f32.mrf.mxu0
      %v7058 = vadd.f32 %v7030, %v7057
      %v7059 = vpop.f32.mrf.mxu0
      %7060 = vdwg.mxu0
      %7061 = vmatpush.bf16.msra.mxu0 %v4232
      %7062 = vmatpush.bf16.msra.mxu0 %v4230
      %7063 = vmatpush.bf16.msra.mxu0 %v4228
      %7064 = vmatpush.bf16.msra.mxu0 %v4226
      %7065 = vmatpush.bf16.msra.mxu0 %v4224
      %7066 = vmatpush.bf16.msra.mxu0 %v4222
      %7067 = vmatpush.bf16.msra.mxu0 %v4220
      %7068 = vmatpush.bf16.msra.mxu0 %v4218
      %7069 = vmatmul.bf16.gmra.mxu0 %v1422
      %v7070 = vpop.f32.mrf.mxu0
      %v7071 = vadd.f32 %v7043, %v7070
      %v7072 = vpop.f32.mrf.mxu0
      %v7073 = vadd.f32 %v7045, %v7072
      %7074 = vmatmul.bf16.gmra.mxu0 %v1462
      %v7075 = vpop.f32.mrf.mxu0
      %v7076 = vadd.f32 %v7048, %v7075
      %v7077 = vpop.f32.mrf.mxu0
      %v7078 = vadd.f32 %v7050, %v7077
      %7079 = vmatmul.bf16.gmra.mxu0 %v1502
      %v7080 = vpop.f32.mrf.mxu0
      %v7081 = vadd.f32 %v7053, %v7080
      %v7082 = vpop.f32.mrf.mxu0
      %v7083 = vadd.f32 %v7055, %v7082
      %7084 = vmatmul.bf16.gmra.mxu0 %v1542
      %v7085 = vpop.f32.mrf.mxu0
      %v7086 = vadd.f32 %v7058, %v7085
      %v7087 = vpop.f32.mrf.mxu0
      %7088 = vdwg.mxu0
      %7089 = vmatpush.bf16.msra.mxu0 %v4248
      %7090 = vmatpush.bf16.msra.mxu0 %v4246
      %7091 = vmatpush.bf16.msra.mxu0 %v4244
      %7092 = vmatpush.bf16.msra.mxu0 %v4242
      %7093 = vmatpush.bf16.msra.mxu0 %v4240
      %7094 = vmatpush.bf16.msra.mxu0 %v4238
      %7095 = vmatpush.bf16.msra.mxu0 %v4236
      %7096 = vmatpush.bf16.msra.mxu0 %v4234
      %7097 = vmatmul.bf16.gmra.mxu0 %v1423
      %v7098 = vpop.f32.mrf.mxu0
      %v7099 = vadd.f32 %v7071, %v7098
      %v7100 = vpop.f32.mrf.mxu0
      %v7101 = vadd.f32 %v7073, %v7100
      %7102 = vmatmul.bf16.gmra.mxu0 %v1463
      %v7103 = vpop.f32.mrf.mxu0
      %v7104 = vadd.f32 %v7076, %v7103
      %v7105 = vpop.f32.mrf.mxu0
      %v7106 = vadd.f32 %v7078, %v7105
      %7107 = vmatmul.bf16.gmra.mxu0 %v1503
      %v7108 = vpop.f32.mrf.mxu0
      %v7109 = vadd.f32 %v7081, %v7108
      %v7110 = vpop.f32.mrf.mxu0
      %v7111 = vadd.f32 %v7083, %v7110
      %7112 = vmatmul.bf16.gmra.mxu0 %v1543
      %v7113 = vpop.f32.mrf.mxu0
      %v7114 = vadd.f32 %v7086, %v7113
      %v7115 = vpop.f32.mrf.mxu0
      %7116 = vdwg.mxu0
      %7117 = vmatpush.bf16.msra.mxu0 %v4264
      %7118 = vmatpush.bf16.msra.mxu0 %v4262
      %7119 = vmatpush.bf16.msra.mxu0 %v4260
      %7120 = vmatpush.bf16.msra.mxu0 %v4258
      %7121 = vmatpush.bf16.msra.mxu0 %v4256
      %7122 = vmatpush.bf16.msra.mxu0 %v4254
      %7123 = vmatpush.bf16.msra.mxu0 %v4252
      %7124 = vmatpush.bf16.msra.mxu0 %v4250
      %7125 = vmatmul.bf16.gmra.mxu0 %v1424
      %v7126 = vpop.f32.mrf.mxu0
      %v7127 = vadd.f32 %v7099, %v7126
      %v7128 = vpop.f32.mrf.mxu0
      %v7129 = vadd.f32 %v7101, %v7128
      %7130 = vmatmul.bf16.gmra.mxu0 %v1464
      %v7131 = vpop.f32.mrf.mxu0
      %v7132 = vadd.f32 %v7104, %v7131
      %v7133 = vpop.f32.mrf.mxu0
      %v7134 = vadd.f32 %v7106, %v7133
      %7135 = vmatmul.bf16.gmra.mxu0 %v1504
      %v7136 = vpop.f32.mrf.mxu0
      %v7137 = vadd.f32 %v7109, %v7136
      %v7138 = vpop.f32.mrf.mxu0
      %v7139 = vadd.f32 %v7111, %v7138
      %7140 = vmatmul.bf16.gmra.mxu0 %v1544
      %v7141 = vpop.f32.mrf.mxu0
      %v7142 = vadd.f32 %v7114, %v7141
      %v7143 = vpop.f32.mrf.mxu0
      %7144 = vdwg.mxu0
      %7145 = vst [vmem:[%s177] sm:$0xff] %v6007
      %7146 = vst [vmem:[%s177 + $0x8] sm:$0xff] %v7127
      %7147 = vst [vmem:[%s177 + $0x10] sm:$0xff] %v6009
      %7148 = vst [vmem:[%s177 + $0x18] sm:$0xff] %v7129
      %7149 = vst [vmem:[%s177 + $0x20] sm:$0xff] %v6012
      %7150 = vst [vmem:[%s177 + $0x28] sm:$0xff] %v7132
      %7151 = vst [vmem:[%s177 + $0x30] sm:$0xff] %v6014
      %7152 = vst [vmem:[%s177 + $0x38] sm:$0xff] %v7134
      %7153 = vst [vmem:[%s177 + $0x40] sm:$0xff] %v6017
      %7154 = vst [vmem:[%s177 + $0x48] sm:$0xff] %v7137
      %7155 = vst [vmem:[%s177 + $0x50] sm:$0xff] %v6019
      %7156 = vst [vmem:[%s177 + $0x58] sm:$0xff] %v7139
      %7157 = vst [vmem:[%s177 + $0x60] sm:$0xff] %v6022
      %7158 = vst [vmem:[%s177 + $0x68] sm:$0xff] %v7142
      %s7159 = smul.u32 7, %s14
      %p7160 = scmp.lt.s32.totalorder %s7159, 13
      %s7161 = scalar_select %p7160, %s7159, 13
      %s7162 = smul.addr %s7161, 2
      %s7163 = smul.addr %s7162, 8
      %s7164 = scalar_lea.vmem %s3, %s7163
      // Predicated region
      $region33: #{encoder_forward.1} parent=31 // pred_check
        %p7165 = pneg %p100
      $region34: #{encoder_forward.1} parent=31 // pred_check_branch
        %7167 = sbr.rel (%p7165) target = $region36
      $region35: #{encoder_forward.1} parent=31 // pred_region
        %s7168 = smul.u32 7, %s14
      $region36: #{encoder_forward.1} parent=31 // pred_fallthru
        _
    $region32: #{encoder_forward.1} parent=5 // pred_fallthru
      _
    %p7169 = scmp.le.s32.totalorder 2, %s9
    // Predicated region
    $region37: #{encoder_forward.1} parent=5 // pred_check
      %p7170 = pneg %p7169
    $region38: #{encoder_forward.1} parent=5 // pred_check_branch
      %7172 = sbr.rel (%p7170) target = $region40
    $region39: #{encoder_forward.1} parent=5 // pred_region
      %s7173 = ssub.s32 %s9, 2
      // Predicated region
      $region41: #{encoder_forward.1} parent=39 // pred_check
        %p7174 = pneg %p106
      $region42: #{encoder_forward.1} parent=39 // pred_check_branch
        %7176 = sbr.rel (%p7174) target = $region44
      $region43: #{encoder_forward.1} parent=39 // pred_region
        %s7177 = smul.u32 7, %s15
        %p7178 = scmp.lt.s32.totalorder %s7177, 13
        %s7179 = scalar_select %p7178, %s7177, 13
        %s7180 = smul.addr %s7179, 2
        %s7181 = smul.addr %s7180, 8
        %s7182 = scalar_lea.vmem %s3, %s7181
      $region44: #{encoder_forward.1} parent=39 // pred_fallthru
        _
    $region40: #{encoder_forward.1} parent=5 // pred_fallthru
      _
  $region6: #{encoder_forward.1} parent=0 // loop_footer
    %s13 = sadd.s32 1, %s9
  $region7: #{encoder_forward.1} parent=0 // loop_footer_branch
    %8 = sbr.rel target = $region3
  $region8: #{encoder_forward.1} parent=0 // loop_exit
    _

</llo_original>
